<compile_context>
chip_gen: v7x
topology: tpu7x:2x2x1
jax: 0.10.0
libtpu: 0.0.40
codegen_flags: <defaults>
</compile_context>

<pallas_src>
import numpy as np
import jax
import jax.numpy as jnp
from jax.experimental import pallas as pl
from jax.experimental.pallas import tpu as pltpu

_SUB = 8
_LANE = 128
_MAX_TBSUB = 32          # up to 32 * 128 = 4096 batch rows per grid step


def _round_up(v, m):
    return (v + m - 1) // m * m


# ----------------------------- Pallas kernel -------------------------------- #
def bigru_kernel(gru_ref, x_ref, w1k_ref, b1k_ref, w2k_ref, b2k_ref, out_ref, h_scr):
    """gru_ref (SMEM, (24,)): per direction 12 scalars
         [w_ir, w_iz, w_in, w_hr, w_hz, w_hn, b_ir, b_iz, b_in, b_hr, b_hz, b_hn]
       x_ref   (T, TBsub, 128)      : batch on (sublane, lane)
       w1k_ref (T*8, 2T*8), w2k_ref (L*8, T*8): fc weights (x) I_8
       b1k_ref (T*8, 128),  b2k_ref (L*8, 128): biases pre-broadcast over lanes
       out_ref (L, TBsub, 128)
       h_scr   (n_groups, 2T*8, 128): rows t*8+j hold h_t (fwd t<T, bwd t-T)."""
    T = x_ref.shape[0]
    n_groups = x_ref.shape[1] // _SUB
    L = out_ref.shape[0]

    # --- GRU scalar parameters (SMEM), pre-halved for the tanh-sigmoid identity.
    def dir_params(base):
        w_ir, w_iz, w_in = gru_ref[base + 0], gru_ref[base + 1], gru_ref[base + 2]
        w_hr, w_hz, w_hn = gru_ref[base + 3], gru_ref[base + 4], gru_ref[base + 5]
        b_ir, b_iz, b_in = gru_ref[base + 6], gru_ref[base + 7], gru_ref[base + 8]
        b_hr, b_hz, b_hn = gru_ref[base + 9], gru_ref[base + 10], gru_ref[base + 11]
        return (0.5 * w_ir, 0.5 * w_hr, 0.5 * (b_ir + b_hr),
                0.5 * w_iz, 0.5 * w_hz, 0.5 * (b_iz + b_hz),
                w_in, b_in, 0.5 * w_hn, 0.5 * b_hn)

    p_fwd = dir_params(0)
    p_bwd = dir_params(12)

    def gru_step(p, x_t, h):
        (w_ir2, w_hr2, b_r2, w_iz2, w_hz2, b_z2, w_in, b_in, w_hn2, b_hn2) = p
        # sigmoid(v) == 0.5 * tanh(0.5 * v) + 0.5   (0.5's on v folded into params)
        tr = jnp.tanh(w_ir2 * x_t + w_hr2 * h + b_r2)          # 2*r - 1
        tz = jnp.tanh(w_iz2 * x_t + w_hz2 * h + b_z2)          # 2*z - 1
        n = jnp.tanh(w_in * x_t + b_in + (tr + 1.0) * (w_hn2 * h + b_hn2))
        return n + (tz + 1.0) * (0.5 * (h - n))                 # == (1-z)*n + z*h

    # --- Phase 1: recurrence.  2*n_groups independent chains interleaved; every
    #     scratch write is a full, aligned (8,128) slab.
    zero = jnp.zeros((_SUB, _LANE), jnp.float32)
    h_f = [zero] * n_groups
    h_b = [zero] * n_groups
    for t in range(T):
        tb = T - 1 - t
        for g in range(n_groups):
            h_f[g] = gru_step(p_fwd, x_ref[t, pl.ds(_SUB * g, _SUB), :], h_f[g])
            h_scr[g, pl.ds(_SUB * t, _SUB), :] = h_f[g]
            h_b[g] = gru_step(p_bwd, x_ref[tb, pl.ds(_SUB * g, _SUB), :], h_b[g])
            h_scr[g, pl.ds(_SUB * (T + tb), _SUB), :] = h_b[g]

    # --- Phase 2: fc1 -> relu -> fc2 -> relu -> log_softmax, per 8-row batch group.
    #     Kronecker-expanded weights make these plain 2-D MXU matmuls in the
    #     recurrence's own layout (no relayout); label axis stays leading.
    # TODO(synk): nn.Dropout(0.2) is a no-op in eval/inference mode, so it is omitted.
    for g in range(n_groups):
        hg = h_scr[g]                                                   # (2T*8, 128)
        y1 = jnp.dot(w1k_ref[...], hg, preferred_element_type=jnp.float32) + b1k_ref[...]
        y1 = jnp.maximum(y1, 0.0)                                       # (T*8, 128)
        lg = jnp.dot(w2k_ref[...], y1, preferred_element_type=jnp.float32) + b2k_ref[...]
        lg = jnp.maximum(lg, 0.0)                                       # (L*8, 128)

        rows = [lg[_SUB * c:_SUB * (c + 1), :] for c in range(L)]       # label c -> (8,128)
        m = rows[0]
        for c in range(1, L):
            m = jnp.maximum(m, rows[c])
        s = jnp.exp(rows[0] - m)
        for c in range(1, L):
            s = s + jnp.exp(rows[c] - m)
        lse = m + jnp.log(s)
        for c in range(L):
            out_ref[c, pl.ds(_SUB * g, _SUB), :] = rows[c] - lse        # lane-dense store


# ------------------------------- wrapper ------------------------------------- #
def bigru_forward(x, params):
    """x: (B, walk_length) float32. Returns (B, num_labels) log-probabilities."""
    B, T = x.shape
    L = params["w2"].shape[0]

    # Pad batch to whole (8,128) groups only (granularity 1024, never the tile size).
    n_sub8 = _round_up(max(B, 1), _SUB * _LANE) // _LANE
    B_pad = n_sub8 * _LANE

    # TBsub: a multiple-of-8 divisor of n_sub8, as large as possible but preferring
    # >= 2 grid steps so both v7x TensorCores get work.
    cands = [c for c in range(_SUB, min(_MAX_TBSUB, n_sub8) + 1, _SUB) if n_sub8 % c == 0]
    pref = [c for c in cands if n_sub8 // c >= 2]
    tbsub = max(pref) if pref else max(cands)
    grid = (n_sub8 // tbsub,)
    n_groups = tbsub // _SUB

    # Transposed + zero-padded input in one fused op; batch split onto (sublane, lane).
    xT = jnp.pad(x.transpose(1, 0), ((0, 0), (0, B_pad - B))).reshape(T, n_sub8, _LANE)

    out = pl.pallas_call(
        bigru_kernel,
        out_shape=jax.ShapeDtypeStruct((L, n_sub8, _LANE), jnp.float32),
        grid=grid,
        in_specs=[
            pl.BlockSpec(memory_space=pltpu.MemorySpace.SMEM),            # 24 GRU scalars
            pl.BlockSpec((T, tbsub, _LANE), lambda i: (0, i, 0)),         # x^T batch tile
            pl.BlockSpec((T * _SUB, 2 * T * _SUB), lambda i: (0, 0)),     # fc1 (x) I8, resident
            pl.BlockSpec((T * _SUB, _LANE), lambda i: (0, 0)),            # fc1 bias (lanes)
            pl.BlockSpec((L * _SUB, T * _SUB), lambda i: (0, 0)),         # fc2 (x) I8, resident
            pl.BlockSpec((L * _SUB, _LANE), lambda i: (0, 0)),            # fc2 bias (lanes)
        ],
        out_specs=pl.BlockSpec((L, tbsub, _LANE), lambda i: (0, i, 0)),   # lane-dense output
        scratch_shapes=[pltpu.VMEM((n_groups, 2 * T * _SUB, _LANE), jnp.float32)],
        compiler_params=pltpu.CompilerParams(dimension_semantics=("parallel",)),
    )(params["gru_packed"], xT,
      params["w1k"], params["b1k"], params["w2k"], params["b2k"])

    # (L, n_sub8, 128) -> (B, L), dropping batch padding.
    return out.reshape(L, B_pad).transpose(1, 0)[:B]


# --------------------------- parameter setup (glue) -------------------------- #
def init_params(key, walk_length, num_labels):
    T = walk_length
    ks = jax.random.split(key, 12)

    def u(k, shape, bound):
        return jax.random.uniform(k, shape, jnp.float32, -bound, bound)

    # nn.GRU(1, 1, bidirectional=True): every parameter is a scalar, init U(-1, 1).
    # Gate order in weight_ih / weight_hh / biases is [r, z, n].
    def gru_dir(k0, k1, k2, k3):
        w_ih = u(k0, (3,), 1.0)   # w_ir, w_iz, w_in
        w_hh = u(k1, (3,), 1.0)   # w_hr, w_hz, w_hn
        b_ih = u(k2, (3,), 1.0)   # b_ir, b_iz, b_in
        b_hh = u(k3, (3,), 1.0)   # b_hr, b_hz, b_hn
        return jnp.concatenate([w_ih, w_hh, b_ih, b_hh])                 # (12,)

    g_fwd = gru_dir(ks[0], ks[1], ks[2], ks[3])
    g_bwd = gru_dir(ks[4], ks[5], ks[6], ks[7])

    bnd1 = 1.0 / np.sqrt(2 * T)
    W1 = u(ks[8], (T, 2 * T), bnd1)                                      # fc1 (out, in)
    b1 = u(ks[9], (T,), bnd1)
    bnd2 = 1.0 / np.sqrt(T)
    W2 = u(ks[10], (num_labels, T), bnd2)                                # fc2 (out, in)
    b2 = u(ks[11], (num_labels,), bnd2)

    eye = jnp.eye(_SUB, dtype=jnp.float32)
    return {
        "gru_packed": jnp.concatenate([g_fwd, g_bwd]),                   # (24,)
        "gru_fwd": g_fwd, "gru_bwd": g_bwd,
        "w1": W1, "b1": b1, "w2": W2, "b2": b2,
        # Kernel-layout params: W (x) I8 so fc1/fc2 are plain 2-D MXU matmuls on the
        # (2T*8, 128) hidden-state slabs; biases pre-broadcast across all 128 lanes.
        "w1k": jnp.kron(W1, eye),                                        # (T*8, 2T*8)
        "b1k": jnp.broadcast_to(jnp.repeat(b1, _SUB)[:, None], (T * _SUB, _LANE)),
        "w2k": jnp.kron(W2, eye),                                        # (L*8, T*8)
        "b2k": jnp.broadcast_to(jnp.repeat(b2, _SUB)[:, None], (num_labels * _SUB, _LANE)),
    }


# ------------------------------ pure-JAX reference --------------------------- #
def reference_forward(x, params):
    B, T = x.shape

    def scan_dir(p, order):
        (w_ir, w_iz, w_in, w_hr, w_hz, w_hn,
         b_ir, b_iz, b_in, b_hr, b_hz, b_hn) = [p[i] for i in range(12)]
        h = jnp.zeros((B,), jnp.float32)
        outs = [None] * T
        for t in order:
            xt = x[:, t]
            r = jax.nn.sigmoid(w_ir * xt + b_ir + w_hr * h + b_hr)
            z = jax.nn.sigmoid(w_iz * xt + b_iz + w_hz * h + b_hz)
            n = jnp.tanh(w_in * xt + b_in + r * (w_hn * h + b_hn))
            h = (1.0 - z) * n + z * h
            outs[t] = h
        return jnp.stack(outs, axis=1)                                   # (B, T)

    hf = scan_dir(params["gru_fwd"], list(range(T)))
    hb = scan_dir(params["gru_bwd"], list(range(T - 1, -1, -1)))
    X = jnp.concatenate([hf, hb], axis=1)                                # (B, 2T)
    X = jax.nn.relu(X @ params["w1"].T + params["b1"])
    X = jax.nn.relu(X @ params["w2"].T + params["b2"])                   # dropout = identity
    return jax.nn.log_softmax(X, axis=1)


# ------------------------------------ main ----------------------------------- #
if __name__ == "__main__":
    walk_length = 16
    num_labels = 5

    key = jax.random.PRNGKey(0)
    k_x, k_p, k_x2 = jax.random.split(key, 3)
    params = init_params(k_p, walk_length, num_labels)

    # Small case from the module spec (batch=2), plus a larger batch that exercises
    # multi-group tiles, a multi-step "parallel" grid and the padding slice path.
    for bs, kx in ((2, k_x), (4000, k_x2)):
        x = jax.random.normal(kx, (bs, walk_length), dtype=jnp.float32)
        out = jax.block_until_ready(bigru_forward(x, params))
        ref = reference_forward(x, params)
        assert out.shape == (bs, num_labels)
        assert bool(jnp.all(jnp.isfinite(out)))
        assert jnp.allclose(out, ref, atol=1e-4, rtol=1e-4), f"mismatch vs reference (B={bs})"

    print("KERNEL_OK")
</pallas_src>

<mosaic_0001>
module attributes {stable_mosaic.version = 11 : i64} {
  func.func @bigru_kernel(%arg0: i32, %arg1: memref<24xf32, #tpu.memory_space<smem>>, %arg2: memref<16x8x128xf32, #tpu.memory_space<vmem>>, %arg3: memref<128x256xf32, #tpu.memory_space<vmem>>, %arg4: memref<128x128xf32, #tpu.memory_space<vmem>>, %arg5: memref<40x128xf32, #tpu.memory_space<vmem>>, %arg6: memref<40x128xf32, #tpu.memory_space<vmem>>, %arg7: memref<5x8x128xf32, #tpu.memory_space<vmem>>, %arg8: memref<1x256x128xf32, #tpu.memory_space<vmem>>) attributes {dimension_semantics = [#tpu.dimension_semantics<parallel>], iteration_bounds = array<i64: 1>, scalar_prefetch = 0 : i64, scratch_operands = 1 : i64, tpu.core_type = #tpu.core_type<tc>, window_params = [{transform_indices = @transform_0, window_bounds = array<i64: 24>}, {transform_indices = @transform_1, window_bounds = array<i64: 16, 8, 128>}, {pipeline_mode = #tpu.pipeline_mode<synchronous>, transform_indices = @transform_2, window_bounds = array<i64: 128, 256>}, {pipeline_mode = #tpu.pipeline_mode<synchronous>, transform_indices = @transform_3, window_bounds = array<i64: 128, 128>}, {pipeline_mode = #tpu.pipeline_mode<synchronous>, transform_indices = @transform_4, window_bounds = array<i64: 40, 128>}, {pipeline_mode = #tpu.pipeline_mode<synchronous>, transform_indices = @transform_5, window_bounds = array<i64: 40, 128>}, {transform_indices = @transform_6, window_bounds = array<i64: 5, 8, 128>}]} {
    %c0 = arith.constant 0 : index
    %0 = memref.load %arg1[%c0] : memref<24xf32, #tpu.memory_space<smem>>
    %c1 = arith.constant 1 : index
    %1 = memref.load %arg1[%c1] : memref<24xf32, #tpu.memory_space<smem>>
    %c2 = arith.constant 2 : index
    %2 = memref.load %arg1[%c2] : memref<24xf32, #tpu.memory_space<smem>>
    %c3 = arith.constant 3 : index
    %3 = memref.load %arg1[%c3] : memref<24xf32, #tpu.memory_space<smem>>
    %c4 = arith.constant 4 : index
    %4 = memref.load %arg1[%c4] : memref<24xf32, #tpu.memory_space<smem>>
    %c5 = arith.constant 5 : index
    %5 = memref.load %arg1[%c5] : memref<24xf32, #tpu.memory_space<smem>>
    %c6 = arith.constant 6 : index
    %6 = memref.load %arg1[%c6] : memref<24xf32, #tpu.memory_space<smem>>
    %c7 = arith.constant 7 : index
    %7 = memref.load %arg1[%c7] : memref<24xf32, #tpu.memory_space<smem>>
    %c8 = arith.constant 8 : index
    %8 = memref.load %arg1[%c8] : memref<24xf32, #tpu.memory_space<smem>>
    %c9 = arith.constant 9 : index
    %9 = memref.load %arg1[%c9] : memref<24xf32, #tpu.memory_space<smem>>
    %c10 = arith.constant 10 : index
    %10 = memref.load %arg1[%c10] : memref<24xf32, #tpu.memory_space<smem>>
    %c11 = arith.constant 11 : index
    %11 = memref.load %arg1[%c11] : memref<24xf32, #tpu.memory_space<smem>>
    %cst = arith.constant 5.000000e-01 : f32
    %12 = arith.mulf %cst, %0 : f32
    %cst_0 = arith.constant 5.000000e-01 : f32
    %13 = arith.mulf %cst_0, %3 : f32
    %14 = arith.addf %6, %9 : f32
    %cst_1 = arith.constant 5.000000e-01 : f32
    %15 = arith.mulf %cst_1, %14 : f32
    %cst_2 = arith.constant 5.000000e-01 : f32
    %16 = arith.mulf %cst_2, %1 : f32
    %cst_3 = arith.constant 5.000000e-01 : f32
    %17 = arith.mulf %cst_3, %4 : f32
    %18 = arith.addf %7, %10 : f32
    %cst_4 = arith.constant 5.000000e-01 : f32
    %19 = arith.mulf %cst_4, %18 : f32
    %cst_5 = arith.constant 5.000000e-01 : f32
    %20 = arith.mulf %cst_5, %5 : f32
    %cst_6 = arith.constant 5.000000e-01 : f32
    %21 = arith.mulf %cst_6, %11 : f32
    %c12 = arith.constant 12 : index
    %22 = memref.load %arg1[%c12] : memref<24xf32, #tpu.memory_space<smem>>
    %c13 = arith.constant 13 : index
    %23 = memref.load %arg1[%c13] : memref<24xf32, #tpu.memory_space<smem>>
    %c14 = arith.constant 14 : index
    %24 = memref.load %arg1[%c14] : memref<24xf32, #tpu.memory_space<smem>>
    %c15 = arith.constant 15 : index
    %25 = memref.load %arg1[%c15] : memref<24xf32, #tpu.memory_space<smem>>
    %c16 = arith.constant 16 : index
    %26 = memref.load %arg1[%c16] : memref<24xf32, #tpu.memory_space<smem>>
    %c17 = arith.constant 17 : index
    %27 = memref.load %arg1[%c17] : memref<24xf32, #tpu.memory_space<smem>>
    %c18 = arith.constant 18 : index
    %28 = memref.load %arg1[%c18] : memref<24xf32, #tpu.memory_space<smem>>
    %c19 = arith.constant 19 : index
    %29 = memref.load %arg1[%c19] : memref<24xf32, #tpu.memory_space<smem>>
    %c20 = arith.constant 20 : index
    %30 = memref.load %arg1[%c20] : memref<24xf32, #tpu.memory_space<smem>>
    %c21 = arith.constant 21 : index
    %31 = memref.load %arg1[%c21] : memref<24xf32, #tpu.memory_space<smem>>
    %c22 = arith.constant 22 : index
    %32 = memref.load %arg1[%c22] : memref<24xf32, #tpu.memory_space<smem>>
    %c23 = arith.constant 23 : index
    %33 = memref.load %arg1[%c23] : memref<24xf32, #tpu.memory_space<smem>>
    %cst_7 = arith.constant 5.000000e-01 : f32
    %34 = arith.mulf %cst_7, %22 : f32
    %cst_8 = arith.constant 5.000000e-01 : f32
    %35 = arith.mulf %cst_8, %25 : f32
    %36 = arith.addf %28, %31 : f32
    %cst_9 = arith.constant 5.000000e-01 : f32
    %37 = arith.mulf %cst_9, %36 : f32
    %cst_10 = arith.constant 5.000000e-01 : f32
    %38 = arith.mulf %cst_10, %23 : f32
    %cst_11 = arith.constant 5.000000e-01 : f32
    %39 = arith.mulf %cst_11, %26 : f32
    %40 = arith.addf %29, %32 : f32
    %cst_12 = arith.constant 5.000000e-01 : f32
    %41 = arith.mulf %cst_12, %40 : f32
    %cst_13 = arith.constant 5.000000e-01 : f32
    %42 = arith.mulf %cst_13, %27 : f32
    %cst_14 = arith.constant 5.000000e-01 : f32
    %43 = arith.mulf %cst_14, %33 : f32
    %cst_15 = arith.constant 0.000000e+00 : f32
    %44 = vector.broadcast %cst_15 : f32 to vector<8x128xf32>
    %c0_16 = arith.constant 0 : index
    %c0_17 = arith.constant 0 : index
    %c0_18 = arith.constant 0 : index
    %45 = vector.load %arg2[%c0_16, %c0_17, %c0_18] : memref<16x8x128xf32, #tpu.memory_space<vmem>>, vector<1x8x128xf32>
    %46 = vector.shape_cast %45 : vector<1x8x128xf32> to vector<8x128xf32>
    %47 = vector.broadcast %12 : f32 to vector<8x128xf32>
    %48 = arith.mulf %47, %46 : vector<8x128xf32>
    %49 = vector.broadcast %13 : f32 to vector<8x128xf32>
    %50 = arith.mulf %49, %44 : vector<8x128xf32>
    %51 = arith.addf %48, %50 : vector<8x128xf32>
    %52 = vector.broadcast %15 : f32 to vector<8x128xf32>
    %53 = arith.addf %51, %52 : vector<8x128xf32>
    %54 = math.tanh %53 : vector<8x128xf32>
    %55 = vector.broadcast %16 : f32 to vector<8x128xf32>
    %56 = arith.mulf %55, %46 : vector<8x128xf32>
    %57 = vector.broadcast %17 : f32 to vector<8x128xf32>
    %58 = arith.mulf %57, %44 : vector<8x128xf32>
    %59 = arith.addf %56, %58 : vector<8x128xf32>
    %60 = vector.broadcast %19 : f32 to vector<8x128xf32>
    %61 = arith.addf %59, %60 : vector<8x128xf32>
    %62 = math.tanh %61 : vector<8x128xf32>
    %63 = vector.broadcast %2 : f32 to vector<8x128xf32>
    %64 = arith.mulf %63, %46 : vector<8x128xf32>
    %65 = vector.broadcast %8 : f32 to vector<8x128xf32>
    %66 = arith.addf %64, %65 : vector<8x128xf32>
    %cst_19 = arith.constant 1.000000e+00 : f32
    %67 = vector.broadcast %cst_19 : f32 to vector<8x128xf32>
    %68 = arith.addf %54, %67 : vector<8x128xf32>
    %69 = vector.broadcast %20 : f32 to vector<8x128xf32>
    %70 = arith.mulf %69, %44 : vector<8x128xf32>
    %71 = vector.broadcast %21 : f32 to vector<8x128xf32>
    %72 = arith.addf %70, %71 : vector<8x128xf32>
    %73 = arith.mulf %68, %72 : vector<8x128xf32>
    %74 = arith.addf %66, %73 : vector<8x128xf32>
    %75 = math.tanh %74 : vector<8x128xf32>
    %cst_20 = arith.constant 1.000000e+00 : f32
    %76 = vector.broadcast %cst_20 : f32 to vector<8x128xf32>
    %77 = arith.addf %62, %76 : vector<8x128xf32>
    %78 = arith.subf %44, %75 : vector<8x128xf32>
    %cst_21 = arith.constant 5.000000e-01 : f32
    %79 = vector.broadcast %cst_21 : f32 to vector<8x128xf32>
    %80 = arith.mulf %79, %78 : vector<8x128xf32>
    %81 = arith.mulf %77, %80 : vector<8x128xf32>
    %82 = arith.addf %75, %81 : vector<8x128xf32>
    %c0_22 = arith.constant 0 : index
    %c0_23 = arith.constant 0 : index
    %c0_24 = arith.constant 0 : index
    %83 = vector.load %arg8[%c0_22, %c0_23, %c0_24] : memref<1x256x128xf32, #tpu.memory_space<vmem>>, vector<1x8x128xf32>
    %84 = vector.shape_cast %83 : vector<1x8x128xf32> to vector<8x128xf32>
    %85 = vector.shape_cast %82 : vector<8x128xf32> to vector<1x8x128xf32>
    tpu.vector_store %arg8[%c0_22, %c0_23, %c0_24], %85 {strides = array<i32>} : memref<1x256x128xf32, #tpu.memory_space<vmem>>, vector<1x8x128xf32>,
    %c15_25 = arith.constant 15 : index
    %c0_26 = arith.constant 0 : index
    %c0_27 = arith.constant 0 : index
    %86 = vector.load %arg2[%c15_25, %c0_26, %c0_27] : memref<16x8x128xf32, #tpu.memory_space<vmem>>, vector<1x8x128xf32>
    %87 = vector.shape_cast %86 : vector<1x8x128xf32> to vector<8x128xf32>
    %88 = vector.broadcast %34 : f32 to vector<8x128xf32>
    %89 = arith.mulf %88, %87 : vector<8x128xf32>
    %90 = vector.broadcast %35 : f32 to vector<8x128xf32>
    %91 = arith.mulf %90, %44 : vector<8x128xf32>
    %92 = arith.addf %89, %91 : vector<8x128xf32>
    %93 = vector.broadcast %37 : f32 to vector<8x128xf32>
    %94 = arith.addf %92, %93 : vector<8x128xf32>
    %95 = math.tanh %94 : vector<8x128xf32>
    %96 = vector.broadcast %38 : f32 to vector<8x128xf32>
    %97 = arith.mulf %96, %87 : vector<8x128xf32>
    %98 = vector.broadcast %39 : f32 to vector<8x128xf32>
    %99 = arith.mulf %98, %44 : vector<8x128xf32>
    %100 = arith.addf %97, %99 : vector<8x128xf32>
    %101 = vector.broadcast %41 : f32 to vector<8x128xf32>
    %102 = arith.addf %100, %101 : vector<8x128xf32>
    %103 = math.tanh %102 : vector<8x128xf32>
    %104 = vector.broadcast %24 : f32 to vector<8x128xf32>
    %105 = arith.mulf %104, %87 : vector<8x128xf32>
    %106 = vector.broadcast %30 : f32 to vector<8x128xf32>
    %107 = arith.addf %105, %106 : vector<8x128xf32>
    %cst_28 = arith.constant 1.000000e+00 : f32
    %108 = vector.broadcast %cst_28 : f32 to vector<8x128xf32>
    %109 = arith.addf %95, %108 : vector<8x128xf32>
    %110 = vector.broadcast %42 : f32 to vector<8x128xf32>
    %111 = arith.mulf %110, %44 : vector<8x128xf32>
    %112 = vector.broadcast %43 : f32 to vector<8x128xf32>
    %113 = arith.addf %111, %112 : vector<8x128xf32>
    %114 = arith.mulf %109, %113 : vector<8x128xf32>
    %115 = arith.addf %107, %114 : vector<8x128xf32>
    %116 = math.tanh %115 : vector<8x128xf32>
    %cst_29 = arith.constant 1.000000e+00 : f32
    %117 = vector.broadcast %cst_29 : f32 to vector<8x128xf32>
    %118 = arith.addf %103, %117 : vector<8x128xf32>
    %119 = arith.subf %44, %116 : vector<8x128xf32>
    %cst_30 = arith.constant 5.000000e-01 : f32
    %120 = vector.broadcast %cst_30 : f32 to vector<8x128xf32>
    %121 = arith.mulf %120, %119 : vector<8x128xf32>
    %122 = arith.mulf %118, %121 : vector<8x128xf32>
    %123 = arith.addf %116, %122 : vector<8x128xf32>
    %c0_31 = arith.constant 0 : index
    %c248 = arith.constant 248 : index
    %c0_32 = arith.constant 0 : index
    %124 = vector.load %arg8[%c0_31, %c248, %c0_32] : memref<1x256x128xf32, #tpu.memory_space<vmem>>, vector<1x8x128xf32>
    %125 = vector.shape_cast %124 : vector<1x8x128xf32> to vector<8x128xf32>
    %126 = vector.shape_cast %123 : vector<8x128xf32> to vector<1x8x128xf32>
    tpu.vector_store %arg8[%c0_31, %c248, %c0_32], %126 {strides = array<i32>} : memref<1x256x128xf32, #tpu.memory_space<vmem>>, vector<1x8x128xf32>,
    %c1_33 = arith.constant 1 : index
    %c0_34 = arith.constant 0 : index
    %c0_35 = arith.constant 0 : index
    %127 = vector.load %arg2[%c1_33, %c0_34, %c0_35] : memref<16x8x128xf32, #tpu.memory_space<vmem>>, vector<1x8x128xf32>
    %128 = vector.shape_cast %127 : vector<1x8x128xf32> to vector<8x128xf32>
    %129 = vector.broadcast %12 : f32 to vector<8x128xf32>
    %130 = arith.mulf %129, %128 : vector<8x128xf32>
    %131 = vector.broadcast %13 : f32 to vector<8x128xf32>
    %132 = arith.mulf %131, %82 : vector<8x128xf32>
    %133 = arith.addf %130, %132 : vector<8x128xf32>
    %134 = vector.broadcast %15 : f32 to vector<8x128xf32>
    %135 = arith.addf %133, %134 : vector<8x128xf32>
    %136 = math.tanh %135 : vector<8x128xf32>
    %137 = vector.broadcast %16 : f32 to vector<8x128xf32>
    %138 = arith.mulf %137, %128 : vector<8x128xf32>
    %139 = vector.broadcast %17 : f32 to vector<8x128xf32>
    %140 = arith.mulf %139, %82 : vector<8x128xf32>
    %141 = arith.addf %138, %140 : vector<8x128xf32>
    %142 = vector.broadcast %19 : f32 to vector<8x128xf32>
    %143 = arith.addf %141, %142 : vector<8x128xf32>
    %144 = math.tanh %143 : vector<8x128xf32>
    %145 = vector.broadcast %2 : f32 to vector<8x128xf32>
    %146 = arith.mulf %145, %128 : vector<8x128xf32>
    %147 = vector.broadcast %8 : f32 to vector<8x128xf32>
    %148 = arith.addf %146, %147 : vector<8x128xf32>
    %cst_36 = arith.constant 1.000000e+00 : f32
    %149 = vector.broadcast %cst_36 : f32 to vector<8x128xf32>
    %150 = arith.addf %136, %149 : vector<8x128xf32>
    %151 = vector.broadcast %20 : f32 to vector<8x128xf32>
    %152 = arith.mulf %151, %82 : vector<8x128xf32>
    %153 = vector.broadcast %21 : f32 to vector<8x128xf32>
    %154 = arith.addf %152, %153 : vector<8x128xf32>
    %155 = arith.mulf %150, %154 : vector<8x128xf32>
    %156 = arith.addf %148, %155 : vector<8x128xf32>
    %157 = math.tanh %156 : vector<8x128xf32>
    %cst_37 = arith.constant 1.000000e+00 : f32
    %158 = vector.broadcast %cst_37 : f32 to vector<8x128xf32>
    %159 = arith.addf %144, %158 : vector<8x128xf32>
    %160 = arith.subf %82, %157 : vector<8x128xf32>
    %cst_38 = arith.constant 5.000000e-01 : f32
    %161 = vector.broadcast %cst_38 : f32 to vector<8x128xf32>
    %162 = arith.mulf %161, %160 : vector<8x128xf32>
    %163 = arith.mulf %159, %162 : vector<8x128xf32>
    %164 = arith.addf %157, %163 : vector<8x128xf32>
    %c0_39 = arith.constant 0 : index
    %c8_40 = arith.constant 8 : index
    %c0_41 = arith.constant 0 : index
    %165 = vector.load %arg8[%c0_39, %c8_40, %c0_41] : memref<1x256x128xf32, #tpu.memory_space<vmem>>, vector<1x8x128xf32>
    %166 = vector.shape_cast %165 : vector<1x8x128xf32> to vector<8x128xf32>
    %167 = vector.shape_cast %164 : vector<8x128xf32> to vector<1x8x128xf32>
    tpu.vector_store %arg8[%c0_39, %c8_40, %c0_41], %167 {strides = array<i32>} : memref<1x256x128xf32, #tpu.memory_space<vmem>>, vector<1x8x128xf32>,
    %c14_42 = arith.constant 14 : index
    %c0_43 = arith.constant 0 : index
    %c0_44 = arith.constant 0 : index
    %168 = vector.load %arg2[%c14_42, %c0_43, %c0_44] : memref<16x8x128xf32, #tpu.memory_space<vmem>>, vector<1x8x128xf32>
    %169 = vector.shape_cast %168 : vector<1x8x128xf32> to vector<8x128xf32>
    %170 = vector.broadcast %34 : f32 to vector<8x128xf32>
    %171 = arith.mulf %170, %169 : vector<8x128xf32>
    %172 = vector.broadcast %35 : f32 to vector<8x128xf32>
    %173 = arith.mulf %172, %123 : vector<8x128xf32>
    %174 = arith.addf %171, %173 : vector<8x128xf32>
    %175 = vector.broadcast %37 : f32 to vector<8x128xf32>
    %176 = arith.addf %174, %175 : vector<8x128xf32>
    %177 = math.tanh %176 : vector<8x128xf32>
    %178 = vector.broadcast %38 : f32 to vector<8x128xf32>
    %179 = arith.mulf %178, %169 : vector<8x128xf32>
    %180 = vector.broadcast %39 : f32 to vector<8x128xf32>
    %181 = arith.mulf %180, %123 : vector<8x128xf32>
    %182 = arith.addf %179, %181 : vector<8x128xf32>
    %183 = vector.broadcast %41 : f32 to vector<8x128xf32>
    %184 = arith.addf %182, %183 : vector<8x128xf32>
    %185 = math.tanh %184 : vector<8x128xf32>
    %186 = vector.broadcast %24 : f32 to vector<8x128xf32>
    %187 = arith.mulf %186, %169 : vector<8x128xf32>
    %188 = vector.broadcast %30 : f32 to vector<8x128xf32>
    %189 = arith.addf %187, %188 : vector<8x128xf32>
    %cst_45 = arith.constant 1.000000e+00 : f32
    %190 = vector.broadcast %cst_45 : f32 to vector<8x128xf32>
    %191 = arith.addf %177, %190 : vector<8x128xf32>
    %192 = vector.broadcast %42 : f32 to vector<8x128xf32>
    %193 = arith.mulf %192, %123 : vector<8x128xf32>
    %194 = vector.broadcast %43 : f32 to vector<8x128xf32>
    %195 = arith.addf %193, %194 : vector<8x128xf32>
    %196 = arith.mulf %191, %195 : vector<8x128xf32>
    %197 = arith.addf %189, %196 : vector<8x128xf32>
    %198 = math.tanh %197 : vector<8x128xf32>
    %cst_46 = arith.constant 1.000000e+00 : f32
    %199 = vector.broadcast %cst_46 : f32 to vector<8x128xf32>
    %200 = arith.addf %185, %199 : vector<8x128xf32>
    %201 = arith.subf %123, %198 : vector<8x128xf32>
    %cst_47 = arith.constant 5.000000e-01 : f32
    %202 = vector.broadcast %cst_47 : f32 to vector<8x128xf32>
    %203 = arith.mulf %202, %201 : vector<8x128xf32>
    %204 = arith.mulf %200, %203 : vector<8x128xf32>
    %205 = arith.addf %198, %204 : vector<8x128xf32>
    %c0_48 = arith.constant 0 : index
    %c240 = arith.constant 240 : index
    %c0_49 = arith.constant 0 : index
    %206 = vector.load %arg8[%c0_48, %c240, %c0_49] : memref<1x256x128xf32, #tpu.memory_space<vmem>>, vector<1x8x128xf32>
    %207 = vector.shape_cast %206 : vector<1x8x128xf32> to vector<8x128xf32>
    %208 = vector.shape_cast %205 : vector<8x128xf32> to vector<1x8x128xf32>
    tpu.vector_store %arg8[%c0_48, %c240, %c0_49], %208 {strides = array<i32>} : memref<1x256x128xf32, #tpu.memory_space<vmem>>, vector<1x8x128xf32>,
    %c2_50 = arith.constant 2 : index
    %c0_51 = arith.constant 0 : index
    %c0_52 = arith.constant 0 : index
    %209 = vector.load %arg2[%c2_50, %c0_51, %c0_52] : memref<16x8x128xf32, #tpu.memory_space<vmem>>, vector<1x8x128xf32>
    %210 = vector.shape_cast %209 : vector<1x8x128xf32> to vector<8x128xf32>
    %211 = vector.broadcast %12 : f32 to vector<8x128xf32>
    %212 = arith.mulf %211, %210 : vector<8x128xf32>
    %213 = vector.broadcast %13 : f32 to vector<8x128xf32>
    %214 = arith.mulf %213, %164 : vector<8x128xf32>
    %215 = arith.addf %212, %214 : vector<8x128xf32>
    %216 = vector.broadcast %15 : f32 to vector<8x128xf32>
    %217 = arith.addf %215, %216 : vector<8x128xf32>
    %218 = math.tanh %217 : vector<8x128xf32>
    %219 = vector.broadcast %16 : f32 to vector<8x128xf32>
    %220 = arith.mulf %219, %210 : vector<8x128xf32>
    %221 = vector.broadcast %17 : f32 to vector<8x128xf32>
    %222 = arith.mulf %221, %164 : vector<8x128xf32>
    %223 = arith.addf %220, %222 : vector<8x128xf32>
    %224 = vector.broadcast %19 : f32 to vector<8x128xf32>
    %225 = arith.addf %223, %224 : vector<8x128xf32>
    %226 = math.tanh %225 : vector<8x128xf32>
    %227 = vector.broadcast %2 : f32 to vector<8x128xf32>
    %228 = arith.mulf %227, %210 : vector<8x128xf32>
    %229 = vector.broadcast %8 : f32 to vector<8x128xf32>
    %230 = arith.addf %228, %229 : vector<8x128xf32>
    %cst_53 = arith.constant 1.000000e+00 : f32
    %231 = vector.broadcast %cst_53 : f32 to vector<8x128xf32>
    %232 = arith.addf %218, %231 : vector<8x128xf32>
    %233 = vector.broadcast %20 : f32 to vector<8x128xf32>
    %234 = arith.mulf %233, %164 : vector<8x128xf32>
    %235 = vector.broadcast %21 : f32 to vector<8x128xf32>
    %236 = arith.addf %234, %235 : vector<8x128xf32>
    %237 = arith.mulf %232, %236 : vector<8x128xf32>
    %238 = arith.addf %230, %237 : vector<8x128xf32>
    %239 = math.tanh %238 : vector<8x128xf32>
    %cst_54 = arith.constant 1.000000e+00 : f32
    %240 = vector.broadcast %cst_54 : f32 to vector<8x128xf32>
    %241 = arith.addf %226, %240 : vector<8x128xf32>
    %242 = arith.subf %164, %239 : vector<8x128xf32>
    %cst_55 = arith.constant 5.000000e-01 : f32
    %243 = vector.broadcast %cst_55 : f32 to vector<8x128xf32>
    %244 = arith.mulf %243, %242 : vector<8x128xf32>
    %245 = arith.mulf %241, %244 : vector<8x128xf32>
    %246 = arith.addf %239, %245 : vector<8x128xf32>
    %c0_56 = arith.constant 0 : index
    %c16_57 = arith.constant 16 : index
    %c0_58 = arith.constant 0 : index
    %247 = vector.load %arg8[%c0_56, %c16_57, %c0_58] : memref<1x256x128xf32, #tpu.memory_space<vmem>>, vector<1x8x128xf32>
    %248 = vector.shape_cast %247 : vector<1x8x128xf32> to vector<8x128xf32>
    %249 = vector.shape_cast %246 : vector<8x128xf32> to vector<1x8x128xf32>
    tpu.vector_store %arg8[%c0_56, %c16_57, %c0_58], %249 {strides = array<i32>} : memref<1x256x128xf32, #tpu.memory_space<vmem>>, vector<1x8x128xf32>,
    %c13_59 = arith.constant 13 : index
    %c0_60 = arith.constant 0 : index
    %c0_61 = arith.constant 0 : index
    %250 = vector.load %arg2[%c13_59, %c0_60, %c0_61] : memref<16x8x128xf32, #tpu.memory_space<vmem>>, vector<1x8x128xf32>
    %251 = vector.shape_cast %250 : vector<1x8x128xf32> to vector<8x128xf32>
    %252 = vector.broadcast %34 : f32 to vector<8x128xf32>
    %253 = arith.mulf %252, %251 : vector<8x128xf32>
    %254 = vector.broadcast %35 : f32 to vector<8x128xf32>
    %255 = arith.mulf %254, %205 : vector<8x128xf32>
    %256 = arith.addf %253, %255 : vector<8x128xf32>
    %257 = vector.broadcast %37 : f32 to vector<8x128xf32>
    %258 = arith.addf %256, %257 : vector<8x128xf32>
    %259 = math.tanh %258 : vector<8x128xf32>
    %260 = vector.broadcast %38 : f32 to vector<8x128xf32>
    %261 = arith.mulf %260, %251 : vector<8x128xf32>
    %262 = vector.broadcast %39 : f32 to vector<8x128xf32>
    %263 = arith.mulf %262, %205 : vector<8x128xf32>
    %264 = arith.addf %261, %263 : vector<8x128xf32>
    %265 = vector.broadcast %41 : f32 to vector<8x128xf32>
    %266 = arith.addf %264, %265 : vector<8x128xf32>
    %267 = math.tanh %266 : vector<8x128xf32>
    %268 = vector.broadcast %24 : f32 to vector<8x128xf32>
    %269 = arith.mulf %268, %251 : vector<8x128xf32>
    %270 = vector.broadcast %30 : f32 to vector<8x128xf32>
    %271 = arith.addf %269, %270 : vector<8x128xf32>
    %cst_62 = arith.constant 1.000000e+00 : f32
    %272 = vector.broadcast %cst_62 : f32 to vector<8x128xf32>
    %273 = arith.addf %259, %272 : vector<8x128xf32>
    %274 = vector.broadcast %42 : f32 to vector<8x128xf32>
    %275 = arith.mulf %274, %205 : vector<8x128xf32>
    %276 = vector.broadcast %43 : f32 to vector<8x128xf32>
    %277 = arith.addf %275, %276 : vector<8x128xf32>
    %278 = arith.mulf %273, %277 : vector<8x128xf32>
    %279 = arith.addf %271, %278 : vector<8x128xf32>
    %280 = math.tanh %279 : vector<8x128xf32>
    %cst_63 = arith.constant 1.000000e+00 : f32
    %281 = vector.broadcast %cst_63 : f32 to vector<8x128xf32>
    %282 = arith.addf %267, %281 : vector<8x128xf32>
    %283 = arith.subf %205, %280 : vector<8x128xf32>
    %cst_64 = arith.constant 5.000000e-01 : f32
    %284 = vector.broadcast %cst_64 : f32 to vector<8x128xf32>
    %285 = arith.mulf %284, %283 : vector<8x128xf32>
    %286 = arith.mulf %282, %285 : vector<8x128xf32>
    %287 = arith.addf %280, %286 : vector<8x128xf32>
    %c0_65 = arith.constant 0 : index
    %c232 = arith.constant 232 : index
    %c0_66 = arith.constant 0 : index
    %288 = vector.load %arg8[%c0_65, %c232, %c0_66] : memref<1x256x128xf32, #tpu.memory_space<vmem>>, vector<1x8x128xf32>
    %289 = vector.shape_cast %288 : vector<1x8x128xf32> to vector<8x128xf32>
    %290 = vector.shape_cast %287 : vector<8x128xf32> to vector<1x8x128xf32>
    tpu.vector_store %arg8[%c0_65, %c232, %c0_66], %290 {strides = array<i32>} : memref<1x256x128xf32, #tpu.memory_space<vmem>>, vector<1x8x128xf32>,
    %c3_67 = arith.constant 3 : index
    %c0_68 = arith.constant 0 : index
    %c0_69 = arith.constant 0 : index
    %291 = vector.load %arg2[%c3_67, %c0_68, %c0_69] : memref<16x8x128xf32, #tpu.memory_space<vmem>>, vector<1x8x128xf32>
    %292 = vector.shape_cast %291 : vector<1x8x128xf32> to vector<8x128xf32>
    %293 = vector.broadcast %12 : f32 to vector<8x128xf32>
    %294 = arith.mulf %293, %292 : vector<8x128xf32>
    %295 = vector.broadcast %13 : f32 to vector<8x128xf32>
    %296 = arith.mulf %295, %246 : vector<8x128xf32>
    %297 = arith.addf %294, %296 : vector<8x128xf32>
    %298 = vector.broadcast %15 : f32 to vector<8x128xf32>
    %299 = arith.addf %297, %298 : vector<8x128xf32>
    %300 = math.tanh %299 : vector<8x128xf32>
    %301 = vector.broadcast %16 : f32 to vector<8x128xf32>
    %302 = arith.mulf %301, %292 : vector<8x128xf32>
    %303 = vector.broadcast %17 : f32 to vector<8x128xf32>
    %304 = arith.mulf %303, %246 : vector<8x128xf32>
    %305 = arith.addf %302, %304 : vector<8x128xf32>
    %306 = vector.broadcast %19 : f32 to vector<8x128xf32>
    %307 = arith.addf %305, %306 : vector<8x128xf32>
    %308 = math.tanh %307 : vector<8x128xf32>
    %309 = vector.broadcast %2 : f32 to vector<8x128xf32>
    %310 = arith.mulf %309, %292 : vector<8x128xf32>
    %311 = vector.broadcast %8 : f32 to vector<8x128xf32>
    %312 = arith.addf %310, %311 : vector<8x128xf32>
    %cst_70 = arith.constant 1.000000e+00 : f32
    %313 = vector.broadcast %cst_70 : f32 to vector<8x128xf32>
    %314 = arith.addf %300, %313 : vector<8x128xf32>
    %315 = vector.broadcast %20 : f32 to vector<8x128xf32>
    %316 = arith.mulf %315, %246 : vector<8x128xf32>
    %317 = vector.broadcast %21 : f32 to vector<8x128xf32>
    %318 = arith.addf %316, %317 : vector<8x128xf32>
    %319 = arith.mulf %314, %318 : vector<8x128xf32>
    %320 = arith.addf %312, %319 : vector<8x128xf32>
    %321 = math.tanh %320 : vector<8x128xf32>
    %cst_71 = arith.constant 1.000000e+00 : f32
    %322 = vector.broadcast %cst_71 : f32 to vector<8x128xf32>
    %323 = arith.addf %308, %322 : vector<8x128xf32>
    %324 = arith.subf %246, %321 : vector<8x128xf32>
    %cst_72 = arith.constant 5.000000e-01 : f32
    %325 = vector.broadcast %cst_72 : f32 to vector<8x128xf32>
    %326 = arith.mulf %325, %324 : vector<8x128xf32>
    %327 = arith.mulf %323, %326 : vector<8x128xf32>
    %328 = arith.addf %321, %327 : vector<8x128xf32>
    %c0_73 = arith.constant 0 : index
    %c24 = arith.constant 24 : index
    %c0_74 = arith.constant 0 : index
    %329 = vector.load %arg8[%c0_73, %c24, %c0_74] : memref<1x256x128xf32, #tpu.memory_space<vmem>>, vector<1x8x128xf32>
    %330 = vector.shape_cast %329 : vector<1x8x128xf32> to vector<8x128xf32>
    %331 = vector.shape_cast %328 : vector<8x128xf32> to vector<1x8x128xf32>
    tpu.vector_store %arg8[%c0_73, %c24, %c0_74], %331 {strides = array<i32>} : memref<1x256x128xf32, #tpu.memory_space<vmem>>, vector<1x8x128xf32>,
    %c12_75 = arith.constant 12 : index
    %c0_76 = arith.constant 0 : index
    %c0_77 = arith.constant 0 : index
    %332 = vector.load %arg2[%c12_75, %c0_76, %c0_77] : memref<16x8x128xf32, #tpu.memory_space<vmem>>, vector<1x8x128xf32>
    %333 = vector.shape_cast %332 : vector<1x8x128xf32> to vector<8x128xf32>
    %334 = vector.broadcast %34 : f32 to vector<8x128xf32>
    %335 = arith.mulf %334, %333 : vector<8x128xf32>
    %336 = vector.broadcast %35 : f32 to vector<8x128xf32>
    %337 = arith.mulf %336, %287 : vector<8x128xf32>
    %338 = arith.addf %335, %337 : vector<8x128xf32>
    %339 = vector.broadcast %37 : f32 to vector<8x128xf32>
    %340 = arith.addf %338, %339 : vector<8x128xf32>
    %341 = math.tanh %340 : vector<8x128xf32>
    %342 = vector.broadcast %38 : f32 to vector<8x128xf32>
    %343 = arith.mulf %342, %333 : vector<8x128xf32>
    %344 = vector.broadcast %39 : f32 to vector<8x128xf32>
    %345 = arith.mulf %344, %287 : vector<8x128xf32>
    %346 = arith.addf %343, %345 : vector<8x128xf32>
    %347 = vector.broadcast %41 : f32 to vector<8x128xf32>
    %348 = arith.addf %346, %347 : vector<8x128xf32>
    %349 = math.tanh %348 : vector<8x128xf32>
    %350 = vector.broadcast %24 : f32 to vector<8x128xf32>
    %351 = arith.mulf %350, %333 : vector<8x128xf32>
    %352 = vector.broadcast %30 : f32 to vector<8x128xf32>
    %353 = arith.addf %351, %352 : vector<8x128xf32>
    %cst_78 = arith.constant 1.000000e+00 : f32
    %354 = vector.broadcast %cst_78 : f32 to vector<8x128xf32>
    %355 = arith.addf %341, %354 : vector<8x128xf32>
    %356 = vector.broadcast %42 : f32 to vector<8x128xf32>
    %357 = arith.mulf %356, %287 : vector<8x128xf32>
    %358 = vector.broadcast %43 : f32 to vector<8x128xf32>
    %359 = arith.addf %357, %358 : vector<8x128xf32>
    %360 = arith.mulf %355, %359 : vector<8x128xf32>
    %361 = arith.addf %353, %360 : vector<8x128xf32>
    %362 = math.tanh %361 : vector<8x128xf32>
    %cst_79 = arith.constant 1.000000e+00 : f32
    %363 = vector.broadcast %cst_79 : f32 to vector<8x128xf32>
    %364 = arith.addf %349, %363 : vector<8x128xf32>
    %365 = arith.subf %287, %362 : vector<8x128xf32>
    %cst_80 = arith.constant 5.000000e-01 : f32
    %366 = vector.broadcast %cst_80 : f32 to vector<8x128xf32>
    %367 = arith.mulf %366, %365 : vector<8x128xf32>
    %368 = arith.mulf %364, %367 : vector<8x128xf32>
    %369 = arith.addf %362, %368 : vector<8x128xf32>
    %c0_81 = arith.constant 0 : index
    %c224 = arith.constant 224 : index
    %c0_82 = arith.constant 0 : index
    %370 = vector.load %arg8[%c0_81, %c224, %c0_82] : memref<1x256x128xf32, #tpu.memory_space<vmem>>, vector<1x8x128xf32>
    %371 = vector.shape_cast %370 : vector<1x8x128xf32> to vector<8x128xf32>
    %372 = vector.shape_cast %369 : vector<8x128xf32> to vector<1x8x128xf32>
    tpu.vector_store %arg8[%c0_81, %c224, %c0_82], %372 {strides = array<i32>} : memref<1x256x128xf32, #tpu.memory_space<vmem>>, vector<1x8x128xf32>,
    %c4_83 = arith.constant 4 : index
    %c0_84 = arith.constant 0 : index
    %c0_85 = arith.constant 0 : index
    %373 = vector.load %arg2[%c4_83, %c0_84, %c0_85] : memref<16x8x128xf32, #tpu.memory_space<vmem>>, vector<1x8x128xf32>
    %374 = vector.shape_cast %373 : vector<1x8x128xf32> to vector<8x128xf32>
    %375 = vector.broadcast %12 : f32 to vector<8x128xf32>
    %376 = arith.mulf %375, %374 : vector<8x128xf32>
    %377 = vector.broadcast %13 : f32 to vector<8x128xf32>
    %378 = arith.mulf %377, %328 : vector<8x128xf32>
    %379 = arith.addf %376, %378 : vector<8x128xf32>
    %380 = vector.broadcast %15 : f32 to vector<8x128xf32>
    %381 = arith.addf %379, %380 : vector<8x128xf32>
    %382 = math.tanh %381 : vector<8x128xf32>
    %383 = vector.broadcast %16 : f32 to vector<8x128xf32>
    %384 = arith.mulf %383, %374 : vector<8x128xf32>
    %385 = vector.broadcast %17 : f32 to vector<8x128xf32>
    %386 = arith.mulf %385, %328 : vector<8x128xf32>
    %387 = arith.addf %384, %386 : vector<8x128xf32>
    %388 = vector.broadcast %19 : f32 to vector<8x128xf32>
    %389 = arith.addf %387, %388 : vector<8x128xf32>
    %390 = math.tanh %389 : vector<8x128xf32>
    %391 = vector.broadcast %2 : f32 to vector<8x128xf32>
    %392 = arith.mulf %391, %374 : vector<8x128xf32>
    %393 = vector.broadcast %8 : f32 to vector<8x128xf32>
    %394 = arith.addf %392, %393 : vector<8x128xf32>
    %cst_86 = arith.constant 1.000000e+00 : f32
    %395 = vector.broadcast %cst_86 : f32 to vector<8x128xf32>
    %396 = arith.addf %382, %395 : vector<8x128xf32>
    %397 = vector.broadcast %20 : f32 to vector<8x128xf32>
    %398 = arith.mulf %397, %328 : vector<8x128xf32>
    %399 = vector.broadcast %21 : f32 to vector<8x128xf32>
    %400 = arith.addf %398, %399 : vector<8x128xf32>
    %401 = arith.mulf %396, %400 : vector<8x128xf32>
    %402 = arith.addf %394, %401 : vector<8x128xf32>
    %403 = math.tanh %402 : vector<8x128xf32>
    %cst_87 = arith.constant 1.000000e+00 : f32
    %404 = vector.broadcast %cst_87 : f32 to vector<8x128xf32>
    %405 = arith.addf %390, %404 : vector<8x128xf32>
    %406 = arith.subf %328, %403 : vector<8x128xf32>
    %cst_88 = arith.constant 5.000000e-01 : f32
    %407 = vector.broadcast %cst_88 : f32 to vector<8x128xf32>
    %408 = arith.mulf %407, %406 : vector<8x128xf32>
    %409 = arith.mulf %405, %408 : vector<8x128xf32>
    %410 = arith.addf %403, %409 : vector<8x128xf32>
    %c0_89 = arith.constant 0 : index
    %c32 = arith.constant 32 : index
    %c0_90 = arith.constant 0 : index
    %411 = vector.load %arg8[%c0_89, %c32, %c0_90] : memref<1x256x128xf32, #tpu.memory_space<vmem>>, vector<1x8x128xf32>
    %412 = vector.shape_cast %411 : vector<1x8x128xf32> to vector<8x128xf32>
    %413 = vector.shape_cast %410 : vector<8x128xf32> to vector<1x8x128xf32>
    tpu.vector_store %arg8[%c0_89, %c32, %c0_90], %413 {strides = array<i32>} : memref<1x256x128xf32, #tpu.memory_space<vmem>>, vector<1x8x128xf32>,
    %c11_91 = arith.constant 11 : index
    %c0_92 = arith.constant 0 : index
    %c0_93 = arith.constant 0 : index
    %414 = vector.load %arg2[%c11_91, %c0_92, %c0_93] : memref<16x8x128xf32, #tpu.memory_space<vmem>>, vector<1x8x128xf32>
    %415 = vector.shape_cast %414 : vector<1x8x128xf32> to vector<8x128xf32>
    %416 = vector.broadcast %34 : f32 to vector<8x128xf32>
    %417 = arith.mulf %416, %415 : vector<8x128xf32>
    %418 = vector.broadcast %35 : f32 to vector<8x128xf32>
    %419 = arith.mulf %418, %369 : vector<8x128xf32>
    %420 = arith.addf %417, %419 : vector<8x128xf32>
    %421 = vector.broadcast %37 : f32 to vector<8x128xf32>
    %422 = arith.addf %420, %421 : vector<8x128xf32>
    %423 = math.tanh %422 : vector<8x128xf32>
    %424 = vector.broadcast %38 : f32 to vector<8x128xf32>
    %425 = arith.mulf %424, %415 : vector<8x128xf32>
    %426 = vector.broadcast %39 : f32 to vector<8x128xf32>
    %427 = arith.mulf %426, %369 : vector<8x128xf32>
    %428 = arith.addf %425, %427 : vector<8x128xf32>
    %429 = vector.broadcast %41 : f32 to vector<8x128xf32>
    %430 = arith.addf %428, %429 : vector<8x128xf32>
    %431 = math.tanh %430 : vector<8x128xf32>
    %432 = vector.broadcast %24 : f32 to vector<8x128xf32>
    %433 = arith.mulf %432, %415 : vector<8x128xf32>
    %434 = vector.broadcast %30 : f32 to vector<8x128xf32>
    %435 = arith.addf %433, %434 : vector<8x128xf32>
    %cst_94 = arith.constant 1.000000e+00 : f32
    %436 = vector.broadcast %cst_94 : f32 to vector<8x128xf32>
    %437 = arith.addf %423, %436 : vector<8x128xf32>
    %438 = vector.broadcast %42 : f32 to vector<8x128xf32>
    %439 = arith.mulf %438, %369 : vector<8x128xf32>
    %440 = vector.broadcast %43 : f32 to vector<8x128xf32>
    %441 = arith.addf %439, %440 : vector<8x128xf32>
    %442 = arith.mulf %437, %441 : vector<8x128xf32>
    %443 = arith.addf %435, %442 : vector<8x128xf32>
    %444 = math.tanh %443 : vector<8x128xf32>
    %cst_95 = arith.constant 1.000000e+00 : f32
    %445 = vector.broadcast %cst_95 : f32 to vector<8x128xf32>
    %446 = arith.addf %431, %445 : vector<8x128xf32>
    %447 = arith.subf %369, %444 : vector<8x128xf32>
    %cst_96 = arith.constant 5.000000e-01 : f32
    %448 = vector.broadcast %cst_96 : f32 to vector<8x128xf32>
    %449 = arith.mulf %448, %447 : vector<8x128xf32>
    %450 = arith.mulf %446, %449 : vector<8x128xf32>
    %451 = arith.addf %444, %450 : vector<8x128xf32>
    %c0_97 = arith.constant 0 : index
    %c216 = arith.constant 216 : index
    %c0_98 = arith.constant 0 : index
    %452 = vector.load %arg8[%c0_97, %c216, %c0_98] : memref<1x256x128xf32, #tpu.memory_space<vmem>>, vector<1x8x128xf32>
    %453 = vector.shape_cast %452 : vector<1x8x128xf32> to vector<8x128xf32>
    %454 = vector.shape_cast %451 : vector<8x128xf32> to vector<1x8x128xf32>
    tpu.vector_store %arg8[%c0_97, %c216, %c0_98], %454 {strides = array<i32>} : memref<1x256x128xf32, #tpu.memory_space<vmem>>, vector<1x8x128xf32>,
    %c5_99 = arith.constant 5 : index
    %c0_100 = arith.constant 0 : index
    %c0_101 = arith.constant 0 : index
    %455 = vector.load %arg2[%c5_99, %c0_100, %c0_101] : memref<16x8x128xf32, #tpu.memory_space<vmem>>, vector<1x8x128xf32>
    %456 = vector.shape_cast %455 : vector<1x8x128xf32> to vector<8x128xf32>
    %457 = vector.broadcast %12 : f32 to vector<8x128xf32>
    %458 = arith.mulf %457, %456 : vector<8x128xf32>
    %459 = vector.broadcast %13 : f32 to vector<8x128xf32>
    %460 = arith.mulf %459, %410 : vector<8x128xf32>
    %461 = arith.addf %458, %460 : vector<8x128xf32>
    %462 = vector.broadcast %15 : f32 to vector<8x128xf32>
    %463 = arith.addf %461, %462 : vector<8x128xf32>
    %464 = math.tanh %463 : vector<8x128xf32>
    %465 = vector.broadcast %16 : f32 to vector<8x128xf32>
    %466 = arith.mulf %465, %456 : vector<8x128xf32>
    %467 = vector.broadcast %17 : f32 to vector<8x128xf32>
    %468 = arith.mulf %467, %410 : vector<8x128xf32>
    %469 = arith.addf %466, %468 : vector<8x128xf32>
    %470 = vector.broadcast %19 : f32 to vector<8x128xf32>
    %471 = arith.addf %469, %470 : vector<8x128xf32>
    %472 = math.tanh %471 : vector<8x128xf32>
    %473 = vector.broadcast %2 : f32 to vector<8x128xf32>
    %474 = arith.mulf %473, %456 : vector<8x128xf32>
    %475 = vector.broadcast %8 : f32 to vector<8x128xf32>
    %476 = arith.addf %474, %475 : vector<8x128xf32>
    %cst_102 = arith.constant 1.000000e+00 : f32
    %477 = vector.broadcast %cst_102 : f32 to vector<8x128xf32>
    %478 = arith.addf %464, %477 : vector<8x128xf32>
    %479 = vector.broadcast %20 : f32 to vector<8x128xf32>
    %480 = arith.mulf %479, %410 : vector<8x128xf32>
    %481 = vector.broadcast %21 : f32 to vector<8x128xf32>
    %482 = arith.addf %480, %481 : vector<8x128xf32>
    %483 = arith.mulf %478, %482 : vector<8x128xf32>
    %484 = arith.addf %476, %483 : vector<8x128xf32>
    %485 = math.tanh %484 : vector<8x128xf32>
    %cst_103 = arith.constant 1.000000e+00 : f32
    %486 = vector.broadcast %cst_103 : f32 to vector<8x128xf32>
    %487 = arith.addf %472, %486 : vector<8x128xf32>
    %488 = arith.subf %410, %485 : vector<8x128xf32>
    %cst_104 = arith.constant 5.000000e-01 : f32
    %489 = vector.broadcast %cst_104 : f32 to vector<8x128xf32>
    %490 = arith.mulf %489, %488 : vector<8x128xf32>
    %491 = arith.mulf %487, %490 : vector<8x128xf32>
    %492 = arith.addf %485, %491 : vector<8x128xf32>
    %c0_105 = arith.constant 0 : index
    %c40 = arith.constant 40 : index
    %c0_106 = arith.constant 0 : index
    %493 = vector.load %arg8[%c0_105, %c40, %c0_106] : memref<1x256x128xf32, #tpu.memory_space<vmem>>, vector<1x8x128xf32>
    %494 = vector.shape_cast %493 : vector<1x8x128xf32> to vector<8x128xf32>
    %495 = vector.shape_cast %492 : vector<8x128xf32> to vector<1x8x128xf32>
    tpu.vector_store %arg8[%c0_105, %c40, %c0_106], %495 {strides = array<i32>} : memref<1x256x128xf32, #tpu.memory_space<vmem>>, vector<1x8x128xf32>,
    %c10_107 = arith.constant 10 : index
    %c0_108 = arith.constant 0 : index
    %c0_109 = arith.constant 0 : index
    %496 = vector.load %arg2[%c10_107, %c0_108, %c0_109] : memref<16x8x128xf32, #tpu.memory_space<vmem>>, vector<1x8x128xf32>
    %497 = vector.shape_cast %496 : vector<1x8x128xf32> to vector<8x128xf32>
    %498 = vector.broadcast %34 : f32 to vector<8x128xf32>
    %499 = arith.mulf %498, %497 : vector<8x128xf32>
    %500 = vector.broadcast %35 : f32 to vector<8x128xf32>
    %501 = arith.mulf %500, %451 : vector<8x128xf32>
    %502 = arith.addf %499, %501 : vector<8x128xf32>
    %503 = vector.broadcast %37 : f32 to vector<8x128xf32>
    %504 = arith.addf %502, %503 : vector<8x128xf32>
    %505 = math.tanh %504 : vector<8x128xf32>
    %506 = vector.broadcast %38 : f32 to vector<8x128xf32>
    %507 = arith.mulf %506, %497 : vector<8x128xf32>
    %508 = vector.broadcast %39 : f32 to vector<8x128xf32>
    %509 = arith.mulf %508, %451 : vector<8x128xf32>
    %510 = arith.addf %507, %509 : vector<8x128xf32>
    %511 = vector.broadcast %41 : f32 to vector<8x128xf32>
    %512 = arith.addf %510, %511 : vector<8x128xf32>
    %513 = math.tanh %512 : vector<8x128xf32>
    %514 = vector.broadcast %24 : f32 to vector<8x128xf32>
    %515 = arith.mulf %514, %497 : vector<8x128xf32>
    %516 = vector.broadcast %30 : f32 to vector<8x128xf32>
    %517 = arith.addf %515, %516 : vector<8x128xf32>
    %cst_110 = arith.constant 1.000000e+00 : f32
    %518 = vector.broadcast %cst_110 : f32 to vector<8x128xf32>
    %519 = arith.addf %505, %518 : vector<8x128xf32>
    %520 = vector.broadcast %42 : f32 to vector<8x128xf32>
    %521 = arith.mulf %520, %451 : vector<8x128xf32>
    %522 = vector.broadcast %43 : f32 to vector<8x128xf32>
    %523 = arith.addf %521, %522 : vector<8x128xf32>
    %524 = arith.mulf %519, %523 : vector<8x128xf32>
    %525 = arith.addf %517, %524 : vector<8x128xf32>
    %526 = math.tanh %525 : vector<8x128xf32>
    %cst_111 = arith.constant 1.000000e+00 : f32
    %527 = vector.broadcast %cst_111 : f32 to vector<8x128xf32>
    %528 = arith.addf %513, %527 : vector<8x128xf32>
    %529 = arith.subf %451, %526 : vector<8x128xf32>
    %cst_112 = arith.constant 5.000000e-01 : f32
    %530 = vector.broadcast %cst_112 : f32 to vector<8x128xf32>
    %531 = arith.mulf %530, %529 : vector<8x128xf32>
    %532 = arith.mulf %528, %531 : vector<8x128xf32>
    %533 = arith.addf %526, %532 : vector<8x128xf32>
    %c0_113 = arith.constant 0 : index
    %c208 = arith.constant 208 : index
    %c0_114 = arith.constant 0 : index
    %534 = vector.load %arg8[%c0_113, %c208, %c0_114] : memref<1x256x128xf32, #tpu.memory_space<vmem>>, vector<1x8x128xf32>
    %535 = vector.shape_cast %534 : vector<1x8x128xf32> to vector<8x128xf32>
    %536 = vector.shape_cast %533 : vector<8x128xf32> to vector<1x8x128xf32>
    tpu.vector_store %arg8[%c0_113, %c208, %c0_114], %536 {strides = array<i32>} : memref<1x256x128xf32, #tpu.memory_space<vmem>>, vector<1x8x128xf32>,
    %c6_115 = arith.constant 6 : index
    %c0_116 = arith.constant 0 : index
    %c0_117 = arith.constant 0 : index
    %537 = vector.load %arg2[%c6_115, %c0_116, %c0_117] : memref<16x8x128xf32, #tpu.memory_space<vmem>>, vector<1x8x128xf32>
    %538 = vector.shape_cast %537 : vector<1x8x128xf32> to vector<8x128xf32>
    %539 = vector.broadcast %12 : f32 to vector<8x128xf32>
    %540 = arith.mulf %539, %538 : vector<8x128xf32>
    %541 = vector.broadcast %13 : f32 to vector<8x128xf32>
    %542 = arith.mulf %541, %492 : vector<8x128xf32>
    %543 = arith.addf %540, %542 : vector<8x128xf32>
    %544 = vector.broadcast %15 : f32 to vector<8x128xf32>
    %545 = arith.addf %543, %544 : vector<8x128xf32>
    %546 = math.tanh %545 : vector<8x128xf32>
    %547 = vector.broadcast %16 : f32 to vector<8x128xf32>
    %548 = arith.mulf %547, %538 : vector<8x128xf32>
    %549 = vector.broadcast %17 : f32 to vector<8x128xf32>
    %550 = arith.mulf %549, %492 : vector<8x128xf32>
    %551 = arith.addf %548, %550 : vector<8x128xf32>
    %552 = vector.broadcast %19 : f32 to vector<8x128xf32>
    %553 = arith.addf %551, %552 : vector<8x128xf32>
    %554 = math.tanh %553 : vector<8x128xf32>
    %555 = vector.broadcast %2 : f32 to vector<8x128xf32>
    %556 = arith.mulf %555, %538 : vector<8x128xf32>
    %557 = vector.broadcast %8 : f32 to vector<8x128xf32>
    %558 = arith.addf %556, %557 : vector<8x128xf32>
    %cst_118 = arith.constant 1.000000e+00 : f32
    %559 = vector.broadcast %cst_118 : f32 to vector<8x128xf32>
    %560 = arith.addf %546, %559 : vector<8x128xf32>
    %561 = vector.broadcast %20 : f32 to vector<8x128xf32>
    %562 = arith.mulf %561, %492 : vector<8x128xf32>
    %563 = vector.broadcast %21 : f32 to vector<8x128xf32>
    %564 = arith.addf %562, %563 : vector<8x128xf32>
    %565 = arith.mulf %560, %564 : vector<8x128xf32>
    %566 = arith.addf %558, %565 : vector<8x128xf32>
    %567 = math.tanh %566 : vector<8x128xf32>
    %cst_119 = arith.constant 1.000000e+00 : f32
    %568 = vector.broadcast %cst_119 : f32 to vector<8x128xf32>
    %569 = arith.addf %554, %568 : vector<8x128xf32>
    %570 = arith.subf %492, %567 : vector<8x128xf32>
    %cst_120 = arith.constant 5.000000e-01 : f32
    %571 = vector.broadcast %cst_120 : f32 to vector<8x128xf32>
    %572 = arith.mulf %571, %570 : vector<8x128xf32>
    %573 = arith.mulf %569, %572 : vector<8x128xf32>
    %574 = arith.addf %567, %573 : vector<8x128xf32>
    %c0_121 = arith.constant 0 : index
    %c48 = arith.constant 48 : index
    %c0_122 = arith.constant 0 : index
    %575 = vector.load %arg8[%c0_121, %c48, %c0_122] : memref<1x256x128xf32, #tpu.memory_space<vmem>>, vector<1x8x128xf32>
    %576 = vector.shape_cast %575 : vector<1x8x128xf32> to vector<8x128xf32>
    %577 = vector.shape_cast %574 : vector<8x128xf32> to vector<1x8x128xf32>
    tpu.vector_store %arg8[%c0_121, %c48, %c0_122], %577 {strides = array<i32>} : memref<1x256x128xf32, #tpu.memory_space<vmem>>, vector<1x8x128xf32>,
    %c9_123 = arith.constant 9 : index
    %c0_124 = arith.constant 0 : index
    %c0_125 = arith.constant 0 : index
    %578 = vector.load %arg2[%c9_123, %c0_124, %c0_125] : memref<16x8x128xf32, #tpu.memory_space<vmem>>, vector<1x8x128xf32>
    %579 = vector.shape_cast %578 : vector<1x8x128xf32> to vector<8x128xf32>
    %580 = vector.broadcast %34 : f32 to vector<8x128xf32>
    %581 = arith.mulf %580, %579 : vector<8x128xf32>
    %582 = vector.broadcast %35 : f32 to vector<8x128xf32>
    %583 = arith.mulf %582, %533 : vector<8x128xf32>
    %584 = arith.addf %581, %583 : vector<8x128xf32>
    %585 = vector.broadcast %37 : f32 to vector<8x128xf32>
    %586 = arith.addf %584, %585 : vector<8x128xf32>
    %587 = math.tanh %586 : vector<8x128xf32>
    %588 = vector.broadcast %38 : f32 to vector<8x128xf32>
    %589 = arith.mulf %588, %579 : vector<8x128xf32>
    %590 = vector.broadcast %39 : f32 to vector<8x128xf32>
    %591 = arith.mulf %590, %533 : vector<8x128xf32>
    %592 = arith.addf %589, %591 : vector<8x128xf32>
    %593 = vector.broadcast %41 : f32 to vector<8x128xf32>
    %594 = arith.addf %592, %593 : vector<8x128xf32>
    %595 = math.tanh %594 : vector<8x128xf32>
    %596 = vector.broadcast %24 : f32 to vector<8x128xf32>
    %597 = arith.mulf %596, %579 : vector<8x128xf32>
    %598 = vector.broadcast %30 : f32 to vector<8x128xf32>
    %599 = arith.addf %597, %598 : vector<8x128xf32>
    %cst_126 = arith.constant 1.000000e+00 : f32
    %600 = vector.broadcast %cst_126 : f32 to vector<8x128xf32>
    %601 = arith.addf %587, %600 : vector<8x128xf32>
    %602 = vector.broadcast %42 : f32 to vector<8x128xf32>
    %603 = arith.mulf %602, %533 : vector<8x128xf32>
    %604 = vector.broadcast %43 : f32 to vector<8x128xf32>
    %605 = arith.addf %603, %604 : vector<8x128xf32>
    %606 = arith.mulf %601, %605 : vector<8x128xf32>
    %607 = arith.addf %599, %606 : vector<8x128xf32>
    %608 = math.tanh %607 : vector<8x128xf32>
    %cst_127 = arith.constant 1.000000e+00 : f32
    %609 = vector.broadcast %cst_127 : f32 to vector<8x128xf32>
    %610 = arith.addf %595, %609 : vector<8x128xf32>
    %611 = arith.subf %533, %608 : vector<8x128xf32>
    %cst_128 = arith.constant 5.000000e-01 : f32
    %612 = vector.broadcast %cst_128 : f32 to vector<8x128xf32>
    %613 = arith.mulf %612, %611 : vector<8x128xf32>
    %614 = arith.mulf %610, %613 : vector<8x128xf32>
    %615 = arith.addf %608, %614 : vector<8x128xf32>
    %c0_129 = arith.constant 0 : index
    %c200 = arith.constant 200 : index
    %c0_130 = arith.constant 0 : index
    %616 = vector.load %arg8[%c0_129, %c200, %c0_130] : memref<1x256x128xf32, #tpu.memory_space<vmem>>, vector<1x8x128xf32>
    %617 = vector.shape_cast %616 : vector<1x8x128xf32> to vector<8x128xf32>
    %618 = vector.shape_cast %615 : vector<8x128xf32> to vector<1x8x128xf32>
    tpu.vector_store %arg8[%c0_129, %c200, %c0_130], %618 {strides = array<i32>} : memref<1x256x128xf32, #tpu.memory_space<vmem>>, vector<1x8x128xf32>,
    %c7_131 = arith.constant 7 : index
    %c0_132 = arith.constant 0 : index
    %c0_133 = arith.constant 0 : index
    %619 = vector.load %arg2[%c7_131, %c0_132, %c0_133] : memref<16x8x128xf32, #tpu.memory_space<vmem>>, vector<1x8x128xf32>
    %620 = vector.shape_cast %619 : vector<1x8x128xf32> to vector<8x128xf32>
    %621 = vector.broadcast %12 : f32 to vector<8x128xf32>
    %622 = arith.mulf %621, %620 : vector<8x128xf32>
    %623 = vector.broadcast %13 : f32 to vector<8x128xf32>
    %624 = arith.mulf %623, %574 : vector<8x128xf32>
    %625 = arith.addf %622, %624 : vector<8x128xf32>
    %626 = vector.broadcast %15 : f32 to vector<8x128xf32>
    %627 = arith.addf %625, %626 : vector<8x128xf32>
    %628 = math.tanh %627 : vector<8x128xf32>
    %629 = vector.broadcast %16 : f32 to vector<8x128xf32>
    %630 = arith.mulf %629, %620 : vector<8x128xf32>
    %631 = vector.broadcast %17 : f32 to vector<8x128xf32>
    %632 = arith.mulf %631, %574 : vector<8x128xf32>
    %633 = arith.addf %630, %632 : vector<8x128xf32>
    %634 = vector.broadcast %19 : f32 to vector<8x128xf32>
    %635 = arith.addf %633, %634 : vector<8x128xf32>
    %636 = math.tanh %635 : vector<8x128xf32>
    %637 = vector.broadcast %2 : f32 to vector<8x128xf32>
    %638 = arith.mulf %637, %620 : vector<8x128xf32>
    %639 = vector.broadcast %8 : f32 to vector<8x128xf32>
    %640 = arith.addf %638, %639 : vector<8x128xf32>
    %cst_134 = arith.constant 1.000000e+00 : f32
    %641 = vector.broadcast %cst_134 : f32 to vector<8x128xf32>
    %642 = arith.addf %628, %641 : vector<8x128xf32>
    %643 = vector.broadcast %20 : f32 to vector<8x128xf32>
    %644 = arith.mulf %643, %574 : vector<8x128xf32>
    %645 = vector.broadcast %21 : f32 to vector<8x128xf32>
    %646 = arith.addf %644, %645 : vector<8x128xf32>
    %647 = arith.mulf %642, %646 : vector<8x128xf32>
    %648 = arith.addf %640, %647 : vector<8x128xf32>
    %649 = math.tanh %648 : vector<8x128xf32>
    %cst_135 = arith.constant 1.000000e+00 : f32
    %650 = vector.broadcast %cst_135 : f32 to vector<8x128xf32>
    %651 = arith.addf %636, %650 : vector<8x128xf32>
    %652 = arith.subf %574, %649 : vector<8x128xf32>
    %cst_136 = arith.constant 5.000000e-01 : f32
    %653 = vector.broadcast %cst_136 : f32 to vector<8x128xf32>
    %654 = arith.mulf %653, %652 : vector<8x128xf32>
    %655 = arith.mulf %651, %654 : vector<8x128xf32>
    %656 = arith.addf %649, %655 : vector<8x128xf32>
    %c0_137 = arith.constant 0 : index
    %c56 = arith.constant 56 : index
    %c0_138 = arith.constant 0 : index
    %657 = vector.load %arg8[%c0_137, %c56, %c0_138] : memref<1x256x128xf32, #tpu.memory_space<vmem>>, vector<1x8x128xf32>
    %658 = vector.shape_cast %657 : vector<1x8x128xf32> to vector<8x128xf32>
    %659 = vector.shape_cast %656 : vector<8x128xf32> to vector<1x8x128xf32>
    tpu.vector_store %arg8[%c0_137, %c56, %c0_138], %659 {strides = array<i32>} : memref<1x256x128xf32, #tpu.memory_space<vmem>>, vector<1x8x128xf32>,
    %c8_139 = arith.constant 8 : index
    %c0_140 = arith.constant 0 : index
    %c0_141 = arith.constant 0 : index
    %660 = vector.load %arg2[%c8_139, %c0_140, %c0_141] : memref<16x8x128xf32, #tpu.memory_space<vmem>>, vector<1x8x128xf32>
    %661 = vector.shape_cast %660 : vector<1x8x128xf32> to vector<8x128xf32>
    %662 = vector.broadcast %34 : f32 to vector<8x128xf32>
    %663 = arith.mulf %662, %661 : vector<8x128xf32>
    %664 = vector.broadcast %35 : f32 to vector<8x128xf32>
    %665 = arith.mulf %664, %615 : vector<8x128xf32>
    %666 = arith.addf %663, %665 : vector<8x128xf32>
    %667 = vector.broadcast %37 : f32 to vector<8x128xf32>
    %668 = arith.addf %666, %667 : vector<8x128xf32>
    %669 = math.tanh %668 : vector<8x128xf32>
    %670 = vector.broadcast %38 : f32 to vector<8x128xf32>
    %671 = arith.mulf %670, %661 : vector<8x128xf32>
    %672 = vector.broadcast %39 : f32 to vector<8x128xf32>
    %673 = arith.mulf %672, %615 : vector<8x128xf32>
    %674 = arith.addf %671, %673 : vector<8x128xf32>
    %675 = vector.broadcast %41 : f32 to vector<8x128xf32>
    %676 = arith.addf %674, %675 : vector<8x128xf32>
    %677 = math.tanh %676 : vector<8x128xf32>
    %678 = vector.broadcast %24 : f32 to vector<8x128xf32>
    %679 = arith.mulf %678, %661 : vector<8x128xf32>
    %680 = vector.broadcast %30 : f32 to vector<8x128xf32>
    %681 = arith.addf %679, %680 : vector<8x128xf32>
    %cst_142 = arith.constant 1.000000e+00 : f32
    %682 = vector.broadcast %cst_142 : f32 to vector<8x128xf32>
    %683 = arith.addf %669, %682 : vector<8x128xf32>
    %684 = vector.broadcast %42 : f32 to vector<8x128xf32>
    %685 = arith.mulf %684, %615 : vector<8x128xf32>
    %686 = vector.broadcast %43 : f32 to vector<8x128xf32>
    %687 = arith.addf %685, %686 : vector<8x128xf32>
    %688 = arith.mulf %683, %687 : vector<8x128xf32>
    %689 = arith.addf %681, %688 : vector<8x128xf32>
    %690 = math.tanh %689 : vector<8x128xf32>
    %cst_143 = arith.constant 1.000000e+00 : f32
    %691 = vector.broadcast %cst_143 : f32 to vector<8x128xf32>
    %692 = arith.addf %677, %691 : vector<8x128xf32>
    %693 = arith.subf %615, %690 : vector<8x128xf32>
    %cst_144 = arith.constant 5.000000e-01 : f32
    %694 = vector.broadcast %cst_144 : f32 to vector<8x128xf32>
    %695 = arith.mulf %694, %693 : vector<8x128xf32>
    %696 = arith.mulf %692, %695 : vector<8x128xf32>
    %697 = arith.addf %690, %696 : vector<8x128xf32>
    %c0_145 = arith.constant 0 : index
    %c192 = arith.constant 192 : index
    %c0_146 = arith.constant 0 : index
    %698 = vector.load %arg8[%c0_145, %c192, %c0_146] : memref<1x256x128xf32, #tpu.memory_space<vmem>>, vector<1x8x128xf32>
    %699 = vector.shape_cast %698 : vector<1x8x128xf32> to vector<8x128xf32>
    %700 = vector.shape_cast %697 : vector<8x128xf32> to vector<1x8x128xf32>
    tpu.vector_store %arg8[%c0_145, %c192, %c0_146], %700 {strides = array<i32>} : memref<1x256x128xf32, #tpu.memory_space<vmem>>, vector<1x8x128xf32>,
    %c8_147 = arith.constant 8 : index
    %c0_148 = arith.constant 0 : index
    %c0_149 = arith.constant 0 : index
    %701 = vector.load %arg2[%c8_147, %c0_148, %c0_149] : memref<16x8x128xf32, #tpu.memory_space<vmem>>, vector<1x8x128xf32>
    %702 = vector.shape_cast %701 : vector<1x8x128xf32> to vector<8x128xf32>
    %703 = vector.broadcast %12 : f32 to vector<8x128xf32>
    %704 = arith.mulf %703, %702 : vector<8x128xf32>
    %705 = vector.broadcast %13 : f32 to vector<8x128xf32>
    %706 = arith.mulf %705, %656 : vector<8x128xf32>
    %707 = arith.addf %704, %706 : vector<8x128xf32>
    %708 = vector.broadcast %15 : f32 to vector<8x128xf32>
    %709 = arith.addf %707, %708 : vector<8x128xf32>
    %710 = math.tanh %709 : vector<8x128xf32>
    %711 = vector.broadcast %16 : f32 to vector<8x128xf32>
    %712 = arith.mulf %711, %702 : vector<8x128xf32>
    %713 = vector.broadcast %17 : f32 to vector<8x128xf32>
    %714 = arith.mulf %713, %656 : vector<8x128xf32>
    %715 = arith.addf %712, %714 : vector<8x128xf32>
    %716 = vector.broadcast %19 : f32 to vector<8x128xf32>
    %717 = arith.addf %715, %716 : vector<8x128xf32>
    %718 = math.tanh %717 : vector<8x128xf32>
    %719 = vector.broadcast %2 : f32 to vector<8x128xf32>
    %720 = arith.mulf %719, %702 : vector<8x128xf32>
    %721 = vector.broadcast %8 : f32 to vector<8x128xf32>
    %722 = arith.addf %720, %721 : vector<8x128xf32>
    %cst_150 = arith.constant 1.000000e+00 : f32
    %723 = vector.broadcast %cst_150 : f32 to vector<8x128xf32>
    %724 = arith.addf %710, %723 : vector<8x128xf32>
    %725 = vector.broadcast %20 : f32 to vector<8x128xf32>
    %726 = arith.mulf %725, %656 : vector<8x128xf32>
    %727 = vector.broadcast %21 : f32 to vector<8x128xf32>
    %728 = arith.addf %726, %727 : vector<8x128xf32>
    %729 = arith.mulf %724, %728 : vector<8x128xf32>
    %730 = arith.addf %722, %729 : vector<8x128xf32>
    %731 = math.tanh %730 : vector<8x128xf32>
    %cst_151 = arith.constant 1.000000e+00 : f32
    %732 = vector.broadcast %cst_151 : f32 to vector<8x128xf32>
    %733 = arith.addf %718, %732 : vector<8x128xf32>
    %734 = arith.subf %656, %731 : vector<8x128xf32>
    %cst_152 = arith.constant 5.000000e-01 : f32
    %735 = vector.broadcast %cst_152 : f32 to vector<8x128xf32>
    %736 = arith.mulf %735, %734 : vector<8x128xf32>
    %737 = arith.mulf %733, %736 : vector<8x128xf32>
    %738 = arith.addf %731, %737 : vector<8x128xf32>
    %c0_153 = arith.constant 0 : index
    %c64 = arith.constant 64 : index
    %c0_154 = arith.constant 0 : index
    %739 = vector.load %arg8[%c0_153, %c64, %c0_154] : memref<1x256x128xf32, #tpu.memory_space<vmem>>, vector<1x8x128xf32>
    %740 = vector.shape_cast %739 : vector<1x8x128xf32> to vector<8x128xf32>
    %741 = vector.shape_cast %738 : vector<8x128xf32> to vector<1x8x128xf32>
    tpu.vector_store %arg8[%c0_153, %c64, %c0_154], %741 {strides = array<i32>} : memref<1x256x128xf32, #tpu.memory_space<vmem>>, vector<1x8x128xf32>,
    %c7_155 = arith.constant 7 : index
    %c0_156 = arith.constant 0 : index
    %c0_157 = arith.constant 0 : index
    %742 = vector.load %arg2[%c7_155, %c0_156, %c0_157] : memref<16x8x128xf32, #tpu.memory_space<vmem>>, vector<1x8x128xf32>
    %743 = vector.shape_cast %742 : vector<1x8x128xf32> to vector<8x128xf32>
    %744 = vector.broadcast %34 : f32 to vector<8x128xf32>
    %745 = arith.mulf %744, %743 : vector<8x128xf32>
    %746 = vector.broadcast %35 : f32 to vector<8x128xf32>
    %747 = arith.mulf %746, %697 : vector<8x128xf32>
    %748 = arith.addf %745, %747 : vector<8x128xf32>
    %749 = vector.broadcast %37 : f32 to vector<8x128xf32>
    %750 = arith.addf %748, %749 : vector<8x128xf32>
    %751 = math.tanh %750 : vector<8x128xf32>
    %752 = vector.broadcast %38 : f32 to vector<8x128xf32>
    %753 = arith.mulf %752, %743 : vector<8x128xf32>
    %754 = vector.broadcast %39 : f32 to vector<8x128xf32>
    %755 = arith.mulf %754, %697 : vector<8x128xf32>
    %756 = arith.addf %753, %755 : vector<8x128xf32>
    %757 = vector.broadcast %41 : f32 to vector<8x128xf32>
    %758 = arith.addf %756, %757 : vector<8x128xf32>
    %759 = math.tanh %758 : vector<8x128xf32>
    %760 = vector.broadcast %24 : f32 to vector<8x128xf32>
    %761 = arith.mulf %760, %743 : vector<8x128xf32>
    %762 = vector.broadcast %30 : f32 to vector<8x128xf32>
    %763 = arith.addf %761, %762 : vector<8x128xf32>
    %cst_158 = arith.constant 1.000000e+00 : f32
    %764 = vector.broadcast %cst_158 : f32 to vector<8x128xf32>
    %765 = arith.addf %751, %764 : vector<8x128xf32>
    %766 = vector.broadcast %42 : f32 to vector<8x128xf32>
    %767 = arith.mulf %766, %697 : vector<8x128xf32>
    %768 = vector.broadcast %43 : f32 to vector<8x128xf32>
    %769 = arith.addf %767, %768 : vector<8x128xf32>
    %770 = arith.mulf %765, %769 : vector<8x128xf32>
    %771 = arith.addf %763, %770 : vector<8x128xf32>
    %772 = math.tanh %771 : vector<8x128xf32>
    %cst_159 = arith.constant 1.000000e+00 : f32
    %773 = vector.broadcast %cst_159 : f32 to vector<8x128xf32>
    %774 = arith.addf %759, %773 : vector<8x128xf32>
    %775 = arith.subf %697, %772 : vector<8x128xf32>
    %cst_160 = arith.constant 5.000000e-01 : f32
    %776 = vector.broadcast %cst_160 : f32 to vector<8x128xf32>
    %777 = arith.mulf %776, %775 : vector<8x128xf32>
    %778 = arith.mulf %774, %777 : vector<8x128xf32>
    %779 = arith.addf %772, %778 : vector<8x128xf32>
    %c0_161 = arith.constant 0 : index
    %c184 = arith.constant 184 : index
    %c0_162 = arith.constant 0 : index
    %780 = vector.load %arg8[%c0_161, %c184, %c0_162] : memref<1x256x128xf32, #tpu.memory_space<vmem>>, vector<1x8x128xf32>
    %781 = vector.shape_cast %780 : vector<1x8x128xf32> to vector<8x128xf32>
    %782 = vector.shape_cast %779 : vector<8x128xf32> to vector<1x8x128xf32>
    tpu.vector_store %arg8[%c0_161, %c184, %c0_162], %782 {strides = array<i32>} : memref<1x256x128xf32, #tpu.memory_space<vmem>>, vector<1x8x128xf32>,
    %c9_163 = arith.constant 9 : index
    %c0_164 = arith.constant 0 : index
    %c0_165 = arith.constant 0 : index
    %783 = vector.load %arg2[%c9_163, %c0_164, %c0_165] : memref<16x8x128xf32, #tpu.memory_space<vmem>>, vector<1x8x128xf32>
    %784 = vector.shape_cast %783 : vector<1x8x128xf32> to vector<8x128xf32>
    %785 = vector.broadcast %12 : f32 to vector<8x128xf32>
    %786 = arith.mulf %785, %784 : vector<8x128xf32>
    %787 = vector.broadcast %13 : f32 to vector<8x128xf32>
    %788 = arith.mulf %787, %738 : vector<8x128xf32>
    %789 = arith.addf %786, %788 : vector<8x128xf32>
    %790 = vector.broadcast %15 : f32 to vector<8x128xf32>
    %791 = arith.addf %789, %790 : vector<8x128xf32>
    %792 = math.tanh %791 : vector<8x128xf32>
    %793 = vector.broadcast %16 : f32 to vector<8x128xf32>
    %794 = arith.mulf %793, %784 : vector<8x128xf32>
    %795 = vector.broadcast %17 : f32 to vector<8x128xf32>
    %796 = arith.mulf %795, %738 : vector<8x128xf32>
    %797 = arith.addf %794, %796 : vector<8x128xf32>
    %798 = vector.broadcast %19 : f32 to vector<8x128xf32>
    %799 = arith.addf %797, %798 : vector<8x128xf32>
    %800 = math.tanh %799 : vector<8x128xf32>
    %801 = vector.broadcast %2 : f32 to vector<8x128xf32>
    %802 = arith.mulf %801, %784 : vector<8x128xf32>
    %803 = vector.broadcast %8 : f32 to vector<8x128xf32>
    %804 = arith.addf %802, %803 : vector<8x128xf32>
    %cst_166 = arith.constant 1.000000e+00 : f32
    %805 = vector.broadcast %cst_166 : f32 to vector<8x128xf32>
    %806 = arith.addf %792, %805 : vector<8x128xf32>
    %807 = vector.broadcast %20 : f32 to vector<8x128xf32>
    %808 = arith.mulf %807, %738 : vector<8x128xf32>
    %809 = vector.broadcast %21 : f32 to vector<8x128xf32>
    %810 = arith.addf %808, %809 : vector<8x128xf32>
    %811 = arith.mulf %806, %810 : vector<8x128xf32>
    %812 = arith.addf %804, %811 : vector<8x128xf32>
    %813 = math.tanh %812 : vector<8x128xf32>
    %cst_167 = arith.constant 1.000000e+00 : f32
    %814 = vector.broadcast %cst_167 : f32 to vector<8x128xf32>
    %815 = arith.addf %800, %814 : vector<8x128xf32>
    %816 = arith.subf %738, %813 : vector<8x128xf32>
    %cst_168 = arith.constant 5.000000e-01 : f32
    %817 = vector.broadcast %cst_168 : f32 to vector<8x128xf32>
    %818 = arith.mulf %817, %816 : vector<8x128xf32>
    %819 = arith.mulf %815, %818 : vector<8x128xf32>
    %820 = arith.addf %813, %819 : vector<8x128xf32>
    %c0_169 = arith.constant 0 : index
    %c72 = arith.constant 72 : index
    %c0_170 = arith.constant 0 : index
    %821 = vector.load %arg8[%c0_169, %c72, %c0_170] : memref<1x256x128xf32, #tpu.memory_space<vmem>>, vector<1x8x128xf32>
    %822 = vector.shape_cast %821 : vector<1x8x128xf32> to vector<8x128xf32>
    %823 = vector.shape_cast %820 : vector<8x128xf32> to vector<1x8x128xf32>
    tpu.vector_store %arg8[%c0_169, %c72, %c0_170], %823 {strides = array<i32>} : memref<1x256x128xf32, #tpu.memory_space<vmem>>, vector<1x8x128xf32>,
    %c6_171 = arith.constant 6 : index
    %c0_172 = arith.constant 0 : index
    %c0_173 = arith.constant 0 : index
    %824 = vector.load %arg2[%c6_171, %c0_172, %c0_173] : memref<16x8x128xf32, #tpu.memory_space<vmem>>, vector<1x8x128xf32>
    %825 = vector.shape_cast %824 : vector<1x8x128xf32> to vector<8x128xf32>
    %826 = vector.broadcast %34 : f32 to vector<8x128xf32>
    %827 = arith.mulf %826, %825 : vector<8x128xf32>
    %828 = vector.broadcast %35 : f32 to vector<8x128xf32>
    %829 = arith.mulf %828, %779 : vector<8x128xf32>
    %830 = arith.addf %827, %829 : vector<8x128xf32>
    %831 = vector.broadcast %37 : f32 to vector<8x128xf32>
    %832 = arith.addf %830, %831 : vector<8x128xf32>
    %833 = math.tanh %832 : vector<8x128xf32>
    %834 = vector.broadcast %38 : f32 to vector<8x128xf32>
    %835 = arith.mulf %834, %825 : vector<8x128xf32>
    %836 = vector.broadcast %39 : f32 to vector<8x128xf32>
    %837 = arith.mulf %836, %779 : vector<8x128xf32>
    %838 = arith.addf %835, %837 : vector<8x128xf32>
    %839 = vector.broadcast %41 : f32 to vector<8x128xf32>
    %840 = arith.addf %838, %839 : vector<8x128xf32>
    %841 = math.tanh %840 : vector<8x128xf32>
    %842 = vector.broadcast %24 : f32 to vector<8x128xf32>
    %843 = arith.mulf %842, %825 : vector<8x128xf32>
    %844 = vector.broadcast %30 : f32 to vector<8x128xf32>
    %845 = arith.addf %843, %844 : vector<8x128xf32>
    %cst_174 = arith.constant 1.000000e+00 : f32
    %846 = vector.broadcast %cst_174 : f32 to vector<8x128xf32>
    %847 = arith.addf %833, %846 : vector<8x128xf32>
    %848 = vector.broadcast %42 : f32 to vector<8x128xf32>
    %849 = arith.mulf %848, %779 : vector<8x128xf32>
    %850 = vector.broadcast %43 : f32 to vector<8x128xf32>
    %851 = arith.addf %849, %850 : vector<8x128xf32>
    %852 = arith.mulf %847, %851 : vector<8x128xf32>
    %853 = arith.addf %845, %852 : vector<8x128xf32>
    %854 = math.tanh %853 : vector<8x128xf32>
    %cst_175 = arith.constant 1.000000e+00 : f32
    %855 = vector.broadcast %cst_175 : f32 to vector<8x128xf32>
    %856 = arith.addf %841, %855 : vector<8x128xf32>
    %857 = arith.subf %779, %854 : vector<8x128xf32>
    %cst_176 = arith.constant 5.000000e-01 : f32
    %858 = vector.broadcast %cst_176 : f32 to vector<8x128xf32>
    %859 = arith.mulf %858, %857 : vector<8x128xf32>
    %860 = arith.mulf %856, %859 : vector<8x128xf32>
    %861 = arith.addf %854, %860 : vector<8x128xf32>
    %c0_177 = arith.constant 0 : index
    %c176 = arith.constant 176 : index
    %c0_178 = arith.constant 0 : index
    %862 = vector.load %arg8[%c0_177, %c176, %c0_178] : memref<1x256x128xf32, #tpu.memory_space<vmem>>, vector<1x8x128xf32>
    %863 = vector.shape_cast %862 : vector<1x8x128xf32> to vector<8x128xf32>
    %864 = vector.shape_cast %861 : vector<8x128xf32> to vector<1x8x128xf32>
    tpu.vector_store %arg8[%c0_177, %c176, %c0_178], %864 {strides = array<i32>} : memref<1x256x128xf32, #tpu.memory_space<vmem>>, vector<1x8x128xf32>,
    %c10_179 = arith.constant 10 : index
    %c0_180 = arith.constant 0 : index
    %c0_181 = arith.constant 0 : index
    %865 = vector.load %arg2[%c10_179, %c0_180, %c0_181] : memref<16x8x128xf32, #tpu.memory_space<vmem>>, vector<1x8x128xf32>
    %866 = vector.shape_cast %865 : vector<1x8x128xf32> to vector<8x128xf32>
    %867 = vector.broadcast %12 : f32 to vector<8x128xf32>
    %868 = arith.mulf %867, %866 : vector<8x128xf32>
    %869 = vector.broadcast %13 : f32 to vector<8x128xf32>
    %870 = arith.mulf %869, %820 : vector<8x128xf32>
    %871 = arith.addf %868, %870 : vector<8x128xf32>
    %872 = vector.broadcast %15 : f32 to vector<8x128xf32>
    %873 = arith.addf %871, %872 : vector<8x128xf32>
    %874 = math.tanh %873 : vector<8x128xf32>
    %875 = vector.broadcast %16 : f32 to vector<8x128xf32>
    %876 = arith.mulf %875, %866 : vector<8x128xf32>
    %877 = vector.broadcast %17 : f32 to vector<8x128xf32>
    %878 = arith.mulf %877, %820 : vector<8x128xf32>
    %879 = arith.addf %876, %878 : vector<8x128xf32>
    %880 = vector.broadcast %19 : f32 to vector<8x128xf32>
    %881 = arith.addf %879, %880 : vector<8x128xf32>
    %882 = math.tanh %881 : vector<8x128xf32>
    %883 = vector.broadcast %2 : f32 to vector<8x128xf32>
    %884 = arith.mulf %883, %866 : vector<8x128xf32>
    %885 = vector.broadcast %8 : f32 to vector<8x128xf32>
    %886 = arith.addf %884, %885 : vector<8x128xf32>
    %cst_182 = arith.constant 1.000000e+00 : f32
    %887 = vector.broadcast %cst_182 : f32 to vector<8x128xf32>
    %888 = arith.addf %874, %887 : vector<8x128xf32>
    %889 = vector.broadcast %20 : f32 to vector<8x128xf32>
    %890 = arith.mulf %889, %820 : vector<8x128xf32>
    %891 = vector.broadcast %21 : f32 to vector<8x128xf32>
    %892 = arith.addf %890, %891 : vector<8x128xf32>
    %893 = arith.mulf %888, %892 : vector<8x128xf32>
    %894 = arith.addf %886, %893 : vector<8x128xf32>
    %895 = math.tanh %894 : vector<8x128xf32>
    %cst_183 = arith.constant 1.000000e+00 : f32
    %896 = vector.broadcast %cst_183 : f32 to vector<8x128xf32>
    %897 = arith.addf %882, %896 : vector<8x128xf32>
    %898 = arith.subf %820, %895 : vector<8x128xf32>
    %cst_184 = arith.constant 5.000000e-01 : f32
    %899 = vector.broadcast %cst_184 : f32 to vector<8x128xf32>
    %900 = arith.mulf %899, %898 : vector<8x128xf32>
    %901 = arith.mulf %897, %900 : vector<8x128xf32>
    %902 = arith.addf %895, %901 : vector<8x128xf32>
    %c0_185 = arith.constant 0 : index
    %c80 = arith.constant 80 : index
    %c0_186 = arith.constant 0 : index
    %903 = vector.load %arg8[%c0_185, %c80, %c0_186] : memref<1x256x128xf32, #tpu.memory_space<vmem>>, vector<1x8x128xf32>
    %904 = vector.shape_cast %903 : vector<1x8x128xf32> to vector<8x128xf32>
    %905 = vector.shape_cast %902 : vector<8x128xf32> to vector<1x8x128xf32>
    tpu.vector_store %arg8[%c0_185, %c80, %c0_186], %905 {strides = array<i32>} : memref<1x256x128xf32, #tpu.memory_space<vmem>>, vector<1x8x128xf32>,
    %c5_187 = arith.constant 5 : index
    %c0_188 = arith.constant 0 : index
    %c0_189 = arith.constant 0 : index
    %906 = vector.load %arg2[%c5_187, %c0_188, %c0_189] : memref<16x8x128xf32, #tpu.memory_space<vmem>>, vector<1x8x128xf32>
    %907 = vector.shape_cast %906 : vector<1x8x128xf32> to vector<8x128xf32>
    %908 = vector.broadcast %34 : f32 to vector<8x128xf32>
    %909 = arith.mulf %908, %907 : vector<8x128xf32>
    %910 = vector.broadcast %35 : f32 to vector<8x128xf32>
    %911 = arith.mulf %910, %861 : vector<8x128xf32>
    %912 = arith.addf %909, %911 : vector<8x128xf32>
    %913 = vector.broadcast %37 : f32 to vector<8x128xf32>
    %914 = arith.addf %912, %913 : vector<8x128xf32>
    %915 = math.tanh %914 : vector<8x128xf32>
    %916 = vector.broadcast %38 : f32 to vector<8x128xf32>
    %917 = arith.mulf %916, %907 : vector<8x128xf32>
    %918 = vector.broadcast %39 : f32 to vector<8x128xf32>
    %919 = arith.mulf %918, %861 : vector<8x128xf32>
    %920 = arith.addf %917, %919 : vector<8x128xf32>
    %921 = vector.broadcast %41 : f32 to vector<8x128xf32>
    %922 = arith.addf %920, %921 : vector<8x128xf32>
    %923 = math.tanh %922 : vector<8x128xf32>
    %924 = vector.broadcast %24 : f32 to vector<8x128xf32>
    %925 = arith.mulf %924, %907 : vector<8x128xf32>
    %926 = vector.broadcast %30 : f32 to vector<8x128xf32>
    %927 = arith.addf %925, %926 : vector<8x128xf32>
    %cst_190 = arith.constant 1.000000e+00 : f32
    %928 = vector.broadcast %cst_190 : f32 to vector<8x128xf32>
    %929 = arith.addf %915, %928 : vector<8x128xf32>
    %930 = vector.broadcast %42 : f32 to vector<8x128xf32>
    %931 = arith.mulf %930, %861 : vector<8x128xf32>
    %932 = vector.broadcast %43 : f32 to vector<8x128xf32>
    %933 = arith.addf %931, %932 : vector<8x128xf32>
    %934 = arith.mulf %929, %933 : vector<8x128xf32>
    %935 = arith.addf %927, %934 : vector<8x128xf32>
    %936 = math.tanh %935 : vector<8x128xf32>
    %cst_191 = arith.constant 1.000000e+00 : f32
    %937 = vector.broadcast %cst_191 : f32 to vector<8x128xf32>
    %938 = arith.addf %923, %937 : vector<8x128xf32>
    %939 = arith.subf %861, %936 : vector<8x128xf32>
    %cst_192 = arith.constant 5.000000e-01 : f32
    %940 = vector.broadcast %cst_192 : f32 to vector<8x128xf32>
    %941 = arith.mulf %940, %939 : vector<8x128xf32>
    %942 = arith.mulf %938, %941 : vector<8x128xf32>
    %943 = arith.addf %936, %942 : vector<8x128xf32>
    %c0_193 = arith.constant 0 : index
    %c168 = arith.constant 168 : index
    %c0_194 = arith.constant 0 : index
    %944 = vector.load %arg8[%c0_193, %c168, %c0_194] : memref<1x256x128xf32, #tpu.memory_space<vmem>>, vector<1x8x128xf32>
    %945 = vector.shape_cast %944 : vector<1x8x128xf32> to vector<8x128xf32>
    %946 = vector.shape_cast %943 : vector<8x128xf32> to vector<1x8x128xf32>
    tpu.vector_store %arg8[%c0_193, %c168, %c0_194], %946 {strides = array<i32>} : memref<1x256x128xf32, #tpu.memory_space<vmem>>, vector<1x8x128xf32>,
    %c11_195 = arith.constant 11 : index
    %c0_196 = arith.constant 0 : index
    %c0_197 = arith.constant 0 : index
    %947 = vector.load %arg2[%c11_195, %c0_196, %c0_197] : memref<16x8x128xf32, #tpu.memory_space<vmem>>, vector<1x8x128xf32>
    %948 = vector.shape_cast %947 : vector<1x8x128xf32> to vector<8x128xf32>
    %949 = vector.broadcast %12 : f32 to vector<8x128xf32>
    %950 = arith.mulf %949, %948 : vector<8x128xf32>
    %951 = vector.broadcast %13 : f32 to vector<8x128xf32>
    %952 = arith.mulf %951, %902 : vector<8x128xf32>
    %953 = arith.addf %950, %952 : vector<8x128xf32>
    %954 = vector.broadcast %15 : f32 to vector<8x128xf32>
    %955 = arith.addf %953, %954 : vector<8x128xf32>
    %956 = math.tanh %955 : vector<8x128xf32>
    %957 = vector.broadcast %16 : f32 to vector<8x128xf32>
    %958 = arith.mulf %957, %948 : vector<8x128xf32>
    %959 = vector.broadcast %17 : f32 to vector<8x128xf32>
    %960 = arith.mulf %959, %902 : vector<8x128xf32>
    %961 = arith.addf %958, %960 : vector<8x128xf32>
    %962 = vector.broadcast %19 : f32 to vector<8x128xf32>
    %963 = arith.addf %961, %962 : vector<8x128xf32>
    %964 = math.tanh %963 : vector<8x128xf32>
    %965 = vector.broadcast %2 : f32 to vector<8x128xf32>
    %966 = arith.mulf %965, %948 : vector<8x128xf32>
    %967 = vector.broadcast %8 : f32 to vector<8x128xf32>
    %968 = arith.addf %966, %967 : vector<8x128xf32>
    %cst_198 = arith.constant 1.000000e+00 : f32
    %969 = vector.broadcast %cst_198 : f32 to vector<8x128xf32>
    %970 = arith.addf %956, %969 : vector<8x128xf32>
    %971 = vector.broadcast %20 : f32 to vector<8x128xf32>
    %972 = arith.mulf %971, %902 : vector<8x128xf32>
    %973 = vector.broadcast %21 : f32 to vector<8x128xf32>
    %974 = arith.addf %972, %973 : vector<8x128xf32>
    %975 = arith.mulf %970, %974 : vector<8x128xf32>
    %976 = arith.addf %968, %975 : vector<8x128xf32>
    %977 = math.tanh %976 : vector<8x128xf32>
    %cst_199 = arith.constant 1.000000e+00 : f32
    %978 = vector.broadcast %cst_199 : f32 to vector<8x128xf32>
    %979 = arith.addf %964, %978 : vector<8x128xf32>
    %980 = arith.subf %902, %977 : vector<8x128xf32>
    %cst_200 = arith.constant 5.000000e-01 : f32
    %981 = vector.broadcast %cst_200 : f32 to vector<8x128xf32>
    %982 = arith.mulf %981, %980 : vector<8x128xf32>
    %983 = arith.mulf %979, %982 : vector<8x128xf32>
    %984 = arith.addf %977, %983 : vector<8x128xf32>
    %c0_201 = arith.constant 0 : index
    %c88 = arith.constant 88 : index
    %c0_202 = arith.constant 0 : index
    %985 = vector.load %arg8[%c0_201, %c88, %c0_202] : memref<1x256x128xf32, #tpu.memory_space<vmem>>, vector<1x8x128xf32>
    %986 = vector.shape_cast %985 : vector<1x8x128xf32> to vector<8x128xf32>
    %987 = vector.shape_cast %984 : vector<8x128xf32> to vector<1x8x128xf32>
    tpu.vector_store %arg8[%c0_201, %c88, %c0_202], %987 {strides = array<i32>} : memref<1x256x128xf32, #tpu.memory_space<vmem>>, vector<1x8x128xf32>,
    %c4_203 = arith.constant 4 : index
    %c0_204 = arith.constant 0 : index
    %c0_205 = arith.constant 0 : index
    %988 = vector.load %arg2[%c4_203, %c0_204, %c0_205] : memref<16x8x128xf32, #tpu.memory_space<vmem>>, vector<1x8x128xf32>
    %989 = vector.shape_cast %988 : vector<1x8x128xf32> to vector<8x128xf32>
    %990 = vector.broadcast %34 : f32 to vector<8x128xf32>
    %991 = arith.mulf %990, %989 : vector<8x128xf32>
    %992 = vector.broadcast %35 : f32 to vector<8x128xf32>
    %993 = arith.mulf %992, %943 : vector<8x128xf32>
    %994 = arith.addf %991, %993 : vector<8x128xf32>
    %995 = vector.broadcast %37 : f32 to vector<8x128xf32>
    %996 = arith.addf %994, %995 : vector<8x128xf32>
    %997 = math.tanh %996 : vector<8x128xf32>
    %998 = vector.broadcast %38 : f32 to vector<8x128xf32>
    %999 = arith.mulf %998, %989 : vector<8x128xf32>
    %1000 = vector.broadcast %39 : f32 to vector<8x128xf32>
    %1001 = arith.mulf %1000, %943 : vector<8x128xf32>
    %1002 = arith.addf %999, %1001 : vector<8x128xf32>
    %1003 = vector.broadcast %41 : f32 to vector<8x128xf32>
    %1004 = arith.addf %1002, %1003 : vector<8x128xf32>
    %1005 = math.tanh %1004 : vector<8x128xf32>
    %1006 = vector.broadcast %24 : f32 to vector<8x128xf32>
    %1007 = arith.mulf %1006, %989 : vector<8x128xf32>
    %1008 = vector.broadcast %30 : f32 to vector<8x128xf32>
    %1009 = arith.addf %1007, %1008 : vector<8x128xf32>
    %cst_206 = arith.constant 1.000000e+00 : f32
    %1010 = vector.broadcast %cst_206 : f32 to vector<8x128xf32>
    %1011 = arith.addf %997, %1010 : vector<8x128xf32>
    %1012 = vector.broadcast %42 : f32 to vector<8x128xf32>
    %1013 = arith.mulf %1012, %943 : vector<8x128xf32>
    %1014 = vector.broadcast %43 : f32 to vector<8x128xf32>
    %1015 = arith.addf %1013, %1014 : vector<8x128xf32>
    %1016 = arith.mulf %1011, %1015 : vector<8x128xf32>
    %1017 = arith.addf %1009, %1016 : vector<8x128xf32>
    %1018 = math.tanh %1017 : vector<8x128xf32>
    %cst_207 = arith.constant 1.000000e+00 : f32
    %1019 = vector.broadcast %cst_207 : f32 to vector<8x128xf32>
    %1020 = arith.addf %1005, %1019 : vector<8x128xf32>
    %1021 = arith.subf %943, %1018 : vector<8x128xf32>
    %cst_208 = arith.constant 5.000000e-01 : f32
    %1022 = vector.broadcast %cst_208 : f32 to vector<8x128xf32>
    %1023 = arith.mulf %1022, %1021 : vector<8x128xf32>
    %1024 = arith.mulf %1020, %1023 : vector<8x128xf32>
    %1025 = arith.addf %1018, %1024 : vector<8x128xf32>
    %c0_209 = arith.constant 0 : index
    %c160 = arith.constant 160 : index
    %c0_210 = arith.constant 0 : index
    %1026 = vector.load %arg8[%c0_209, %c160, %c0_210] : memref<1x256x128xf32, #tpu.memory_space<vmem>>, vector<1x8x128xf32>
    %1027 = vector.shape_cast %1026 : vector<1x8x128xf32> to vector<8x128xf32>
    %1028 = vector.shape_cast %1025 : vector<8x128xf32> to vector<1x8x128xf32>
    tpu.vector_store %arg8[%c0_209, %c160, %c0_210], %1028 {strides = array<i32>} : memref<1x256x128xf32, #tpu.memory_space<vmem>>, vector<1x8x128xf32>,
    %c12_211 = arith.constant 12 : index
    %c0_212 = arith.constant 0 : index
    %c0_213 = arith.constant 0 : index
    %1029 = vector.load %arg2[%c12_211, %c0_212, %c0_213] : memref<16x8x128xf32, #tpu.memory_space<vmem>>, vector<1x8x128xf32>
    %1030 = vector.shape_cast %1029 : vector<1x8x128xf32> to vector<8x128xf32>
    %1031 = vector.broadcast %12 : f32 to vector<8x128xf32>
    %1032 = arith.mulf %1031, %1030 : vector<8x128xf32>
    %1033 = vector.broadcast %13 : f32 to vector<8x128xf32>
    %1034 = arith.mulf %1033, %984 : vector<8x128xf32>
    %1035 = arith.addf %1032, %1034 : vector<8x128xf32>
    %1036 = vector.broadcast %15 : f32 to vector<8x128xf32>
    %1037 = arith.addf %1035, %1036 : vector<8x128xf32>
    %1038 = math.tanh %1037 : vector<8x128xf32>
    %1039 = vector.broadcast %16 : f32 to vector<8x128xf32>
    %1040 = arith.mulf %1039, %1030 : vector<8x128xf32>
    %1041 = vector.broadcast %17 : f32 to vector<8x128xf32>
    %1042 = arith.mulf %1041, %984 : vector<8x128xf32>
    %1043 = arith.addf %1040, %1042 : vector<8x128xf32>
    %1044 = vector.broadcast %19 : f32 to vector<8x128xf32>
    %1045 = arith.addf %1043, %1044 : vector<8x128xf32>
    %1046 = math.tanh %1045 : vector<8x128xf32>
    %1047 = vector.broadcast %2 : f32 to vector<8x128xf32>
    %1048 = arith.mulf %1047, %1030 : vector<8x128xf32>
    %1049 = vector.broadcast %8 : f32 to vector<8x128xf32>
    %1050 = arith.addf %1048, %1049 : vector<8x128xf32>
    %cst_214 = arith.constant 1.000000e+00 : f32
    %1051 = vector.broadcast %cst_214 : f32 to vector<8x128xf32>
    %1052 = arith.addf %1038, %1051 : vector<8x128xf32>
    %1053 = vector.broadcast %20 : f32 to vector<8x128xf32>
    %1054 = arith.mulf %1053, %984 : vector<8x128xf32>
    %1055 = vector.broadcast %21 : f32 to vector<8x128xf32>
    %1056 = arith.addf %1054, %1055 : vector<8x128xf32>
    %1057 = arith.mulf %1052, %1056 : vector<8x128xf32>
    %1058 = arith.addf %1050, %1057 : vector<8x128xf32>
    %1059 = math.tanh %1058 : vector<8x128xf32>
    %cst_215 = arith.constant 1.000000e+00 : f32
    %1060 = vector.broadcast %cst_215 : f32 to vector<8x128xf32>
    %1061 = arith.addf %1046, %1060 : vector<8x128xf32>
    %1062 = arith.subf %984, %1059 : vector<8x128xf32>
    %cst_216 = arith.constant 5.000000e-01 : f32
    %1063 = vector.broadcast %cst_216 : f32 to vector<8x128xf32>
    %1064 = arith.mulf %1063, %1062 : vector<8x128xf32>
    %1065 = arith.mulf %1061, %1064 : vector<8x128xf32>
    %1066 = arith.addf %1059, %1065 : vector<8x128xf32>
    %c0_217 = arith.constant 0 : index
    %c96 = arith.constant 96 : index
    %c0_218 = arith.constant 0 : index
    %1067 = vector.load %arg8[%c0_217, %c96, %c0_218] : memref<1x256x128xf32, #tpu.memory_space<vmem>>, vector<1x8x128xf32>
    %1068 = vector.shape_cast %1067 : vector<1x8x128xf32> to vector<8x128xf32>
    %1069 = vector.shape_cast %1066 : vector<8x128xf32> to vector<1x8x128xf32>
    tpu.vector_store %arg8[%c0_217, %c96, %c0_218], %1069 {strides = array<i32>} : memref<1x256x128xf32, #tpu.memory_space<vmem>>, vector<1x8x128xf32>,
    %c3_219 = arith.constant 3 : index
    %c0_220 = arith.constant 0 : index
    %c0_221 = arith.constant 0 : index
    %1070 = vector.load %arg2[%c3_219, %c0_220, %c0_221] : memref<16x8x128xf32, #tpu.memory_space<vmem>>, vector<1x8x128xf32>
    %1071 = vector.shape_cast %1070 : vector<1x8x128xf32> to vector<8x128xf32>
    %1072 = vector.broadcast %34 : f32 to vector<8x128xf32>
    %1073 = arith.mulf %1072, %1071 : vector<8x128xf32>
    %1074 = vector.broadcast %35 : f32 to vector<8x128xf32>
    %1075 = arith.mulf %1074, %1025 : vector<8x128xf32>
    %1076 = arith.addf %1073, %1075 : vector<8x128xf32>
    %1077 = vector.broadcast %37 : f32 to vector<8x128xf32>
    %1078 = arith.addf %1076, %1077 : vector<8x128xf32>
    %1079 = math.tanh %1078 : vector<8x128xf32>
    %1080 = vector.broadcast %38 : f32 to vector<8x128xf32>
    %1081 = arith.mulf %1080, %1071 : vector<8x128xf32>
    %1082 = vector.broadcast %39 : f32 to vector<8x128xf32>
    %1083 = arith.mulf %1082, %1025 : vector<8x128xf32>
    %1084 = arith.addf %1081, %1083 : vector<8x128xf32>
    %1085 = vector.broadcast %41 : f32 to vector<8x128xf32>
    %1086 = arith.addf %1084, %1085 : vector<8x128xf32>
    %1087 = math.tanh %1086 : vector<8x128xf32>
    %1088 = vector.broadcast %24 : f32 to vector<8x128xf32>
    %1089 = arith.mulf %1088, %1071 : vector<8x128xf32>
    %1090 = vector.broadcast %30 : f32 to vector<8x128xf32>
    %1091 = arith.addf %1089, %1090 : vector<8x128xf32>
    %cst_222 = arith.constant 1.000000e+00 : f32
    %1092 = vector.broadcast %cst_222 : f32 to vector<8x128xf32>
    %1093 = arith.addf %1079, %1092 : vector<8x128xf32>
    %1094 = vector.broadcast %42 : f32 to vector<8x128xf32>
    %1095 = arith.mulf %1094, %1025 : vector<8x128xf32>
    %1096 = vector.broadcast %43 : f32 to vector<8x128xf32>
    %1097 = arith.addf %1095, %1096 : vector<8x128xf32>
    %1098 = arith.mulf %1093, %1097 : vector<8x128xf32>
    %1099 = arith.addf %1091, %1098 : vector<8x128xf32>
    %1100 = math.tanh %1099 : vector<8x128xf32>
    %cst_223 = arith.constant 1.000000e+00 : f32
    %1101 = vector.broadcast %cst_223 : f32 to vector<8x128xf32>
    %1102 = arith.addf %1087, %1101 : vector<8x128xf32>
    %1103 = arith.subf %1025, %1100 : vector<8x128xf32>
    %cst_224 = arith.constant 5.000000e-01 : f32
    %1104 = vector.broadcast %cst_224 : f32 to vector<8x128xf32>
    %1105 = arith.mulf %1104, %1103 : vector<8x128xf32>
    %1106 = arith.mulf %1102, %1105 : vector<8x128xf32>
    %1107 = arith.addf %1100, %1106 : vector<8x128xf32>
    %c0_225 = arith.constant 0 : index
    %c152 = arith.constant 152 : index
    %c0_226 = arith.constant 0 : index
    %1108 = vector.load %arg8[%c0_225, %c152, %c0_226] : memref<1x256x128xf32, #tpu.memory_space<vmem>>, vector<1x8x128xf32>
    %1109 = vector.shape_cast %1108 : vector<1x8x128xf32> to vector<8x128xf32>
    %1110 = vector.shape_cast %1107 : vector<8x128xf32> to vector<1x8x128xf32>
    tpu.vector_store %arg8[%c0_225, %c152, %c0_226], %1110 {strides = array<i32>} : memref<1x256x128xf32, #tpu.memory_space<vmem>>, vector<1x8x128xf32>,
    %c13_227 = arith.constant 13 : index
    %c0_228 = arith.constant 0 : index
    %c0_229 = arith.constant 0 : index
    %1111 = vector.load %arg2[%c13_227, %c0_228, %c0_229] : memref<16x8x128xf32, #tpu.memory_space<vmem>>, vector<1x8x128xf32>
    %1112 = vector.shape_cast %1111 : vector<1x8x128xf32> to vector<8x128xf32>
    %1113 = vector.broadcast %12 : f32 to vector<8x128xf32>
    %1114 = arith.mulf %1113, %1112 : vector<8x128xf32>
    %1115 = vector.broadcast %13 : f32 to vector<8x128xf32>
    %1116 = arith.mulf %1115, %1066 : vector<8x128xf32>
    %1117 = arith.addf %1114, %1116 : vector<8x128xf32>
    %1118 = vector.broadcast %15 : f32 to vector<8x128xf32>
    %1119 = arith.addf %1117, %1118 : vector<8x128xf32>
    %1120 = math.tanh %1119 : vector<8x128xf32>
    %1121 = vector.broadcast %16 : f32 to vector<8x128xf32>
    %1122 = arith.mulf %1121, %1112 : vector<8x128xf32>
    %1123 = vector.broadcast %17 : f32 to vector<8x128xf32>
    %1124 = arith.mulf %1123, %1066 : vector<8x128xf32>
    %1125 = arith.addf %1122, %1124 : vector<8x128xf32>
    %1126 = vector.broadcast %19 : f32 to vector<8x128xf32>
    %1127 = arith.addf %1125, %1126 : vector<8x128xf32>
    %1128 = math.tanh %1127 : vector<8x128xf32>
    %1129 = vector.broadcast %2 : f32 to vector<8x128xf32>
    %1130 = arith.mulf %1129, %1112 : vector<8x128xf32>
    %1131 = vector.broadcast %8 : f32 to vector<8x128xf32>
    %1132 = arith.addf %1130, %1131 : vector<8x128xf32>
    %cst_230 = arith.constant 1.000000e+00 : f32
    %1133 = vector.broadcast %cst_230 : f32 to vector<8x128xf32>
    %1134 = arith.addf %1120, %1133 : vector<8x128xf32>
    %1135 = vector.broadcast %20 : f32 to vector<8x128xf32>
    %1136 = arith.mulf %1135, %1066 : vector<8x128xf32>
    %1137 = vector.broadcast %21 : f32 to vector<8x128xf32>
    %1138 = arith.addf %1136, %1137 : vector<8x128xf32>
    %1139 = arith.mulf %1134, %1138 : vector<8x128xf32>
    %1140 = arith.addf %1132, %1139 : vector<8x128xf32>
    %1141 = math.tanh %1140 : vector<8x128xf32>
    %cst_231 = arith.constant 1.000000e+00 : f32
    %1142 = vector.broadcast %cst_231 : f32 to vector<8x128xf32>
    %1143 = arith.addf %1128, %1142 : vector<8x128xf32>
    %1144 = arith.subf %1066, %1141 : vector<8x128xf32>
    %cst_232 = arith.constant 5.000000e-01 : f32
    %1145 = vector.broadcast %cst_232 : f32 to vector<8x128xf32>
    %1146 = arith.mulf %1145, %1144 : vector<8x128xf32>
    %1147 = arith.mulf %1143, %1146 : vector<8x128xf32>
    %1148 = arith.addf %1141, %1147 : vector<8x128xf32>
    %c0_233 = arith.constant 0 : index
    %c104 = arith.constant 104 : index
    %c0_234 = arith.constant 0 : index
    %1149 = vector.load %arg8[%c0_233, %c104, %c0_234] : memref<1x256x128xf32, #tpu.memory_space<vmem>>, vector<1x8x128xf32>
    %1150 = vector.shape_cast %1149 : vector<1x8x128xf32> to vector<8x128xf32>
    %1151 = vector.shape_cast %1148 : vector<8x128xf32> to vector<1x8x128xf32>
    tpu.vector_store %arg8[%c0_233, %c104, %c0_234], %1151 {strides = array<i32>} : memref<1x256x128xf32, #tpu.memory_space<vmem>>, vector<1x8x128xf32>,
    %c2_235 = arith.constant 2 : index
    %c0_236 = arith.constant 0 : index
    %c0_237 = arith.constant 0 : index
    %1152 = vector.load %arg2[%c2_235, %c0_236, %c0_237] : memref<16x8x128xf32, #tpu.memory_space<vmem>>, vector<1x8x128xf32>
    %1153 = vector.shape_cast %1152 : vector<1x8x128xf32> to vector<8x128xf32>
    %1154 = vector.broadcast %34 : f32 to vector<8x128xf32>
    %1155 = arith.mulf %1154, %1153 : vector<8x128xf32>
    %1156 = vector.broadcast %35 : f32 to vector<8x128xf32>
    %1157 = arith.mulf %1156, %1107 : vector<8x128xf32>
    %1158 = arith.addf %1155, %1157 : vector<8x128xf32>
    %1159 = vector.broadcast %37 : f32 to vector<8x128xf32>
    %1160 = arith.addf %1158, %1159 : vector<8x128xf32>
    %1161 = math.tanh %1160 : vector<8x128xf32>
    %1162 = vector.broadcast %38 : f32 to vector<8x128xf32>
    %1163 = arith.mulf %1162, %1153 : vector<8x128xf32>
    %1164 = vector.broadcast %39 : f32 to vector<8x128xf32>
    %1165 = arith.mulf %1164, %1107 : vector<8x128xf32>
    %1166 = arith.addf %1163, %1165 : vector<8x128xf32>
    %1167 = vector.broadcast %41 : f32 to vector<8x128xf32>
    %1168 = arith.addf %1166, %1167 : vector<8x128xf32>
    %1169 = math.tanh %1168 : vector<8x128xf32>
    %1170 = vector.broadcast %24 : f32 to vector<8x128xf32>
    %1171 = arith.mulf %1170, %1153 : vector<8x128xf32>
    %1172 = vector.broadcast %30 : f32 to vector<8x128xf32>
    %1173 = arith.addf %1171, %1172 : vector<8x128xf32>
    %cst_238 = arith.constant 1.000000e+00 : f32
    %1174 = vector.broadcast %cst_238 : f32 to vector<8x128xf32>
    %1175 = arith.addf %1161, %1174 : vector<8x128xf32>
    %1176 = vector.broadcast %42 : f32 to vector<8x128xf32>
    %1177 = arith.mulf %1176, %1107 : vector<8x128xf32>
    %1178 = vector.broadcast %43 : f32 to vector<8x128xf32>
    %1179 = arith.addf %1177, %1178 : vector<8x128xf32>
    %1180 = arith.mulf %1175, %1179 : vector<8x128xf32>
    %1181 = arith.addf %1173, %1180 : vector<8x128xf32>
    %1182 = math.tanh %1181 : vector<8x128xf32>
    %cst_239 = arith.constant 1.000000e+00 : f32
    %1183 = vector.broadcast %cst_239 : f32 to vector<8x128xf32>
    %1184 = arith.addf %1169, %1183 : vector<8x128xf32>
    %1185 = arith.subf %1107, %1182 : vector<8x128xf32>
    %cst_240 = arith.constant 5.000000e-01 : f32
    %1186 = vector.broadcast %cst_240 : f32 to vector<8x128xf32>
    %1187 = arith.mulf %1186, %1185 : vector<8x128xf32>
    %1188 = arith.mulf %1184, %1187 : vector<8x128xf32>
    %1189 = arith.addf %1182, %1188 : vector<8x128xf32>
    %c0_241 = arith.constant 0 : index
    %c144 = arith.constant 144 : index
    %c0_242 = arith.constant 0 : index
    %1190 = vector.load %arg8[%c0_241, %c144, %c0_242] : memref<1x256x128xf32, #tpu.memory_space<vmem>>, vector<1x8x128xf32>
    %1191 = vector.shape_cast %1190 : vector<1x8x128xf32> to vector<8x128xf32>
    %1192 = vector.shape_cast %1189 : vector<8x128xf32> to vector<1x8x128xf32>
    tpu.vector_store %arg8[%c0_241, %c144, %c0_242], %1192 {strides = array<i32>} : memref<1x256x128xf32, #tpu.memory_space<vmem>>, vector<1x8x128xf32>,
    %c14_243 = arith.constant 14 : index
    %c0_244 = arith.constant 0 : index
    %c0_245 = arith.constant 0 : index
    %1193 = vector.load %arg2[%c14_243, %c0_244, %c0_245] : memref<16x8x128xf32, #tpu.memory_space<vmem>>, vector<1x8x128xf32>
    %1194 = vector.shape_cast %1193 : vector<1x8x128xf32> to vector<8x128xf32>
    %1195 = vector.broadcast %12 : f32 to vector<8x128xf32>
    %1196 = arith.mulf %1195, %1194 : vector<8x128xf32>
    %1197 = vector.broadcast %13 : f32 to vector<8x128xf32>
    %1198 = arith.mulf %1197, %1148 : vector<8x128xf32>
    %1199 = arith.addf %1196, %1198 : vector<8x128xf32>
    %1200 = vector.broadcast %15 : f32 to vector<8x128xf32>
    %1201 = arith.addf %1199, %1200 : vector<8x128xf32>
    %1202 = math.tanh %1201 : vector<8x128xf32>
    %1203 = vector.broadcast %16 : f32 to vector<8x128xf32>
    %1204 = arith.mulf %1203, %1194 : vector<8x128xf32>
    %1205 = vector.broadcast %17 : f32 to vector<8x128xf32>
    %1206 = arith.mulf %1205, %1148 : vector<8x128xf32>
    %1207 = arith.addf %1204, %1206 : vector<8x128xf32>
    %1208 = vector.broadcast %19 : f32 to vector<8x128xf32>
    %1209 = arith.addf %1207, %1208 : vector<8x128xf32>
    %1210 = math.tanh %1209 : vector<8x128xf32>
    %1211 = vector.broadcast %2 : f32 to vector<8x128xf32>
    %1212 = arith.mulf %1211, %1194 : vector<8x128xf32>
    %1213 = vector.broadcast %8 : f32 to vector<8x128xf32>
    %1214 = arith.addf %1212, %1213 : vector<8x128xf32>
    %cst_246 = arith.constant 1.000000e+00 : f32
    %1215 = vector.broadcast %cst_246 : f32 to vector<8x128xf32>
    %1216 = arith.addf %1202, %1215 : vector<8x128xf32>
    %1217 = vector.broadcast %20 : f32 to vector<8x128xf32>
    %1218 = arith.mulf %1217, %1148 : vector<8x128xf32>
    %1219 = vector.broadcast %21 : f32 to vector<8x128xf32>
    %1220 = arith.addf %1218, %1219 : vector<8x128xf32>
    %1221 = arith.mulf %1216, %1220 : vector<8x128xf32>
    %1222 = arith.addf %1214, %1221 : vector<8x128xf32>
    %1223 = math.tanh %1222 : vector<8x128xf32>
    %cst_247 = arith.constant 1.000000e+00 : f32
    %1224 = vector.broadcast %cst_247 : f32 to vector<8x128xf32>
    %1225 = arith.addf %1210, %1224 : vector<8x128xf32>
    %1226 = arith.subf %1148, %1223 : vector<8x128xf32>
    %cst_248 = arith.constant 5.000000e-01 : f32
    %1227 = vector.broadcast %cst_248 : f32 to vector<8x128xf32>
    %1228 = arith.mulf %1227, %1226 : vector<8x128xf32>
    %1229 = arith.mulf %1225, %1228 : vector<8x128xf32>
    %1230 = arith.addf %1223, %1229 : vector<8x128xf32>
    %c0_249 = arith.constant 0 : index
    %c112 = arith.constant 112 : index
    %c0_250 = arith.constant 0 : index
    %1231 = vector.load %arg8[%c0_249, %c112, %c0_250] : memref<1x256x128xf32, #tpu.memory_space<vmem>>, vector<1x8x128xf32>
    %1232 = vector.shape_cast %1231 : vector<1x8x128xf32> to vector<8x128xf32>
    %1233 = vector.shape_cast %1230 : vector<8x128xf32> to vector<1x8x128xf32>
    tpu.vector_store %arg8[%c0_249, %c112, %c0_250], %1233 {strides = array<i32>} : memref<1x256x128xf32, #tpu.memory_space<vmem>>, vector<1x8x128xf32>,
    %c1_251 = arith.constant 1 : index
    %c0_252 = arith.constant 0 : index
    %c0_253 = arith.constant 0 : index
    %1234 = vector.load %arg2[%c1_251, %c0_252, %c0_253] : memref<16x8x128xf32, #tpu.memory_space<vmem>>, vector<1x8x128xf32>
    %1235 = vector.shape_cast %1234 : vector<1x8x128xf32> to vector<8x128xf32>
    %1236 = vector.broadcast %34 : f32 to vector<8x128xf32>
    %1237 = arith.mulf %1236, %1235 : vector<8x128xf32>
    %1238 = vector.broadcast %35 : f32 to vector<8x128xf32>
    %1239 = arith.mulf %1238, %1189 : vector<8x128xf32>
    %1240 = arith.addf %1237, %1239 : vector<8x128xf32>
    %1241 = vector.broadcast %37 : f32 to vector<8x128xf32>
    %1242 = arith.addf %1240, %1241 : vector<8x128xf32>
    %1243 = math.tanh %1242 : vector<8x128xf32>
    %1244 = vector.broadcast %38 : f32 to vector<8x128xf32>
    %1245 = arith.mulf %1244, %1235 : vector<8x128xf32>
    %1246 = vector.broadcast %39 : f32 to vector<8x128xf32>
    %1247 = arith.mulf %1246, %1189 : vector<8x128xf32>
    %1248 = arith.addf %1245, %1247 : vector<8x128xf32>
    %1249 = vector.broadcast %41 : f32 to vector<8x128xf32>
    %1250 = arith.addf %1248, %1249 : vector<8x128xf32>
    %1251 = math.tanh %1250 : vector<8x128xf32>
    %1252 = vector.broadcast %24 : f32 to vector<8x128xf32>
    %1253 = arith.mulf %1252, %1235 : vector<8x128xf32>
    %1254 = vector.broadcast %30 : f32 to vector<8x128xf32>
    %1255 = arith.addf %1253, %1254 : vector<8x128xf32>
    %cst_254 = arith.constant 1.000000e+00 : f32
    %1256 = vector.broadcast %cst_254 : f32 to vector<8x128xf32>
    %1257 = arith.addf %1243, %1256 : vector<8x128xf32>
    %1258 = vector.broadcast %42 : f32 to vector<8x128xf32>
    %1259 = arith.mulf %1258, %1189 : vector<8x128xf32>
    %1260 = vector.broadcast %43 : f32 to vector<8x128xf32>
    %1261 = arith.addf %1259, %1260 : vector<8x128xf32>
    %1262 = arith.mulf %1257, %1261 : vector<8x128xf32>
    %1263 = arith.addf %1255, %1262 : vector<8x128xf32>
    %1264 = math.tanh %1263 : vector<8x128xf32>
    %cst_255 = arith.constant 1.000000e+00 : f32
    %1265 = vector.broadcast %cst_255 : f32 to vector<8x128xf32>
    %1266 = arith.addf %1251, %1265 : vector<8x128xf32>
    %1267 = arith.subf %1189, %1264 : vector<8x128xf32>
    %cst_256 = arith.constant 5.000000e-01 : f32
    %1268 = vector.broadcast %cst_256 : f32 to vector<8x128xf32>
    %1269 = arith.mulf %1268, %1267 : vector<8x128xf32>
    %1270 = arith.mulf %1266, %1269 : vector<8x128xf32>
    %1271 = arith.addf %1264, %1270 : vector<8x128xf32>
    %c0_257 = arith.constant 0 : index
    %c136 = arith.constant 136 : index
    %c0_258 = arith.constant 0 : index
    %1272 = vector.load %arg8[%c0_257, %c136, %c0_258] : memref<1x256x128xf32, #tpu.memory_space<vmem>>, vector<1x8x128xf32>
    %1273 = vector.shape_cast %1272 : vector<1x8x128xf32> to vector<8x128xf32>
    %1274 = vector.shape_cast %1271 : vector<8x128xf32> to vector<1x8x128xf32>
    tpu.vector_store %arg8[%c0_257, %c136, %c0_258], %1274 {strides = array<i32>} : memref<1x256x128xf32, #tpu.memory_space<vmem>>, vector<1x8x128xf32>,
    %c15_259 = arith.constant 15 : index
    %c0_260 = arith.constant 0 : index
    %c0_261 = arith.constant 0 : index
    %1275 = vector.load %arg2[%c15_259, %c0_260, %c0_261] : memref<16x8x128xf32, #tpu.memory_space<vmem>>, vector<1x8x128xf32>
    %1276 = vector.shape_cast %1275 : vector<1x8x128xf32> to vector<8x128xf32>
    %1277 = vector.broadcast %12 : f32 to vector<8x128xf32>
    %1278 = arith.mulf %1277, %1276 : vector<8x128xf32>
    %1279 = vector.broadcast %13 : f32 to vector<8x128xf32>
    %1280 = arith.mulf %1279, %1230 : vector<8x128xf32>
    %1281 = arith.addf %1278, %1280 : vector<8x128xf32>
    %1282 = vector.broadcast %15 : f32 to vector<8x128xf32>
    %1283 = arith.addf %1281, %1282 : vector<8x128xf32>
    %1284 = math.tanh %1283 : vector<8x128xf32>
    %1285 = vector.broadcast %16 : f32 to vector<8x128xf32>
    %1286 = arith.mulf %1285, %1276 : vector<8x128xf32>
    %1287 = vector.broadcast %17 : f32 to vector<8x128xf32>
    %1288 = arith.mulf %1287, %1230 : vector<8x128xf32>
    %1289 = arith.addf %1286, %1288 : vector<8x128xf32>
    %1290 = vector.broadcast %19 : f32 to vector<8x128xf32>
    %1291 = arith.addf %1289, %1290 : vector<8x128xf32>
    %1292 = math.tanh %1291 : vector<8x128xf32>
    %1293 = vector.broadcast %2 : f32 to vector<8x128xf32>
    %1294 = arith.mulf %1293, %1276 : vector<8x128xf32>
    %1295 = vector.broadcast %8 : f32 to vector<8x128xf32>
    %1296 = arith.addf %1294, %1295 : vector<8x128xf32>
    %cst_262 = arith.constant 1.000000e+00 : f32
    %1297 = vector.broadcast %cst_262 : f32 to vector<8x128xf32>
    %1298 = arith.addf %1284, %1297 : vector<8x128xf32>
    %1299 = vector.broadcast %20 : f32 to vector<8x128xf32>
    %1300 = arith.mulf %1299, %1230 : vector<8x128xf32>
    %1301 = vector.broadcast %21 : f32 to vector<8x128xf32>
    %1302 = arith.addf %1300, %1301 : vector<8x128xf32>
    %1303 = arith.mulf %1298, %1302 : vector<8x128xf32>
    %1304 = arith.addf %1296, %1303 : vector<8x128xf32>
    %1305 = math.tanh %1304 : vector<8x128xf32>
    %cst_263 = arith.constant 1.000000e+00 : f32
    %1306 = vector.broadcast %cst_263 : f32 to vector<8x128xf32>
    %1307 = arith.addf %1292, %1306 : vector<8x128xf32>
    %1308 = arith.subf %1230, %1305 : vector<8x128xf32>
    %cst_264 = arith.constant 5.000000e-01 : f32
    %1309 = vector.broadcast %cst_264 : f32 to vector<8x128xf32>
    %1310 = arith.mulf %1309, %1308 : vector<8x128xf32>
    %1311 = arith.mulf %1307, %1310 : vector<8x128xf32>
    %1312 = arith.addf %1305, %1311 : vector<8x128xf32>
    %c0_265 = arith.constant 0 : index
    %c120 = arith.constant 120 : index
    %c0_266 = arith.constant 0 : index
    %1313 = vector.load %arg8[%c0_265, %c120, %c0_266] : memref<1x256x128xf32, #tpu.memory_space<vmem>>, vector<1x8x128xf32>
    %1314 = vector.shape_cast %1313 : vector<1x8x128xf32> to vector<8x128xf32>
    %1315 = vector.shape_cast %1312 : vector<8x128xf32> to vector<1x8x128xf32>
    tpu.vector_store %arg8[%c0_265, %c120, %c0_266], %1315 {strides = array<i32>} : memref<1x256x128xf32, #tpu.memory_space<vmem>>, vector<1x8x128xf32>,
    %c0_267 = arith.constant 0 : index
    %c0_268 = arith.constant 0 : index
    %c0_269 = arith.constant 0 : index
    %1316 = vector.load %arg2[%c0_267, %c0_268, %c0_269] : memref<16x8x128xf32, #tpu.memory_space<vmem>>, vector<1x8x128xf32>
    %1317 = vector.shape_cast %1316 : vector<1x8x128xf32> to vector<8x128xf32>
    %1318 = vector.broadcast %34 : f32 to vector<8x128xf32>
    %1319 = arith.mulf %1318, %1317 : vector<8x128xf32>
    %1320 = vector.broadcast %35 : f32 to vector<8x128xf32>
    %1321 = arith.mulf %1320, %1271 : vector<8x128xf32>
    %1322 = arith.addf %1319, %1321 : vector<8x128xf32>
    %1323 = vector.broadcast %37 : f32 to vector<8x128xf32>
    %1324 = arith.addf %1322, %1323 : vector<8x128xf32>
    %1325 = math.tanh %1324 : vector<8x128xf32>
    %1326 = vector.broadcast %38 : f32 to vector<8x128xf32>
    %1327 = arith.mulf %1326, %1317 : vector<8x128xf32>
    %1328 = vector.broadcast %39 : f32 to vector<8x128xf32>
    %1329 = arith.mulf %1328, %1271 : vector<8x128xf32>
    %1330 = arith.addf %1327, %1329 : vector<8x128xf32>
    %1331 = vector.broadcast %41 : f32 to vector<8x128xf32>
    %1332 = arith.addf %1330, %1331 : vector<8x128xf32>
    %1333 = math.tanh %1332 : vector<8x128xf32>
    %1334 = vector.broadcast %24 : f32 to vector<8x128xf32>
    %1335 = arith.mulf %1334, %1317 : vector<8x128xf32>
    %1336 = vector.broadcast %30 : f32 to vector<8x128xf32>
    %1337 = arith.addf %1335, %1336 : vector<8x128xf32>
    %cst_270 = arith.constant 1.000000e+00 : f32
    %1338 = vector.broadcast %cst_270 : f32 to vector<8x128xf32>
    %1339 = arith.addf %1325, %1338 : vector<8x128xf32>
    %1340 = vector.broadcast %42 : f32 to vector<8x128xf32>
    %1341 = arith.mulf %1340, %1271 : vector<8x128xf32>
    %1342 = vector.broadcast %43 : f32 to vector<8x128xf32>
    %1343 = arith.addf %1341, %1342 : vector<8x128xf32>
    %1344 = arith.mulf %1339, %1343 : vector<8x128xf32>
    %1345 = arith.addf %1337, %1344 : vector<8x128xf32>
    %1346 = math.tanh %1345 : vector<8x128xf32>
    %cst_271 = arith.constant 1.000000e+00 : f32
    %1347 = vector.broadcast %cst_271 : f32 to vector<8x128xf32>
    %1348 = arith.addf %1333, %1347 : vector<8x128xf32>
    %1349 = arith.subf %1271, %1346 : vector<8x128xf32>
    %cst_272 = arith.constant 5.000000e-01 : f32
    %1350 = vector.broadcast %cst_272 : f32 to vector<8x128xf32>
    %1351 = arith.mulf %1350, %1349 : vector<8x128xf32>
    %1352 = arith.mulf %1348, %1351 : vector<8x128xf32>
    %1353 = arith.addf %1346, %1352 : vector<8x128xf32>
    %c0_273 = arith.constant 0 : index
    %c128 = arith.constant 128 : index
    %c0_274 = arith.constant 0 : index
    %1354 = vector.load %arg8[%c0_273, %c128, %c0_274] : memref<1x256x128xf32, #tpu.memory_space<vmem>>, vector<1x8x128xf32>
    %1355 = vector.shape_cast %1354 : vector<1x8x128xf32> to vector<8x128xf32>
    %1356 = vector.shape_cast %1353 : vector<8x128xf32> to vector<1x8x128xf32>
    tpu.vector_store %arg8[%c0_273, %c128, %c0_274], %1356 {strides = array<i32>} : memref<1x256x128xf32, #tpu.memory_space<vmem>>, vector<1x8x128xf32>,
    %c0_275 = arith.constant 0 : index
    %c0_276 = arith.constant 0 : index
    %c0_277 = arith.constant 0 : index
    %1357 = vector.load %arg8[%c0_275, %c0_276, %c0_277] : memref<1x256x128xf32, #tpu.memory_space<vmem>>, vector<1x256x128xf32>
    %1358 = vector.shape_cast %1357 : vector<1x256x128xf32> to vector<256x128xf32>
    %c0_278 = arith.constant 0 : index
    %c0_279 = arith.constant 0 : index
    %1359 = vector.load %arg3[%c0_278, %c0_279] : memref<128x256xf32, #tpu.memory_space<vmem>>, vector<128x256xf32>
    %cst_280 = arith.constant dense<0.000000e+00> : vector<128x128xf32>
    %1360 = tpu.matmul %1359, %1358, %cst_280 {dimension_numbers = #tpu.dot_dimension_numbers<[1], [0], [0], [1], [0, 0, 1, 1], [], []>} : vector<128x256xf32>, vector<256x128xf32>, vector<128x128xf32> -> vector<128x128xf32>
    %c0_281 = arith.constant 0 : index
    %c0_282 = arith.constant 0 : index
    %1361 = vector.load %arg4[%c0_281, %c0_282] : memref<128x128xf32, #tpu.memory_space<vmem>>, vector<128x128xf32>
    %1362 = arith.addf %1360, %1361 : vector<128x128xf32>
    %cst_283 = arith.constant 0.000000e+00 : f32
    %1363 = vector.broadcast %cst_283 : f32 to vector<128x128xf32>
    %1364 = arith.maximumf %1362, %1363 : vector<128x128xf32>
    %c0_284 = arith.constant 0 : index
    %c0_285 = arith.constant 0 : index
    %1365 = vector.load %arg5[%c0_284, %c0_285] : memref<40x128xf32, #tpu.memory_space<vmem>>, vector<40x128xf32>
    %cst_286 = arith.constant dense<0.000000e+00> : vector<40x128xf32>
    %1366 = tpu.matmul %1365, %1364, %cst_286 {dimension_numbers = #tpu.dot_dimension_numbers<[1], [0], [0], [1], [0, 0, 1, 1], [], []>} : vector<40x128xf32>, vector<128x128xf32>, vector<40x128xf32> -> vector<40x128xf32>
    %c0_287 = arith.constant 0 : index
    %c0_288 = arith.constant 0 : index
    %1367 = vector.load %arg6[%c0_287, %c0_288] : memref<40x128xf32, #tpu.memory_space<vmem>>, vector<40x128xf32>
    %1368 = arith.addf %1366, %1367 : vector<40x128xf32>
    %cst_289 = arith.constant 0.000000e+00 : f32
    %1369 = vector.broadcast %cst_289 : f32 to vector<40x128xf32>
    %1370 = arith.maximumf %1368, %1369 : vector<40x128xf32>
    %1371 = vector.extract_strided_slice %1370 {offsets = [0, 0], sizes = [8, 128], strides = [1, 1]} : vector<40x128xf32> to vector<8x128xf32>
    %1372 = vector.extract_strided_slice %1370 {offsets = [8, 0], sizes = [8, 128], strides = [1, 1]} : vector<40x128xf32> to vector<8x128xf32>
    %1373 = vector.extract_strided_slice %1370 {offsets = [16, 0], sizes = [8, 128], strides = [1, 1]} : vector<40x128xf32> to vector<8x128xf32>
    %1374 = vector.extract_strided_slice %1370 {offsets = [24, 0], sizes = [8, 128], strides = [1, 1]} : vector<40x128xf32> to vector<8x128xf32>
    %1375 = vector.extract_strided_slice %1370 {offsets = [32, 0], sizes = [8, 128], strides = [1, 1]} : vector<40x128xf32> to vector<8x128xf32>
    %1376 = arith.maximumf %1371, %1372 : vector<8x128xf32>
    %1377 = arith.maximumf %1376, %1373 : vector<8x128xf32>
    %1378 = arith.maximumf %1377, %1374 : vector<8x128xf32>
    %1379 = arith.maximumf %1378, %1375 : vector<8x128xf32>
    %1380 = arith.subf %1371, %1379 : vector<8x128xf32>
    %1381 = math.exp %1380 : vector<8x128xf32>
    %1382 = arith.subf %1372, %1379 : vector<8x128xf32>
    %1383 = math.exp %1382 : vector<8x128xf32>
    %1384 = arith.addf %1381, %1383 : vector<8x128xf32>
    %1385 = arith.subf %1373, %1379 : vector<8x128xf32>
    %1386 = math.exp %1385 : vector<8x128xf32>
    %1387 = arith.addf %1384, %1386 : vector<8x128xf32>
    %1388 = arith.subf %1374, %1379 : vector<8x128xf32>
    %1389 = math.exp %1388 : vector<8x128xf32>
    %1390 = arith.addf %1387, %1389 : vector<8x128xf32>
    %1391 = arith.subf %1375, %1379 : vector<8x128xf32>
    %1392 = math.exp %1391 : vector<8x128xf32>
    %1393 = arith.addf %1390, %1392 : vector<8x128xf32>
    %1394 = math.log %1393 : vector<8x128xf32>
    %1395 = arith.addf %1379, %1394 : vector<8x128xf32>
    %1396 = arith.subf %1371, %1395 : vector<8x128xf32>
    %c0_290 = arith.constant 0 : index
    %c0_291 = arith.constant 0 : index
    %c0_292 = arith.constant 0 : index
    %1397 = vector.load %arg7[%c0_290, %c0_291, %c0_292] : memref<5x8x128xf32, #tpu.memory_space<vmem>>, vector<1x8x128xf32>
    %1398 = vector.shape_cast %1397 : vector<1x8x128xf32> to vector<8x128xf32>
    %1399 = vector.shape_cast %1396 : vector<8x128xf32> to vector<1x8x128xf32>
    tpu.vector_store %arg7[%c0_290, %c0_291, %c0_292], %1399 {strides = array<i32>} : memref<5x8x128xf32, #tpu.memory_space<vmem>>, vector<1x8x128xf32>,
    %1400 = arith.subf %1372, %1395 : vector<8x128xf32>
    %c1_293 = arith.constant 1 : index
    %c0_294 = arith.constant 0 : index
    %c0_295 = arith.constant 0 : index
    %1401 = vector.load %arg7[%c1_293, %c0_294, %c0_295] : memref<5x8x128xf32, #tpu.memory_space<vmem>>, vector<1x8x128xf32>
    %1402 = vector.shape_cast %1401 : vector<1x8x128xf32> to vector<8x128xf32>
    %1403 = vector.shape_cast %1400 : vector<8x128xf32> to vector<1x8x128xf32>
    tpu.vector_store %arg7[%c1_293, %c0_294, %c0_295], %1403 {strides = array<i32>} : memref<5x8x128xf32, #tpu.memory_space<vmem>>, vector<1x8x128xf32>,
    %1404 = arith.subf %1373, %1395 : vector<8x128xf32>
    %c2_296 = arith.constant 2 : index
    %c0_297 = arith.constant 0 : index
    %c0_298 = arith.constant 0 : index
    %1405 = vector.load %arg7[%c2_296, %c0_297, %c0_298] : memref<5x8x128xf32, #tpu.memory_space<vmem>>, vector<1x8x128xf32>
    %1406 = vector.shape_cast %1405 : vector<1x8x128xf32> to vector<8x128xf32>
    %1407 = vector.shape_cast %1404 : vector<8x128xf32> to vector<1x8x128xf32>
    tpu.vector_store %arg7[%c2_296, %c0_297, %c0_298], %1407 {strides = array<i32>} : memref<5x8x128xf32, #tpu.memory_space<vmem>>, vector<1x8x128xf32>,
    %1408 = arith.subf %1374, %1395 : vector<8x128xf32>
    %c3_299 = arith.constant 3 : index
    %c0_300 = arith.constant 0 : index
    %c0_301 = arith.constant 0 : index
    %1409 = vector.load %arg7[%c3_299, %c0_300, %c0_301] : memref<5x8x128xf32, #tpu.memory_space<vmem>>, vector<1x8x128xf32>
    %1410 = vector.shape_cast %1409 : vector<1x8x128xf32> to vector<8x128xf32>
    %1411 = vector.shape_cast %1408 : vector<8x128xf32> to vector<1x8x128xf32>
    tpu.vector_store %arg7[%c3_299, %c0_300, %c0_301], %1411 {strides = array<i32>} : memref<5x8x128xf32, #tpu.memory_space<vmem>>, vector<1x8x128xf32>,
    %1412 = arith.subf %1375, %1395 : vector<8x128xf32>
    %c4_302 = arith.constant 4 : index
    %c0_303 = arith.constant 0 : index
    %c0_304 = arith.constant 0 : index
    %1413 = vector.load %arg7[%c4_302, %c0_303, %c0_304] : memref<5x8x128xf32, #tpu.memory_space<vmem>>, vector<1x8x128xf32>
    %1414 = vector.shape_cast %1413 : vector<1x8x128xf32> to vector<8x128xf32>
    %1415 = vector.shape_cast %1412 : vector<8x128xf32> to vector<1x8x128xf32>
    tpu.vector_store %arg7[%c4_302, %c0_303, %c0_304], %1415 {strides = array<i32>} : memref<5x8x128xf32, #tpu.memory_space<vmem>>, vector<1x8x128xf32>,
    return
  }
  func.func @transform_0(%arg0: i32) -> i32 {
    %c0_i32 = arith.constant 0 : i32
    %c0_i32_0 = arith.constant 0 : i32
    return %c0_i32 : i32
  }
  func.func @transform_1(%arg0: i32) -> (i32, i32, i32) {
    %c0_i32 = arith.constant 0 : i32
    %c0_i32_0 = arith.constant 0 : i32
    %c0_i32_1 = arith.constant 0 : i32
    return %c0_i32, %arg0, %c0_i32_0 : i32, i32, i32
  }
  func.func @transform_2(%arg0: i32) -> (i32, i32) {
    %c0_i32 = arith.constant 0 : i32
    %c0_i32_0 = arith.constant 0 : i32
    %c0_i32_1 = arith.constant 0 : i32
    return %c0_i32, %c0_i32_0 : i32, i32
  }
  func.func @transform_3(%arg0: i32) -> (i32, i32) {
    %c0_i32 = arith.constant 0 : i32
    %c0_i32_0 = arith.constant 0 : i32
    %c0_i32_1 = arith.constant 0 : i32
    return %c0_i32, %c0_i32_0 : i32, i32
  }
  func.func @transform_4(%arg0: i32) -> (i32, i32) {
    %c0_i32 = arith.constant 0 : i32
    %c0_i32_0 = arith.constant 0 : i32
    %c0_i32_1 = arith.constant 0 : i32
    return %c0_i32, %c0_i32_0 : i32, i32
  }
  func.func @transform_5(%arg0: i32) -> (i32, i32) {
    %c0_i32 = arith.constant 0 : i32
    %c0_i32_0 = arith.constant 0 : i32
    %c0_i32_1 = arith.constant 0 : i32
    return %c0_i32, %c0_i32_0 : i32, i32
  }
  func.func @transform_6(%arg0: i32) -> (i32, i32, i32) {
    %c0_i32 = arith.constant 0 : i32
    %c0_i32_0 = arith.constant 0 : i32
    %c0_i32_1 = arith.constant 0 : i32
    return %c0_i32, %arg0, %c0_i32_0 : i32, i32, i32
  }
}

</mosaic_0001>

<llo_original>
// kernel: tpu_custom_call.1
$region0: #{tpu_custom_call.1}
  #allocation0 [shape = 'u32[]', space=smem, size = 0x4, offset = 0x4, fixed_abs, tag = 'smem constant byte address 0x4 - core index']
  #allocation1 [shape = 'u32[144,128]{1,0:T(1,128)}', space=vmem, size = 0x12000, scoped, tag = 'internal scratch']
  #allocation2 [shape = 'f32[1,256,128]{2,1,0:T(8,128)}', space=vmem, size = 0x20000, scoped, tag = 'scratch operand']
  %s0 = inlined_call_operand.hbm [shape: f32[24], index: 0, kind: input, shape index: {}]
  %s1 = inlined_call_operand.hbm [shape: f32[16,8,128], index: 1, kind: input, shape index: {}]
  %s2 = inlined_call_operand.hbm [shape: f32[128,256], index: 2, kind: input, shape index: {}]
  %s3 = inlined_call_operand.hbm [shape: f32[128,128], index: 3, kind: input, shape index: {}]
  %s4 = inlined_call_operand.hbm [shape: f32[40,128], index: 4, kind: input, shape index: {}]
  %s5 = inlined_call_operand.hbm [shape: f32[40,128], index: 5, kind: input, shape index: {}]
  %s6 = inlined_call_operand.hbm [shape: f32[5,8,128], index: 6, kind: output, shape index: {}]
  %s7 = sld [smem:[#allocation0]]
  $region58: #{tpu_custom_call.1} parent=0
    _
  %s9 = ssub.s32 1, %s7
  %s10 = scalar_select 0, %s9, %s7
  $region1: #{tpu_custom_call.1} parent=0
    #allocation3 [shape = 'u8[512]{0}', space=smem, size = 0x200, scoped, tag = 'input window, operand 0, single buffered']
    #allocation4 [shape = 's32[1]{0}', space=sflag, size = 0x4, scoped, tag = 'scoped memory for tpu_custom_call.1']
    #allocation5 [shape = 's32[1]{0}', space=sflag, size = 0x4, scoped, tag = 'scoped memory for tpu_custom_call.1']
    #allocation6 [shape = 's32[1]{0}', space=sflag, size = 0x4, scoped, tag = 'scoped memory for tpu_custom_call.1']
    #allocation7 [shape = 'u8[65536]{0}', space=vmem, size = 0x10000, scoped, tag = 'input window, operand 1, single buffered']
    #allocation8 [shape = 'u8[131072]{0}', space=vmem, size = 0x20000, scoped, tag = 'input window, operand 2, single buffered']
    #allocation9 [shape = 's32[1]{0}', space=sflag, size = 0x4, scoped, tag = 'scoped memory for tpu_custom_call.1']
    #allocation10 [shape = 'u8[65536]{0}', space=vmem, size = 0x10000, scoped, tag = 'input window, operand 3, single buffered']
    #allocation11 [shape = 'u8[20480]{0}', space=vmem, size = 0x5000, scoped, tag = 'input window, operand 4, single buffered']
    #allocation12 [shape = 's32[1]{0}', space=sflag, size = 0x4, scoped, tag = 'scoped memory for tpu_custom_call.1']
    #allocation13 [shape = 'u8[20480]{0}', space=vmem, size = 0x5000, scoped, tag = 'input window, operand 5, single buffered']
    #allocation14 [shape = 'u8[20480]{0}', space=vmem, size = 0x5000, scoped, tag = 'output window, operand 0, single buffered']
    %11 = vsyncpa [#allocation6], 0
    %12 = vsyncpa [#allocation4], 0
    %13 = vsyncpa [#allocation9], 0
    %14 = vsyncpa [#allocation12], 0
    %15 = vsyncpa [#allocation5], 0
    // Predicated region
    $region2: #{tpu_custom_call.1} parent=1 // pred_check
      _
    $region3: #{tpu_custom_call.1} parent=1 // pred_check_branch
      %17 = sbr.rel (0) target = $region5
    $region4: #{tpu_custom_call.1} parent=1 // pred_region
      %s19 = ssub.s32 16, 16
      %20 = vsyncadd [#allocation6], %s19
      %23 = dma.hbm_to_smem %s0, 16, [#allocation3], [#allocation6]
    $region5: #{tpu_custom_call.1} parent=1 // pred_fallthru
      _
    // Predicated region
    $region6: #{tpu_custom_call.1} parent=1 // pred_check
      _
    $region7: #{tpu_custom_call.1} parent=1 // pred_check_branch
      %25 = sbr.rel (0) target = $region9
    $region8: #{tpu_custom_call.1} parent=1 // pred_region
      %s27 = ssub.s32 2048, 2048
      %28 = vsyncadd [#allocation4], %s27
      %s29 = sshll.u32 [#allocation7], 4
      %s30 = int_to_ptr.vmem [resolvable:$true] %s29
      %35 = dma.hbm_to_vmem [thread:$0]  %s1, 2048, %s30, [#allocation4], 128, 128, 8
    $region9: #{tpu_custom_call.1} parent=1 // pred_fallthru
      _
    // Predicated region
    $region10: #{tpu_custom_call.1} parent=1 // pred_check
      _
    $region11: #{tpu_custom_call.1} parent=1 // pred_check_branch
      %37 = sbr.rel (0) target = $region13
    $region12: #{tpu_custom_call.1} parent=1 // pred_region
      %s39 = ssub.s32 4096, 4096
      %40 = vsyncadd [#allocation9], %s39
      %s41 = sshll.u32 [#allocation8], 4
      %s42 = int_to_ptr.vmem [resolvable:$true] %s41
      %47 = dma.hbm_to_vmem [thread:$0]  %s2, 4096, %s42, [#allocation9], 256, 256, 16
    $region13: #{tpu_custom_call.1} parent=1 // pred_fallthru
      _
    // Predicated region
    $region14: #{tpu_custom_call.1} parent=1 // pred_check
      _
    $region15: #{tpu_custom_call.1} parent=1 // pred_check_branch
      %49 = sbr.rel (0) target = $region17
    $region16: #{tpu_custom_call.1} parent=1 // pred_region
      %s51 = ssub.s32 2048, 2048
      %52 = vsyncadd [#allocation9], %s51
      %s53 = sshll.u32 [#allocation10], 4
      %s54 = int_to_ptr.vmem [resolvable:$true] %s53
      %59 = dma.hbm_to_vmem [thread:$0]  %s3, 2048, %s54, [#allocation9], 128, 128, 8
    $region17: #{tpu_custom_call.1} parent=1 // pred_fallthru
      _
    // Predicated region
    $region18: #{tpu_custom_call.1} parent=1 // pred_check
      _
    $region19: #{tpu_custom_call.1} parent=1 // pred_check_branch
      %61 = sbr.rel (0) target = $region21
    $region20: #{tpu_custom_call.1} parent=1 // pred_region
      %s63 = ssub.s32 640, 640
      %64 = vsyncadd [#allocation12], %s63
      %s65 = sshll.u32 [#allocation11], 4
      %s66 = int_to_ptr.vmem [resolvable:$true] %s65
      %71 = dma.hbm_to_vmem [thread:$0]  %s4, 640, %s66, [#allocation12], 128, 128, 8
    $region21: #{tpu_custom_call.1} parent=1 // pred_fallthru
      _
    // Predicated region
    $region22: #{tpu_custom_call.1} parent=1 // pred_check
      _
    $region23: #{tpu_custom_call.1} parent=1 // pred_check_branch
      %73 = sbr.rel (0) target = $region25
    $region24: #{tpu_custom_call.1} parent=1 // pred_region
      %s75 = ssub.s32 640, 640
      %76 = vsyncadd [#allocation12], %s75
      %s77 = sshll.u32 [#allocation13], 4
      %s78 = int_to_ptr.vmem [resolvable:$true] %s77
      %83 = dma.hbm_to_vmem [thread:$0]  %s5, 640, %s78, [#allocation12], 128, 128, 8
    $region25: #{tpu_custom_call.1} parent=1 // pred_fallthru
      _
    // Predicated region
    $region26: #{tpu_custom_call.1} parent=1 // pred_check
      _
    $region27: #{tpu_custom_call.1} parent=1 // pred_check_branch
      %85 = sbr.rel (0) target = $region29
    $region28: #{tpu_custom_call.1} parent=1 // pred_region
      %86 = dma.done [#allocation6], 16
    $region29: #{tpu_custom_call.1} parent=1 // pred_fallthru
      _
    // Predicated region
    $region30: #{tpu_custom_call.1} parent=1 // pred_check
      _
    $region31: #{tpu_custom_call.1} parent=1 // pred_check_branch
      %88 = sbr.rel (0) target = $region33
    $region32: #{tpu_custom_call.1} parent=1 // pred_region
      %89 = dma.done [#allocation4], 2048
    $region33: #{tpu_custom_call.1} parent=1 // pred_fallthru
      _
    // Predicated region
    $region34: #{tpu_custom_call.1} parent=1 // pred_check
      _
    $region35: #{tpu_custom_call.1} parent=1 // pred_check_branch
      %91 = sbr.rel (0) target = $region37
    $region36: #{tpu_custom_call.1} parent=1 // pred_region
      %92 = dma.done [#allocation9], 4096
    $region37: #{tpu_custom_call.1} parent=1 // pred_fallthru
      _
    // Predicated region
    $region38: #{tpu_custom_call.1} parent=1 // pred_check
      _
    $region39: #{tpu_custom_call.1} parent=1 // pred_check_branch
      %94 = sbr.rel (0) target = $region41
    $region40: #{tpu_custom_call.1} parent=1 // pred_region
      %95 = dma.done [#allocation9], 2048
    $region41: #{tpu_custom_call.1} parent=1 // pred_fallthru
      _
    // Predicated region
    $region42: #{tpu_custom_call.1} parent=1 // pred_check
      _
    $region43: #{tpu_custom_call.1} parent=1 // pred_check_branch
      %97 = sbr.rel (0) target = $region45
    $region44: #{tpu_custom_call.1} parent=1 // pred_region
      %98 = dma.done [#allocation12], 640
    $region45: #{tpu_custom_call.1} parent=1 // pred_fallthru
      _
    // Predicated region
    $region46: #{tpu_custom_call.1} parent=1 // pred_check
      _
    $region47: #{tpu_custom_call.1} parent=1 // pred_check_branch
      %100 = sbr.rel (0) target = $region49
    $region48: #{tpu_custom_call.1} parent=1 // pred_region
      %101 = dma.done [#allocation12], 640
    $region49: #{tpu_custom_call.1} parent=1 // pred_fallthru
      _
    %102 = sfence
    %s103 = sld [smem:[#allocation3]]
    %s104 = sld [smem:[#allocation3 + $0x1]]
    %s105 = sld [smem:[#allocation3 + $0x2]]
    %s106 = sld [smem:[#allocation3 + $0x3]]
    %s107 = sld [smem:[#allocation3 + $0x4]]
    %s108 = sld [smem:[#allocation3 + $0x5]]
    %s109 = sld [smem:[#allocation3 + $0x6]]
    %s110 = sld [smem:[#allocation3 + $0x7]]
    %s111 = sld [smem:[#allocation3 + $0x8]]
    %s112 = sld [smem:[#allocation3 + $0x9]]
    %s113 = sld [smem:[#allocation3 + $0xa]]
    %s114 = sld [smem:[#allocation3 + $0xb]]
    %s115 = smul.f32 %s103, 0.5
    %s116 = smul.f32 %s106, 0.5
    %s117 = sadd.f32 %s109, %s112
    %s118 = smul.f32 %s117, 0.5
    %s119 = smul.f32 %s104, 0.5
    %s120 = smul.f32 %s107, 0.5
    %s121 = sadd.f32 %s110, %s113
    %s122 = smul.f32 %s121, 0.5
    %s123 = smul.f32 %s108, 0.5
    %s124 = smul.f32 %s114, 0.5
    %s125 = sld [smem:[#allocation3 + $0xc]]
    %s126 = sld [smem:[#allocation3 + $0xd]]
    %s127 = sld [smem:[#allocation3 + $0xe]]
    %s128 = sld [smem:[#allocation3 + $0xf]]
    %s129 = sld [smem:[#allocation3 + $0x10]]
    %s130 = sld [smem:[#allocation3 + $0x11]]
    %s131 = sld [smem:[#allocation3 + $0x12]]
    %s132 = sld [smem:[#allocation3 + $0x13]]
    %s133 = sld [smem:[#allocation3 + $0x14]]
    %s134 = sld [smem:[#allocation3 + $0x15]]
    %s135 = sld [smem:[#allocation3 + $0x16]]
    %s136 = sld [smem:[#allocation3 + $0x17]]
    %s137 = smul.f32 %s125, 0.5
    %s138 = smul.f32 %s128, 0.5
    %s139 = sadd.f32 %s131, %s134
    %s140 = smul.f32 %s139, 0.5
    %s141 = smul.f32 %s126, 0.5
    %s142 = smul.f32 %s129, 0.5
    %s143 = sadd.f32 %s132, %s135
    %s144 = smul.f32 %s143, 0.5
    %s145 = smul.f32 %s130, 0.5
    %s146 = smul.f32 %s136, 0.5
    %v147 = vld [vmem:[#allocation7] sm:$0xff]
    %v148 = vstv %s115
    %v149 = vmul.f32 %v148, %v147
    %v150 = vstv %s116
    %v151 = vmul.f32 %v150, 0.0
    %v152 = vadd.f32 %v149, %v151
    %v153 = vstv %s118
    %v154 = vadd.f32 %v152, %v153
    %v155 = vtanh.pop %v154
    %v156 = vstv %s119
    %v157 = vmul.f32 %v156, %v147
    %v158 = vstv %s120
    %v159 = vmul.f32 %v158, 0.0
    %v160 = vadd.f32 %v157, %v159
    %v161 = vstv %s122
    %v162 = vadd.f32 %v160, %v161
    %v163 = vtanh.pop %v162
    %v164 = vstv %s105
    %v165 = vmul.f32 %v164, %v147
    %v166 = vstv %s111
    %v167 = vadd.f32 %v165, %v166
    %v168 = vadd.f32 %v155, 1.0
    %v169 = vstv %s123
    %v170 = vmul.f32 %v169, 0.0
    %v171 = vstv %s124
    %v172 = vadd.f32 %v170, %v171
    %v173 = vmul.f32 %v168, %v172
    %v174 = vadd.f32 %v167, %v173
    %v175 = vtanh.pop %v174
    %v176 = vadd.f32 %v163, 1.0
    %v177 = vsub.f32 0.0, %v175
    %v178 = vmul.f32 %v177, 0.5
    %v179 = vmul.f32 %v176, %v178
    %v180 = vadd.f32 %v175, %v179
    %181 = vst [vmem:[#allocation2] sm:$0xff] %v180
    %s182 = scalar_lea.vmem [#allocation7], 120
    %v183 = vld [vmem:[%s182] sm:$0xff]
    %v184 = vstv %s137
    %v185 = vmul.f32 %v184, %v183
    %v186 = vstv %s138
    %v187 = vmul.f32 %v186, 0.0
    %v188 = vadd.f32 %v185, %v187
    %v189 = vstv %s140
    %v190 = vadd.f32 %v188, %v189
    %v191 = vtanh.pop %v190
    %v192 = vstv %s141
    %v193 = vmul.f32 %v192, %v183
    %v194 = vstv %s142
    %v195 = vmul.f32 %v194, 0.0
    %v196 = vadd.f32 %v193, %v195
    %v197 = vstv %s144
    %v198 = vadd.f32 %v196, %v197
    %v199 = vtanh.pop %v198
    %v200 = vstv %s127
    %v201 = vmul.f32 %v200, %v183
    %v202 = vstv %s133
    %v203 = vadd.f32 %v201, %v202
    %v204 = vadd.f32 %v191, 1.0
    %v205 = vstv %s145
    %v206 = vmul.f32 %v205, 0.0
    %v207 = vstv %s146
    %v208 = vadd.f32 %v206, %v207
    %v209 = vmul.f32 %v204, %v208
    %v210 = vadd.f32 %v203, %v209
    %v211 = vtanh.pop %v210
    %v212 = vadd.f32 %v199, 1.0
    %v213 = vsub.f32 0.0, %v211
    %v214 = vmul.f32 %v213, 0.5
    %v215 = vmul.f32 %v212, %v214
    %v216 = vadd.f32 %v211, %v215
    %217 = vst [vmem:[#allocation2 + $0xf8] sm:$0xff] %v216
    %s218 = scalar_lea.vmem [#allocation7], 8
    %v219 = vld [vmem:[%s218] sm:$0xff]
    %v220 = vmul.f32 %v148, %v219
    %v221 = vmul.f32 %v150, %v180
    %v222 = vadd.f32 %v220, %v221
    %v223 = vadd.f32 %v222, %v153
    %v224 = vtanh.pop %v223
    %v225 = vmul.f32 %v156, %v219
    %v226 = vmul.f32 %v158, %v180
    %v227 = vadd.f32 %v225, %v226
    %v228 = vadd.f32 %v227, %v161
    %v229 = vtanh.pop %v228
    %v230 = vmul.f32 %v164, %v219
    %v231 = vadd.f32 %v230, %v166
    %v232 = vadd.f32 %v224, 1.0
    %v233 = vmul.f32 %v169, %v180
    %v234 = vadd.f32 %v233, %v171
    %v235 = vmul.f32 %v232, %v234
    %v236 = vadd.f32 %v231, %v235
    %v237 = vtanh.pop %v236
    %v238 = vadd.f32 %v229, 1.0
    %v239 = vsub.f32 %v180, %v237
    %v240 = vmul.f32 %v239, 0.5
    %v241 = vmul.f32 %v238, %v240
    %v242 = vadd.f32 %v237, %v241
    %243 = vst [vmem:[#allocation2 + $0x8] sm:$0xff] %v242
    %s244 = scalar_lea.vmem [#allocation7], 112
    %v245 = vld [vmem:[%s244] sm:$0xff]
    %v246 = vmul.f32 %v184, %v245
    %v247 = vmul.f32 %v186, %v216
    %v248 = vadd.f32 %v246, %v247
    %v249 = vadd.f32 %v248, %v189
    %v250 = vtanh.pop %v249
    %v251 = vmul.f32 %v192, %v245
    %v252 = vmul.f32 %v194, %v216
    %v253 = vadd.f32 %v251, %v252
    %v254 = vadd.f32 %v253, %v197
    %v255 = vtanh.pop %v254
    %v256 = vmul.f32 %v200, %v245
    %v257 = vadd.f32 %v256, %v202
    %v258 = vadd.f32 %v250, 1.0
    %v259 = vmul.f32 %v205, %v216
    %v260 = vadd.f32 %v259, %v207
    %v261 = vmul.f32 %v258, %v260
    %v262 = vadd.f32 %v257, %v261
    %v263 = vtanh.pop %v262
    %v264 = vadd.f32 %v255, 1.0
    %v265 = vsub.f32 %v216, %v263
    %v266 = vmul.f32 %v265, 0.5
    %v267 = vmul.f32 %v264, %v266
    %v268 = vadd.f32 %v263, %v267
    %269 = vst [vmem:[#allocation2 + $0xf0] sm:$0xff] %v268
    %s270 = scalar_lea.vmem [#allocation7], 16
    %v271 = vld [vmem:[%s270] sm:$0xff]
    %v272 = vmul.f32 %v148, %v271
    %v273 = vmul.f32 %v150, %v242
    %v274 = vadd.f32 %v272, %v273
    %v275 = vadd.f32 %v274, %v153
    %v276 = vtanh.pop %v275
    %v277 = vmul.f32 %v156, %v271
    %v278 = vmul.f32 %v158, %v242
    %v279 = vadd.f32 %v277, %v278
    %v280 = vadd.f32 %v279, %v161
    %v281 = vtanh.pop %v280
    %v282 = vmul.f32 %v164, %v271
    %v283 = vadd.f32 %v282, %v166
    %v284 = vadd.f32 %v276, 1.0
    %v285 = vmul.f32 %v169, %v242
    %v286 = vadd.f32 %v285, %v171
    %v287 = vmul.f32 %v284, %v286
    %v288 = vadd.f32 %v283, %v287
    %v289 = vtanh.pop %v288
    %v290 = vadd.f32 %v281, 1.0
    %v291 = vsub.f32 %v242, %v289
    %v292 = vmul.f32 %v291, 0.5
    %v293 = vmul.f32 %v290, %v292
    %v294 = vadd.f32 %v289, %v293
    %295 = vst [vmem:[#allocation2 + $0x10] sm:$0xff] %v294
    %s296 = scalar_lea.vmem [#allocation7], 104
    %v297 = vld [vmem:[%s296] sm:$0xff]
    %v298 = vmul.f32 %v184, %v297
    %v299 = vmul.f32 %v186, %v268
    %v300 = vadd.f32 %v298, %v299
    %v301 = vadd.f32 %v300, %v189
    %v302 = vtanh.pop %v301
    %v303 = vmul.f32 %v192, %v297
    %v304 = vmul.f32 %v194, %v268
    %v305 = vadd.f32 %v303, %v304
    %v306 = vadd.f32 %v305, %v197
    %v307 = vtanh.pop %v306
    %v308 = vmul.f32 %v200, %v297
    %v309 = vadd.f32 %v308, %v202
    %v310 = vadd.f32 %v302, 1.0
    %v311 = vmul.f32 %v205, %v268
    %v312 = vadd.f32 %v311, %v207
    %v313 = vmul.f32 %v310, %v312
    %v314 = vadd.f32 %v309, %v313
    %v315 = vtanh.pop %v314
    %v316 = vadd.f32 %v307, 1.0
    %v317 = vsub.f32 %v268, %v315
    %v318 = vmul.f32 %v317, 0.5
    %v319 = vmul.f32 %v316, %v318
    %v320 = vadd.f32 %v315, %v319
    %321 = vst [vmem:[#allocation2 + $0xe8] sm:$0xff] %v320
    %s322 = scalar_lea.vmem [#allocation7], 24
    %v323 = vld [vmem:[%s322] sm:$0xff]
    %v324 = vmul.f32 %v148, %v323
    %v325 = vmul.f32 %v150, %v294
    %v326 = vadd.f32 %v324, %v325
    %v327 = vadd.f32 %v326, %v153
    %v328 = vtanh.pop %v327
    %v329 = vmul.f32 %v156, %v323
    %v330 = vmul.f32 %v158, %v294
    %v331 = vadd.f32 %v329, %v330
    %v332 = vadd.f32 %v331, %v161
    %v333 = vtanh.pop %v332
    %v334 = vmul.f32 %v164, %v323
    %v335 = vadd.f32 %v334, %v166
    %v336 = vadd.f32 %v328, 1.0
    %v337 = vmul.f32 %v169, %v294
    %v338 = vadd.f32 %v337, %v171
    %v339 = vmul.f32 %v336, %v338
    %v340 = vadd.f32 %v335, %v339
    %v341 = vtanh.pop %v340
    %v342 = vadd.f32 %v333, 1.0
    %v343 = vsub.f32 %v294, %v341
    %v344 = vmul.f32 %v343, 0.5
    %v345 = vmul.f32 %v342, %v344
    %v346 = vadd.f32 %v341, %v345
    %347 = vst [vmem:[#allocation2 + $0x18] sm:$0xff] %v346
    %s348 = scalar_lea.vmem [#allocation7], 96
    %v349 = vld [vmem:[%s348] sm:$0xff]
    %v350 = vmul.f32 %v184, %v349
    %v351 = vmul.f32 %v186, %v320
    %v352 = vadd.f32 %v350, %v351
    %v353 = vadd.f32 %v352, %v189
    %v354 = vtanh.pop %v353
    %v355 = vmul.f32 %v192, %v349
    %v356 = vmul.f32 %v194, %v320
    %v357 = vadd.f32 %v355, %v356
    %v358 = vadd.f32 %v357, %v197
    %v359 = vtanh.pop %v358
    %v360 = vmul.f32 %v200, %v349
    %v361 = vadd.f32 %v360, %v202
    %v362 = vadd.f32 %v354, 1.0
    %v363 = vmul.f32 %v205, %v320
    %v364 = vadd.f32 %v363, %v207
    %v365 = vmul.f32 %v362, %v364
    %v366 = vadd.f32 %v361, %v365
    %v367 = vtanh.pop %v366
    %v368 = vadd.f32 %v359, 1.0
    %v369 = vsub.f32 %v320, %v367
    %v370 = vmul.f32 %v369, 0.5
    %v371 = vmul.f32 %v368, %v370
    %v372 = vadd.f32 %v367, %v371
    %373 = vst [vmem:[#allocation2 + $0xe0] sm:$0xff] %v372
    %s374 = scalar_lea.vmem [#allocation7], 32
    %v375 = vld [vmem:[%s374] sm:$0xff]
    %v376 = vmul.f32 %v148, %v375
    %v377 = vmul.f32 %v150, %v346
    %v378 = vadd.f32 %v376, %v377
    %v379 = vadd.f32 %v378, %v153
    %v380 = vtanh.pop %v379
    %v381 = vmul.f32 %v156, %v375
    %v382 = vmul.f32 %v158, %v346
    %v383 = vadd.f32 %v381, %v382
    %v384 = vadd.f32 %v383, %v161
    %v385 = vtanh.pop %v384
    %v386 = vmul.f32 %v164, %v375
    %v387 = vadd.f32 %v386, %v166
    %v388 = vadd.f32 %v380, 1.0
    %v389 = vmul.f32 %v169, %v346
    %v390 = vadd.f32 %v389, %v171
    %v391 = vmul.f32 %v388, %v390
    %v392 = vadd.f32 %v387, %v391
    %v393 = vtanh.pop %v392
    %v394 = vadd.f32 %v385, 1.0
    %v395 = vsub.f32 %v346, %v393
    %v396 = vmul.f32 %v395, 0.5
    %v397 = vmul.f32 %v394, %v396
    %v398 = vadd.f32 %v393, %v397
    %399 = vst [vmem:[#allocation2 + $0x20] sm:$0xff] %v398
    %s400 = scalar_lea.vmem [#allocation7], 88
    %v401 = vld [vmem:[%s400] sm:$0xff]
    %v402 = vmul.f32 %v184, %v401
    %v403 = vmul.f32 %v186, %v372
    %v404 = vadd.f32 %v402, %v403
    %v405 = vadd.f32 %v404, %v189
    %v406 = vtanh.pop %v405
    %v407 = vmul.f32 %v192, %v401
    %v408 = vmul.f32 %v194, %v372
    %v409 = vadd.f32 %v407, %v408
    %v410 = vadd.f32 %v409, %v197
    %v411 = vtanh.pop %v410
    %v412 = vmul.f32 %v200, %v401
    %v413 = vadd.f32 %v412, %v202
    %v414 = vadd.f32 %v406, 1.0
    %v415 = vmul.f32 %v205, %v372
    %v416 = vadd.f32 %v415, %v207
    %v417 = vmul.f32 %v414, %v416
    %v418 = vadd.f32 %v413, %v417
    %v419 = vtanh.pop %v418
    %v420 = vadd.f32 %v411, 1.0
    %v421 = vsub.f32 %v372, %v419
    %v422 = vmul.f32 %v421, 0.5
    %v423 = vmul.f32 %v420, %v422
    %v424 = vadd.f32 %v419, %v423
    %425 = vst [vmem:[#allocation2 + $0xd8] sm:$0xff] %v424
    %s426 = scalar_lea.vmem [#allocation7], 40
    %v427 = vld [vmem:[%s426] sm:$0xff]
    %v428 = vmul.f32 %v148, %v427
    %v429 = vmul.f32 %v150, %v398
    %v430 = vadd.f32 %v428, %v429
    %v431 = vadd.f32 %v430, %v153
    %v432 = vtanh.pop %v431
    %v433 = vmul.f32 %v156, %v427
    %v434 = vmul.f32 %v158, %v398
    %v435 = vadd.f32 %v433, %v434
    %v436 = vadd.f32 %v435, %v161
    %v437 = vtanh.pop %v436
    %v438 = vmul.f32 %v164, %v427
    %v439 = vadd.f32 %v438, %v166
    %v440 = vadd.f32 %v432, 1.0
    %v441 = vmul.f32 %v169, %v398
    %v442 = vadd.f32 %v441, %v171
    %v443 = vmul.f32 %v440, %v442
    %v444 = vadd.f32 %v439, %v443
    %v445 = vtanh.pop %v444
    %v446 = vadd.f32 %v437, 1.0
    %v447 = vsub.f32 %v398, %v445
    %v448 = vmul.f32 %v447, 0.5
    %v449 = vmul.f32 %v446, %v448
    %v450 = vadd.f32 %v445, %v449
    %451 = vst [vmem:[#allocation2 + $0x28] sm:$0xff] %v450
    %s452 = scalar_lea.vmem [#allocation7], 80
    %v453 = vld [vmem:[%s452] sm:$0xff]
    %v454 = vmul.f32 %v184, %v453
    %v455 = vmul.f32 %v186, %v424
    %v456 = vadd.f32 %v454, %v455
    %v457 = vadd.f32 %v456, %v189
    %v458 = vtanh.pop %v457
    %v459 = vmul.f32 %v192, %v453
    %v460 = vmul.f32 %v194, %v424
    %v461 = vadd.f32 %v459, %v460
    %v462 = vadd.f32 %v461, %v197
    %v463 = vtanh.pop %v462
    %v464 = vmul.f32 %v200, %v453
    %v465 = vadd.f32 %v464, %v202
    %v466 = vadd.f32 %v458, 1.0
    %v467 = vmul.f32 %v205, %v424
    %v468 = vadd.f32 %v467, %v207
    %v469 = vmul.f32 %v466, %v468
    %v470 = vadd.f32 %v465, %v469
    %v471 = vtanh.pop %v470
    %v472 = vadd.f32 %v463, 1.0
    %v473 = vsub.f32 %v424, %v471
    %v474 = vmul.f32 %v473, 0.5
    %v475 = vmul.f32 %v472, %v474
    %v476 = vadd.f32 %v471, %v475
    %477 = vst [vmem:[#allocation2 + $0xd0] sm:$0xff] %v476
    %s478 = scalar_lea.vmem [#allocation7], 48
    %v479 = vld [vmem:[%s478] sm:$0xff]
    %v480 = vmul.f32 %v148, %v479
    %v481 = vmul.f32 %v150, %v450
    %v482 = vadd.f32 %v480, %v481
    %v483 = vadd.f32 %v482, %v153
    %v484 = vtanh.pop %v483
    %v485 = vmul.f32 %v156, %v479
    %v486 = vmul.f32 %v158, %v450
    %v487 = vadd.f32 %v485, %v486
    %v488 = vadd.f32 %v487, %v161
    %v489 = vtanh.pop %v488
    %v490 = vmul.f32 %v164, %v479
    %v491 = vadd.f32 %v490, %v166
    %v492 = vadd.f32 %v484, 1.0
    %v493 = vmul.f32 %v169, %v450
    %v494 = vadd.f32 %v493, %v171
    %v495 = vmul.f32 %v492, %v494
    %v496 = vadd.f32 %v491, %v495
    %v497 = vtanh.pop %v496
    %v498 = vadd.f32 %v489, 1.0
    %v499 = vsub.f32 %v450, %v497
    %v500 = vmul.f32 %v499, 0.5
    %v501 = vmul.f32 %v498, %v500
    %v502 = vadd.f32 %v497, %v501
    %503 = vst [vmem:[#allocation2 + $0x30] sm:$0xff] %v502
    %s504 = scalar_lea.vmem [#allocation7], 72
    %v505 = vld [vmem:[%s504] sm:$0xff]
    %v506 = vmul.f32 %v184, %v505
    %v507 = vmul.f32 %v186, %v476
    %v508 = vadd.f32 %v506, %v507
    %v509 = vadd.f32 %v508, %v189
    %v510 = vtanh.pop %v509
    %v511 = vmul.f32 %v192, %v505
    %v512 = vmul.f32 %v194, %v476
    %v513 = vadd.f32 %v511, %v512
    %v514 = vadd.f32 %v513, %v197
    %v515 = vtanh.pop %v514
    %v516 = vmul.f32 %v200, %v505
    %v517 = vadd.f32 %v516, %v202
    %v518 = vadd.f32 %v510, 1.0
    %v519 = vmul.f32 %v205, %v476
    %v520 = vadd.f32 %v519, %v207
    %v521 = vmul.f32 %v518, %v520
    %v522 = vadd.f32 %v517, %v521
    %v523 = vtanh.pop %v522
    %v524 = vadd.f32 %v515, 1.0
    %v525 = vsub.f32 %v476, %v523
    %v526 = vmul.f32 %v525, 0.5
    %v527 = vmul.f32 %v524, %v526
    %v528 = vadd.f32 %v523, %v527
    %529 = vst [vmem:[#allocation2 + $0xc8] sm:$0xff] %v528
    %s530 = scalar_lea.vmem [#allocation7], 56
    %v531 = vld [vmem:[%s530] sm:$0xff]
    %v532 = vmul.f32 %v148, %v531
    %v533 = vmul.f32 %v150, %v502
    %v534 = vadd.f32 %v532, %v533
    %v535 = vadd.f32 %v534, %v153
    %v536 = vtanh.pop %v535
    %v537 = vmul.f32 %v156, %v531
    %v538 = vmul.f32 %v158, %v502
    %v539 = vadd.f32 %v537, %v538
    %v540 = vadd.f32 %v539, %v161
    %v541 = vtanh.pop %v540
    %v542 = vmul.f32 %v164, %v531
    %v543 = vadd.f32 %v542, %v166
    %v544 = vadd.f32 %v536, 1.0
    %v545 = vmul.f32 %v169, %v502
    %v546 = vadd.f32 %v545, %v171
    %v547 = vmul.f32 %v544, %v546
    %v548 = vadd.f32 %v543, %v547
    %v549 = vtanh.pop %v548
    %v550 = vadd.f32 %v541, 1.0
    %v551 = vsub.f32 %v502, %v549
    %v552 = vmul.f32 %v551, 0.5
    %v553 = vmul.f32 %v550, %v552
    %v554 = vadd.f32 %v549, %v553
    %555 = vst [vmem:[#allocation2 + $0x38] sm:$0xff] %v554
    %s556 = scalar_lea.vmem [#allocation7], 64
    %v557 = vld [vmem:[%s556] sm:$0xff]
    %v558 = vmul.f32 %v184, %v557
    %v559 = vmul.f32 %v186, %v528
    %v560 = vadd.f32 %v558, %v559
    %v561 = vadd.f32 %v560, %v189
    %v562 = vtanh.pop %v561
    %v563 = vmul.f32 %v192, %v557
    %v564 = vmul.f32 %v194, %v528
    %v565 = vadd.f32 %v563, %v564
    %v566 = vadd.f32 %v565, %v197
    %v567 = vtanh.pop %v566
    %v568 = vmul.f32 %v200, %v557
    %v569 = vadd.f32 %v568, %v202
    %v570 = vadd.f32 %v562, 1.0
    %v571 = vmul.f32 %v205, %v528
    %v572 = vadd.f32 %v571, %v207
    %v573 = vmul.f32 %v570, %v572
    %v574 = vadd.f32 %v569, %v573
    %v575 = vtanh.pop %v574
    %v576 = vadd.f32 %v567, 1.0
    %v577 = vsub.f32 %v528, %v575
    %v578 = vmul.f32 %v577, 0.5
    %v579 = vmul.f32 %v576, %v578
    %v580 = vadd.f32 %v575, %v579
    %581 = vst [vmem:[#allocation2 + $0xc0] sm:$0xff] %v580
    %v582 = vld [vmem:[%s556] sm:$0xff]
    %v583 = vmul.f32 %v148, %v582
    %v584 = vmul.f32 %v150, %v554
    %v585 = vadd.f32 %v583, %v584
    %v586 = vadd.f32 %v585, %v153
    %v587 = vtanh.pop %v586
    %v588 = vmul.f32 %v156, %v582
    %v589 = vmul.f32 %v158, %v554
    %v590 = vadd.f32 %v588, %v589
    %v591 = vadd.f32 %v590, %v161
    %v592 = vtanh.pop %v591
    %v593 = vmul.f32 %v164, %v582
    %v594 = vadd.f32 %v593, %v166
    %v595 = vadd.f32 %v587, 1.0
    %v596 = vmul.f32 %v169, %v554
    %v597 = vadd.f32 %v596, %v171
    %v598 = vmul.f32 %v595, %v597
    %v599 = vadd.f32 %v594, %v598
    %v600 = vtanh.pop %v599
    %v601 = vadd.f32 %v592, 1.0
    %v602 = vsub.f32 %v554, %v600
    %v603 = vmul.f32 %v602, 0.5
    %v604 = vmul.f32 %v601, %v603
    %v605 = vadd.f32 %v600, %v604
    %606 = vst [vmem:[#allocation2 + $0x40] sm:$0xff] %v605
    %v607 = vld [vmem:[%s530] sm:$0xff]
    %v608 = vmul.f32 %v184, %v607
    %v609 = vmul.f32 %v186, %v580
    %v610 = vadd.f32 %v608, %v609
    %v611 = vadd.f32 %v610, %v189
    %v612 = vtanh.pop %v611
    %v613 = vmul.f32 %v192, %v607
    %v614 = vmul.f32 %v194, %v580
    %v615 = vadd.f32 %v613, %v614
    %v616 = vadd.f32 %v615, %v197
    %v617 = vtanh.pop %v616
    %v618 = vmul.f32 %v200, %v607
    %v619 = vadd.f32 %v618, %v202
    %v620 = vadd.f32 %v612, 1.0
    %v621 = vmul.f32 %v205, %v580
    %v622 = vadd.f32 %v621, %v207
    %v623 = vmul.f32 %v620, %v622
    %v624 = vadd.f32 %v619, %v623
    %v625 = vtanh.pop %v624
    %v626 = vadd.f32 %v617, 1.0
    %v627 = vsub.f32 %v580, %v625
    %v628 = vmul.f32 %v627, 0.5
    %v629 = vmul.f32 %v626, %v628
    %v630 = vadd.f32 %v625, %v629
    %631 = vst [vmem:[#allocation2 + $0xb8] sm:$0xff] %v630
    %v632 = vld [vmem:[%s504] sm:$0xff]
    %v633 = vmul.f32 %v148, %v632
    %v634 = vmul.f32 %v150, %v605
    %v635 = vadd.f32 %v633, %v634
    %v636 = vadd.f32 %v635, %v153
    %v637 = vtanh.pop %v636
    %v638 = vmul.f32 %v156, %v632
    %v639 = vmul.f32 %v158, %v605
    %v640 = vadd.f32 %v638, %v639
    %v641 = vadd.f32 %v640, %v161
    %v642 = vtanh.pop %v641
    %v643 = vmul.f32 %v164, %v632
    %v644 = vadd.f32 %v643, %v166
    %v645 = vadd.f32 %v637, 1.0
    %v646 = vmul.f32 %v169, %v605
    %v647 = vadd.f32 %v646, %v171
    %v648 = vmul.f32 %v645, %v647
    %v649 = vadd.f32 %v644, %v648
    %v650 = vtanh.pop %v649
    %v651 = vadd.f32 %v642, 1.0
    %v652 = vsub.f32 %v605, %v650
    %v653 = vmul.f32 %v652, 0.5
    %v654 = vmul.f32 %v651, %v653
    %v655 = vadd.f32 %v650, %v654
    %656 = vst [vmem:[#allocation2 + $0x48] sm:$0xff] %v655
    %v657 = vld [vmem:[%s478] sm:$0xff]
    %v658 = vmul.f32 %v184, %v657
    %v659 = vmul.f32 %v186, %v630
    %v660 = vadd.f32 %v658, %v659
    %v661 = vadd.f32 %v660, %v189
    %v662 = vtanh.pop %v661
    %v663 = vmul.f32 %v192, %v657
    %v664 = vmul.f32 %v194, %v630
    %v665 = vadd.f32 %v663, %v664
    %v666 = vadd.f32 %v665, %v197
    %v667 = vtanh.pop %v666
    %v668 = vmul.f32 %v200, %v657
    %v669 = vadd.f32 %v668, %v202
    %v670 = vadd.f32 %v662, 1.0
    %v671 = vmul.f32 %v205, %v630
    %v672 = vadd.f32 %v671, %v207
    %v673 = vmul.f32 %v670, %v672
    %v674 = vadd.f32 %v669, %v673
    %v675 = vtanh.pop %v674
    %v676 = vadd.f32 %v667, 1.0
    %v677 = vsub.f32 %v630, %v675
    %v678 = vmul.f32 %v677, 0.5
    %v679 = vmul.f32 %v676, %v678
    %v680 = vadd.f32 %v675, %v679
    %681 = vst [vmem:[#allocation2 + $0xb0] sm:$0xff] %v680
    %v682 = vld [vmem:[%s452] sm:$0xff]
    %v683 = vmul.f32 %v148, %v682
    %v684 = vmul.f32 %v150, %v655
    %v685 = vadd.f32 %v683, %v684
    %v686 = vadd.f32 %v685, %v153
    %v687 = vtanh.pop %v686
    %v688 = vmul.f32 %v156, %v682
    %v689 = vmul.f32 %v158, %v655
    %v690 = vadd.f32 %v688, %v689
    %v691 = vadd.f32 %v690, %v161
    %v692 = vtanh.pop %v691
    %v693 = vmul.f32 %v164, %v682
    %v694 = vadd.f32 %v693, %v166
    %v695 = vadd.f32 %v687, 1.0
    %v696 = vmul.f32 %v169, %v655
    %v697 = vadd.f32 %v696, %v171
    %v698 = vmul.f32 %v695, %v697
    %v699 = vadd.f32 %v694, %v698
    %v700 = vtanh.pop %v699
    %v701 = vadd.f32 %v692, 1.0
    %v702 = vsub.f32 %v655, %v700
    %v703 = vmul.f32 %v702, 0.5
    %v704 = vmul.f32 %v701, %v703
    %v705 = vadd.f32 %v700, %v704
    %706 = vst [vmem:[#allocation2 + $0x50] sm:$0xff] %v705
    %v707 = vld [vmem:[%s426] sm:$0xff]
    %v708 = vmul.f32 %v184, %v707
    %v709 = vmul.f32 %v186, %v680
    %v710 = vadd.f32 %v708, %v709
    %v711 = vadd.f32 %v710, %v189
    %v712 = vtanh.pop %v711
    %v713 = vmul.f32 %v192, %v707
    %v714 = vmul.f32 %v194, %v680
    %v715 = vadd.f32 %v713, %v714
    %v716 = vadd.f32 %v715, %v197
    %v717 = vtanh.pop %v716
    %v718 = vmul.f32 %v200, %v707
    %v719 = vadd.f32 %v718, %v202
    %v720 = vadd.f32 %v712, 1.0
    %v721 = vmul.f32 %v205, %v680
    %v722 = vadd.f32 %v721, %v207
    %v723 = vmul.f32 %v720, %v722
    %v724 = vadd.f32 %v719, %v723
    %v725 = vtanh.pop %v724
    %v726 = vadd.f32 %v717, 1.0
    %v727 = vsub.f32 %v680, %v725
    %v728 = vmul.f32 %v727, 0.5
    %v729 = vmul.f32 %v726, %v728
    %v730 = vadd.f32 %v725, %v729
    %731 = vst [vmem:[#allocation2 + $0xa8] sm:$0xff] %v730
    %v732 = vld [vmem:[%s400] sm:$0xff]
    %v733 = vmul.f32 %v148, %v732
    %v734 = vmul.f32 %v150, %v705
    %v735 = vadd.f32 %v733, %v734
    %v736 = vadd.f32 %v735, %v153
    %v737 = vtanh.pop %v736
    %v738 = vmul.f32 %v156, %v732
    %v739 = vmul.f32 %v158, %v705
    %v740 = vadd.f32 %v738, %v739
    %v741 = vadd.f32 %v740, %v161
    %v742 = vtanh.pop %v741
    %v743 = vmul.f32 %v164, %v732
    %v744 = vadd.f32 %v743, %v166
    %v745 = vadd.f32 %v737, 1.0
    %v746 = vmul.f32 %v169, %v705
    %v747 = vadd.f32 %v746, %v171
    %v748 = vmul.f32 %v745, %v747
    %v749 = vadd.f32 %v744, %v748
    %v750 = vtanh.pop %v749
    %v751 = vadd.f32 %v742, 1.0
    %v752 = vsub.f32 %v705, %v750
    %v753 = vmul.f32 %v752, 0.5
    %v754 = vmul.f32 %v751, %v753
    %v755 = vadd.f32 %v750, %v754
    %756 = vst [vmem:[#allocation2 + $0x58] sm:$0xff] %v755
    %v757 = vld [vmem:[%s374] sm:$0xff]
    %v758 = vmul.f32 %v184, %v757
    %v759 = vmul.f32 %v186, %v730
    %v760 = vadd.f32 %v758, %v759
    %v761 = vadd.f32 %v760, %v189
    %v762 = vtanh.pop %v761
    %v763 = vmul.f32 %v192, %v757
    %v764 = vmul.f32 %v194, %v730
    %v765 = vadd.f32 %v763, %v764
    %v766 = vadd.f32 %v765, %v197
    %v767 = vtanh.pop %v766
    %v768 = vmul.f32 %v200, %v757
    %v769 = vadd.f32 %v768, %v202
    %v770 = vadd.f32 %v762, 1.0
    %v771 = vmul.f32 %v205, %v730
    %v772 = vadd.f32 %v771, %v207
    %v773 = vmul.f32 %v770, %v772
    %v774 = vadd.f32 %v769, %v773
    %v775 = vtanh.pop %v774
    %v776 = vadd.f32 %v767, 1.0
    %v777 = vsub.f32 %v730, %v775
    %v778 = vmul.f32 %v777, 0.5
    %v779 = vmul.f32 %v776, %v778
    %v780 = vadd.f32 %v775, %v779
    %781 = vst [vmem:[#allocation2 + $0xa0] sm:$0xff] %v780
    %v782 = vld [vmem:[%s348] sm:$0xff]
    %v783 = vmul.f32 %v148, %v782
    %v784 = vmul.f32 %v150, %v755
    %v785 = vadd.f32 %v783, %v784
    %v786 = vadd.f32 %v785, %v153
    %v787 = vtanh.pop %v786
    %v788 = vmul.f32 %v156, %v782
    %v789 = vmul.f32 %v158, %v755
    %v790 = vadd.f32 %v788, %v789
    %v791 = vadd.f32 %v790, %v161
    %v792 = vtanh.pop %v791
    %v793 = vmul.f32 %v164, %v782
    %v794 = vadd.f32 %v793, %v166
    %v795 = vadd.f32 %v787, 1.0
    %v796 = vmul.f32 %v169, %v755
    %v797 = vadd.f32 %v796, %v171
    %v798 = vmul.f32 %v795, %v797
    %v799 = vadd.f32 %v794, %v798
    %v800 = vtanh.pop %v799
    %v801 = vadd.f32 %v792, 1.0
    %v802 = vsub.f32 %v755, %v800
    %v803 = vmul.f32 %v802, 0.5
    %v804 = vmul.f32 %v801, %v803
    %v805 = vadd.f32 %v800, %v804
    %806 = vst [vmem:[#allocation2 + $0x60] sm:$0xff] %v805
    %v807 = vld [vmem:[%s322] sm:$0xff]
    %v808 = vmul.f32 %v184, %v807
    %v809 = vmul.f32 %v186, %v780
    %v810 = vadd.f32 %v808, %v809
    %v811 = vadd.f32 %v810, %v189
    %v812 = vtanh.pop %v811
    %v813 = vmul.f32 %v192, %v807
    %v814 = vmul.f32 %v194, %v780
    %v815 = vadd.f32 %v813, %v814
    %v816 = vadd.f32 %v815, %v197
    %v817 = vtanh.pop %v816
    %v818 = vmul.f32 %v200, %v807
    %v819 = vadd.f32 %v818, %v202
    %v820 = vadd.f32 %v812, 1.0
    %v821 = vmul.f32 %v205, %v780
    %v822 = vadd.f32 %v821, %v207
    %v823 = vmul.f32 %v820, %v822
    %v824 = vadd.f32 %v819, %v823
    %v825 = vtanh.pop %v824
    %v826 = vadd.f32 %v817, 1.0
    %v827 = vsub.f32 %v780, %v825
    %v828 = vmul.f32 %v827, 0.5
    %v829 = vmul.f32 %v826, %v828
    %v830 = vadd.f32 %v825, %v829
    %831 = vst [vmem:[#allocation2 + $0x98] sm:$0xff] %v830
    %v832 = vld [vmem:[%s296] sm:$0xff]
    %v833 = vmul.f32 %v148, %v832
    %v834 = vmul.f32 %v150, %v805
    %v835 = vadd.f32 %v833, %v834
    %v836 = vadd.f32 %v835, %v153
    %v837 = vtanh.pop %v836
    %v838 = vmul.f32 %v156, %v832
    %v839 = vmul.f32 %v158, %v805
    %v840 = vadd.f32 %v838, %v839
    %v841 = vadd.f32 %v840, %v161
    %v842 = vtanh.pop %v841
    %v843 = vmul.f32 %v164, %v832
    %v844 = vadd.f32 %v843, %v166
    %v845 = vadd.f32 %v837, 1.0
    %v846 = vmul.f32 %v169, %v805
    %v847 = vadd.f32 %v846, %v171
    %v848 = vmul.f32 %v845, %v847
    %v849 = vadd.f32 %v844, %v848
    %v850 = vtanh.pop %v849
    %v851 = vadd.f32 %v842, 1.0
    %v852 = vsub.f32 %v805, %v850
    %v853 = vmul.f32 %v852, 0.5
    %v854 = vmul.f32 %v851, %v853
    %v855 = vadd.f32 %v850, %v854
    %856 = vst [vmem:[#allocation2 + $0x68] sm:$0xff] %v855
    %v857 = vld [vmem:[%s270] sm:$0xff]
    %v858 = vmul.f32 %v184, %v857
    %v859 = vmul.f32 %v186, %v830
    %v860 = vadd.f32 %v858, %v859
    %v861 = vadd.f32 %v860, %v189
    %v862 = vtanh.pop %v861
    %v863 = vmul.f32 %v192, %v857
    %v864 = vmul.f32 %v194, %v830
    %v865 = vadd.f32 %v863, %v864
    %v866 = vadd.f32 %v865, %v197
    %v867 = vtanh.pop %v866
    %v868 = vmul.f32 %v200, %v857
    %v869 = vadd.f32 %v868, %v202
    %v870 = vadd.f32 %v862, 1.0
    %v871 = vmul.f32 %v205, %v830
    %v872 = vadd.f32 %v871, %v207
    %v873 = vmul.f32 %v870, %v872
    %v874 = vadd.f32 %v869, %v873
    %v875 = vtanh.pop %v874
    %v876 = vadd.f32 %v867, 1.0
    %v877 = vsub.f32 %v830, %v875
    %v878 = vmul.f32 %v877, 0.5
    %v879 = vmul.f32 %v876, %v878
    %v880 = vadd.f32 %v875, %v879
    %881 = vst [vmem:[#allocation2 + $0x90] sm:$0xff] %v880
    %v882 = vld [vmem:[%s244] sm:$0xff]
    %v883 = vmul.f32 %v148, %v882
    %v884 = vmul.f32 %v150, %v855
    %v885 = vadd.f32 %v883, %v884
    %v886 = vadd.f32 %v885, %v153
    %v887 = vtanh.pop %v886
    %v888 = vmul.f32 %v156, %v882
    %v889 = vmul.f32 %v158, %v855
    %v890 = vadd.f32 %v888, %v889
    %v891 = vadd.f32 %v890, %v161
    %v892 = vtanh.pop %v891
    %v893 = vmul.f32 %v164, %v882
    %v894 = vadd.f32 %v893, %v166
    %v895 = vadd.f32 %v887, 1.0
    %v896 = vmul.f32 %v169, %v855
    %v897 = vadd.f32 %v896, %v171
    %v898 = vmul.f32 %v895, %v897
    %v899 = vadd.f32 %v894, %v898
    %v900 = vtanh.pop %v899
    %v901 = vadd.f32 %v892, 1.0
    %v902 = vsub.f32 %v855, %v900
    %v903 = vmul.f32 %v902, 0.5
    %v904 = vmul.f32 %v901, %v903
    %v905 = vadd.f32 %v900, %v904
    %906 = vst [vmem:[#allocation2 + $0x70] sm:$0xff] %v905
    %v907 = vld [vmem:[%s218] sm:$0xff]
    %v908 = vmul.f32 %v184, %v907
    %v909 = vmul.f32 %v186, %v880
    %v910 = vadd.f32 %v908, %v909
    %v911 = vadd.f32 %v910, %v189
    %v912 = vtanh.pop %v911
    %v913 = vmul.f32 %v192, %v907
    %v914 = vmul.f32 %v194, %v880
    %v915 = vadd.f32 %v913, %v914
    %v916 = vadd.f32 %v915, %v197
    %v917 = vtanh.pop %v916
    %v918 = vmul.f32 %v200, %v907
    %v919 = vadd.f32 %v918, %v202
    %v920 = vadd.f32 %v912, 1.0
    %v921 = vmul.f32 %v205, %v880
    %v922 = vadd.f32 %v921, %v207
    %v923 = vmul.f32 %v920, %v922
    %v924 = vadd.f32 %v919, %v923
    %v925 = vtanh.pop %v924
    %v926 = vadd.f32 %v917, 1.0
    %v927 = vsub.f32 %v880, %v925
    %v928 = vmul.f32 %v927, 0.5
    %v929 = vmul.f32 %v926, %v928
    %v930 = vadd.f32 %v925, %v929
    %931 = vst [vmem:[#allocation2 + $0x88] sm:$0xff] %v930
    %v932 = vld [vmem:[%s182] sm:$0xff]
    %v933 = vmul.f32 %v148, %v932
    %v934 = vmul.f32 %v150, %v905
    %v935 = vadd.f32 %v933, %v934
    %v936 = vadd.f32 %v935, %v153
    %v937 = vtanh.pop %v936
    %v938 = vmul.f32 %v156, %v932
    %v939 = vmul.f32 %v158, %v905
    %v940 = vadd.f32 %v938, %v939
    %v941 = vadd.f32 %v940, %v161
    %v942 = vtanh.pop %v941
    %v943 = vmul.f32 %v164, %v932
    %v944 = vadd.f32 %v943, %v166
    %v945 = vadd.f32 %v937, 1.0
    %v946 = vmul.f32 %v169, %v905
    %v947 = vadd.f32 %v946, %v171
    %v948 = vmul.f32 %v945, %v947
    %v949 = vadd.f32 %v944, %v948
    %v950 = vtanh.pop %v949
    %v951 = vadd.f32 %v942, 1.0
    %v952 = vsub.f32 %v905, %v950
    %v953 = vmul.f32 %v952, 0.5
    %v954 = vmul.f32 %v951, %v953
    %v955 = vadd.f32 %v950, %v954
    %956 = vst [vmem:[#allocation2 + $0x78] sm:$0xff] %v955
    %v957 = vld [vmem:[#allocation7] sm:$0xff]
    %v958 = vmul.f32 %v184, %v957
    %v959 = vmul.f32 %v186, %v930
    %v960 = vadd.f32 %v958, %v959
    %v961 = vadd.f32 %v960, %v189
    %v962 = vtanh.pop %v961
    %v963 = vmul.f32 %v192, %v957
    %v964 = vmul.f32 %v194, %v930
    %v965 = vadd.f32 %v963, %v964
    %v966 = vadd.f32 %v965, %v197
    %v967 = vtanh.pop %v966
    %v968 = vmul.f32 %v200, %v957
    %v969 = vadd.f32 %v968, %v202
    %v970 = vadd.f32 %v962, 1.0
    %v971 = vmul.f32 %v205, %v930
    %v972 = vadd.f32 %v971, %v207
    %v973 = vmul.f32 %v970, %v972
    %v974 = vadd.f32 %v969, %v973
    %v975 = vtanh.pop %v974
    %v976 = vadd.f32 %v967, 1.0
    %v977 = vsub.f32 %v930, %v975
    %v978 = vmul.f32 %v977, 0.5
    %v979 = vmul.f32 %v976, %v978
    %v980 = vadd.f32 %v975, %v979
    %981 = vst [vmem:[#allocation2 + $0x80] sm:$0xff] %v980
    %v982 = vld [vmem:[#allocation2] sm:$0xff]
    %v983 = vld [vmem:[#allocation2 + $0x8] sm:$0xff]
    %v984 = vld [vmem:[#allocation2 + $0x10] sm:$0xff]
    %v985 = vld [vmem:[#allocation2 + $0x18] sm:$0xff]
    %v986 = vld [vmem:[#allocation2 + $0x20] sm:$0xff]
    %v987 = vld [vmem:[#allocation2 + $0x28] sm:$0xff]
    %v988 = vld [vmem:[#allocation2 + $0x30] sm:$0xff]
    %v989 = vld [vmem:[#allocation2 + $0x38] sm:$0xff]
    %v990 = vld [vmem:[#allocation2 + $0x40] sm:$0xff]
    %v991 = vld [vmem:[#allocation2 + $0x48] sm:$0xff]
    %v992 = vld [vmem:[#allocation2 + $0x50] sm:$0xff]
    %v993 = vld [vmem:[#allocation2 + $0x58] sm:$0xff]
    %v994 = vld [vmem:[#allocation2 + $0x60] sm:$0xff]
    %v995 = vld [vmem:[#allocation2 + $0x68] sm:$0xff]
    %v996 = vld [vmem:[#allocation2 + $0x70] sm:$0xff]
    %v997 = vld [vmem:[#allocation2 + $0x78] sm:$0xff]
    %v998 = vld [vmem:[#allocation2 + $0x80] sm:$0xff]
    %v999 = vld [vmem:[#allocation2 + $0x88] sm:$0xff]
    %v1000 = vld [vmem:[#allocation2 + $0x90] sm:$0xff]
    %v1001 = vld [vmem:[#allocation2 + $0x98] sm:$0xff]
    %v1002 = vld [vmem:[#allocation2 + $0xa0] sm:$0xff]
    %v1003 = vld [vmem:[#allocation2 + $0xa8] sm:$0xff]
    %v1004 = vld [vmem:[#allocation2 + $0xb0] sm:$0xff]
    %v1005 = vld [vmem:[#allocation2 + $0xb8] sm:$0xff]
    %v1006 = vld [vmem:[#allocation2 + $0xc0] sm:$0xff]
    %v1007 = vld [vmem:[#allocation2 + $0xc8] sm:$0xff]
    %v1008 = vld [vmem:[#allocation2 + $0xd0] sm:$0xff]
    %v1009 = vld [vmem:[#allocation2 + $0xd8] sm:$0xff]
    %v1010 = vld [vmem:[#allocation2 + $0xe0] sm:$0xff]
    %v1011 = vld [vmem:[#allocation2 + $0xe8] sm:$0xff]
    %v1012 = vld [vmem:[#allocation2 + $0xf0] sm:$0xff]
    %v1013 = vld [vmem:[#allocation2 + $0xf8] sm:$0xff]
    %v1014 = vld [vmem:[#allocation8] sm:$0xff]
    %v1015 = vld [vmem:[#allocation8 + $0x8] sm:$0xff]
    %v1016 = vld [vmem:[#allocation8 + $0x10] sm:$0xff]
    %v1017 = vld [vmem:[#allocation8 + $0x18] sm:$0xff]
    %v1018 = vld [vmem:[#allocation8 + $0x20] sm:$0xff]
    %v1019 = vld [vmem:[#allocation8 + $0x28] sm:$0xff]
    %v1020 = vld [vmem:[#allocation8 + $0x30] sm:$0xff]
    %v1021 = vld [vmem:[#allocation8 + $0x38] sm:$0xff]
    %v1022 = vld [vmem:[#allocation8 + $0x40] sm:$0xff]
    %v1023 = vld [vmem:[#allocation8 + $0x48] sm:$0xff]
    %v1024 = vld [vmem:[#allocation8 + $0x50] sm:$0xff]
    %v1025 = vld [vmem:[#allocation8 + $0x58] sm:$0xff]
    %v1026 = vld [vmem:[#allocation8 + $0x60] sm:$0xff]
    %v1027 = vld [vmem:[#allocation8 + $0x68] sm:$0xff]
    %v1028 = vld [vmem:[#allocation8 + $0x70] sm:$0xff]
    %v1029 = vld [vmem:[#allocation8 + $0x78] sm:$0xff]
    %v1030 = vld [vmem:[#allocation8 + $0x80] sm:$0xff]
    %v1031 = vld [vmem:[#allocation8 + $0x88] sm:$0xff]
    %v1032 = vld [vmem:[#allocation8 + $0x90] sm:$0xff]
    %v1033 = vld [vmem:[#allocation8 + $0x98] sm:$0xff]
    %v1034 = vld [vmem:[#allocation8 + $0xa0] sm:$0xff]
    %v1035 = vld [vmem:[#allocation8 + $0xa8] sm:$0xff]
    %v1036 = vld [vmem:[#allocation8 + $0xb0] sm:$0xff]
    %v1037 = vld [vmem:[#allocation8 + $0xb8] sm:$0xff]
    %v1038 = vld [vmem:[#allocation8 + $0xc0] sm:$0xff]
    %v1039 = vld [vmem:[#allocation8 + $0xc8] sm:$0xff]
    %v1040 = vld [vmem:[#allocation8 + $0xd0] sm:$0xff]
    %v1041 = vld [vmem:[#allocation8 + $0xd8] sm:$0xff]
    %v1042 = vld [vmem:[#allocation8 + $0xe0] sm:$0xff]
    %v1043 = vld [vmem:[#allocation8 + $0xe8] sm:$0xff]
    %v1044 = vld [vmem:[#allocation8 + $0xf0] sm:$0xff]
    %v1045 = vld [vmem:[#allocation8 + $0xf8] sm:$0xff]
    %v1046 = vld [vmem:[#allocation10] sm:$0xff]
    %v1047 = vld [vmem:[#allocation10 + $0x8] sm:$0xff]
    %v1048 = vld [vmem:[#allocation10 + $0x10] sm:$0xff]
    %v1049 = vld [vmem:[#allocation10 + $0x18] sm:$0xff]
    %v1050 = vld [vmem:[#allocation10 + $0x20] sm:$0xff]
    %v1051 = vld [vmem:[#allocation10 + $0x28] sm:$0xff]
    %v1052 = vld [vmem:[#allocation10 + $0x30] sm:$0xff]
    %v1053 = vld [vmem:[#allocation10 + $0x38] sm:$0xff]
    %v1054 = vld [vmem:[#allocation10 + $0x40] sm:$0xff]
    %v1055 = vld [vmem:[#allocation10 + $0x48] sm:$0xff]
    %v1056 = vld [vmem:[#allocation10 + $0x50] sm:$0xff]
    %v1057 = vld [vmem:[#allocation10 + $0x58] sm:$0xff]
    %v1058 = vld [vmem:[#allocation10 + $0x60] sm:$0xff]
    %v1059 = vld [vmem:[#allocation10 + $0x68] sm:$0xff]
    %v1060 = vld [vmem:[#allocation10 + $0x70] sm:$0xff]
    %v1061 = vld [vmem:[#allocation10 + $0x78] sm:$0xff]
    %1062 = vmatprep.subr.mxu0 0.0
    %1063 = vmatpush1.msra.mxu0 %v982
    %1064 = vmatprep.subr.mxu0 0.0
    %1065 = vmatpush1.msra.mxu0 %v983
    %1066 = vmatprep.subr.mxu0 0.0
    %1067 = vmatpush1.msra.mxu0 %v984
    %1068 = vmatprep.subr.mxu0 0.0
    %1069 = vmatpush1.msra.mxu0 %v985
    %1070 = vmatprep.subr.mxu0 0.0
    %1071 = vmatpush1.msra.mxu0 %v986
    %1072 = vmatprep.subr.mxu0 0.0
    %1073 = vmatpush1.msra.mxu0 %v987
    %1074 = vmatprep.subr.mxu0 0.0
    %1075 = vmatpush1.msra.mxu0 %v988
    %1076 = vmatprep.subr.mxu0 0.0
    %1077 = vmatpush1.msra.mxu0 %v989
    %1078 = vmatprep.subr.mxu0 0.0
    %1079 = vmatpush1.msra.mxu0 %v990
    %1080 = vmatprep.subr.mxu0 0.0
    %1081 = vmatpush1.msra.mxu0 %v991
    %1082 = vmatprep.subr.mxu0 0.0
    %1083 = vmatpush1.msra.mxu0 %v992
    %1084 = vmatprep.subr.mxu0 0.0
    %1085 = vmatpush1.msra.mxu0 %v993
    %1086 = vmatprep.subr.mxu0 0.0
    %1087 = vmatpush1.msra.mxu0 %v994
    %1088 = vmatprep.subr.mxu0 0.0
    %1089 = vmatpush1.msra.mxu0 %v995
    %1090 = vmatprep.subr.mxu0 0.0
    %1091 = vmatpush1.msra.mxu0 %v996
    %1092 = vmatprep.subr.mxu0 0.0
    %1093 = vmatpush1.msra.mxu0 %v997
    %1094 = vmatprep.subr.mxu0 0.0
    %1095 = vmatpush1.msra.mxu0 %v998
    %1096 = vmatprep.subr.mxu0 0.0
    %1097 = vmatpush1.msra.mxu0 %v999
    %1098 = vmatprep.subr.mxu0 0.0
    %1099 = vmatpush1.msra.mxu0 %v1000
    %1100 = vmatprep.subr.mxu0 0.0
    %1101 = vmatpush1.msra.mxu0 %v1001
    %1102 = vmatprep.subr.mxu0 0.0
    %1103 = vmatpush1.msra.mxu0 %v1002
    %1104 = vmatprep.subr.mxu0 0.0
    %1105 = vmatpush1.msra.mxu0 %v1003
    %1106 = vmatprep.subr.mxu0 0.0
    %1107 = vmatpush1.msra.mxu0 %v1004
    %1108 = vmatprep.subr.mxu0 0.0
    %1109 = vmatpush1.msra.mxu0 %v1005
    %1110 = vmatprep.subr.mxu0 0.0
    %1111 = vmatpush1.msra.mxu0 %v1006
    %1112 = vmatprep.subr.mxu0 0.0
    %1113 = vmatpush1.msra.mxu0 %v1007
    %1114 = vmatprep.subr.mxu0 0.0
    %1115 = vmatpush1.msra.mxu0 %v1008
    %1116 = vmatprep.subr.mxu0 0.0
    %1117 = vmatpush1.msra.mxu0 %v1009
    %1118 = vmatprep.subr.mxu0 0.0
    %1119 = vmatpush1.msra.mxu0 %v1010
    %1120 = vmatprep.subr.mxu0 0.0
    %1121 = vmatpush1.msra.mxu0 %v1011
    %1122 = vmatprep.subr.mxu0 0.0
    %1123 = vmatpush1.msra.mxu0 %v1012
    %1124 = vmatprep.subr.mxu0 0.0
    %1125 = vmatpush1.msra.mxu0 %v1013
    %1126 = vmatprep.mubr.f32.mxu0 %v1015
    %1127 = vmatmul.mubr.f32.gmra.mrb[0].mxu0 %v1014
    %v1128 = vpop.f32.mrb[0].mxu0
    %v1129 = vadd.f32 %v1046, %v1128
    %v1130 = vpop.f32.mrb[0].mxu0
    %1131 = vmatprep.mubr.f32.mxu0 %v1017
    %1132 = vmatmul.mubr.f32.gmra.mrb[0].mxu0 %v1016
    %v1133 = vpop.f32.mrb[0].mxu0
    %v1134 = vadd.f32 %v1047, %v1133
    %v1135 = vpop.f32.mrb[0].mxu0
    %1136 = vmatprep.mubr.f32.mxu0 %v1019
    %1137 = vmatmul.mubr.f32.gmra.mrb[0].mxu0 %v1018
    %v1138 = vpop.f32.mrb[0].mxu0
    %v1139 = vadd.f32 %v1048, %v1138
    %v1140 = vpop.f32.mrb[0].mxu0
    %1141 = vmatprep.mubr.f32.mxu0 %v1021
    %1142 = vmatmul.mubr.f32.gmra.mrb[0].mxu0 %v1020
    %v1143 = vpop.f32.mrb[0].mxu0
    %v1144 = vadd.f32 %v1049, %v1143
    %v1145 = vpop.f32.mrb[0].mxu0
    %1146 = vmatprep.mubr.f32.mxu0 %v1023
    %1147 = vmatmul.mubr.f32.gmra.mrb[0].mxu0 %v1022
    %v1148 = vpop.f32.mrb[0].mxu0
    %v1149 = vadd.f32 %v1050, %v1148
    %v1150 = vpop.f32.mrb[0].mxu0
    %1151 = vmatprep.mubr.f32.mxu0 %v1025
    %1152 = vmatmul.mubr.f32.gmra.mrb[0].mxu0 %v1024
    %v1153 = vpop.f32.mrb[0].mxu0
    %v1154 = vadd.f32 %v1051, %v1153
    %v1155 = vpop.f32.mrb[0].mxu0
    %1156 = vmatprep.mubr.f32.mxu0 %v1027
    %1157 = vmatmul.mubr.f32.gmra.mrb[0].mxu0 %v1026
    %v1158 = vpop.f32.mrb[0].mxu0
    %v1159 = vadd.f32 %v1052, %v1158
    %v1160 = vpop.f32.mrb[0].mxu0
    %1161 = vmatprep.mubr.f32.mxu0 %v1029
    %1162 = vmatmul.mubr.f32.gmra.mrb[0].mxu0 %v1028
    %v1163 = vpop.f32.mrb[0].mxu0
    %v1164 = vadd.f32 %v1053, %v1163
    %v1165 = vpop.f32.mrb[0].mxu0
    %1166 = vmatprep.mubr.f32.mxu0 %v1031
    %1167 = vmatmul.mubr.f32.gmra.mrb[0].mxu0 %v1030
    %v1168 = vpop.f32.mrb[0].mxu0
    %v1169 = vadd.f32 %v1054, %v1168
    %v1170 = vpop.f32.mrb[0].mxu0
    %1171 = vmatprep.mubr.f32.mxu0 %v1033
    %1172 = vmatmul.mubr.f32.gmra.mrb[0].mxu0 %v1032
    %v1173 = vpop.f32.mrb[0].mxu0
    %v1174 = vadd.f32 %v1055, %v1173
    %v1175 = vpop.f32.mrb[0].mxu0
    %1176 = vmatprep.mubr.f32.mxu0 %v1035
    %1177 = vmatmul.mubr.f32.gmra.mrb[0].mxu0 %v1034
    %v1178 = vpop.f32.mrb[0].mxu0
    %v1179 = vadd.f32 %v1056, %v1178
    %v1180 = vpop.f32.mrb[0].mxu0
    %1181 = vmatprep.mubr.f32.mxu0 %v1037
    %1182 = vmatmul.mubr.f32.gmra.mrb[0].mxu0 %v1036
    %v1183 = vpop.f32.mrb[0].mxu0
    %v1184 = vadd.f32 %v1057, %v1183
    %v1185 = vpop.f32.mrb[0].mxu0
    %1186 = vmatprep.mubr.f32.mxu0 %v1039
    %1187 = vmatmul.mubr.f32.gmra.mrb[0].mxu0 %v1038
    %v1188 = vpop.f32.mrb[0].mxu0
    %v1189 = vadd.f32 %v1058, %v1188
    %v1190 = vpop.f32.mrb[0].mxu0
    %1191 = vmatprep.mubr.f32.mxu0 %v1041
    %1192 = vmatmul.mubr.f32.gmra.mrb[0].mxu0 %v1040
    %v1193 = vpop.f32.mrb[0].mxu0
    %v1194 = vadd.f32 %v1059, %v1193
    %v1195 = vpop.f32.mrb[0].mxu0
    %1196 = vmatprep.mubr.f32.mxu0 %v1043
    %1197 = vmatmul.mubr.f32.gmra.mrb[0].mxu0 %v1042
    %v1198 = vpop.f32.mrb[0].mxu0
    %v1199 = vadd.f32 %v1060, %v1198
    %v1200 = vpop.f32.mrb[0].mxu0
    %1201 = vmatprep.mubr.f32.mxu0 %v1045
    %1202 = vmatmul.mubr.f32.gmra.mrb[0].mxu0 %v1044
    %v1203 = vpop.f32.mrb[0].mxu0
    %v1204 = vadd.f32 %v1061, %v1203
    %v1205 = vpop.f32.mrb[0].mxu0
    %1206 = vdwg.mxu0
    %v1207 = vmax.f32 %v1129, 0.0
    %v1208 = vmax.f32 %v1134, 0.0
    %v1209 = vmax.f32 %v1139, 0.0
    %v1210 = vmax.f32 %v1144, 0.0
    %v1211 = vmax.f32 %v1149, 0.0
    %v1212 = vmax.f32 %v1154, 0.0
    %v1213 = vmax.f32 %v1159, 0.0
    %v1214 = vmax.f32 %v1164, 0.0
    %v1215 = vmax.f32 %v1169, 0.0
    %v1216 = vmax.f32 %v1174, 0.0
    %v1217 = vmax.f32 %v1179, 0.0
    %v1218 = vmax.f32 %v1184, 0.0
    %v1219 = vmax.f32 %v1189, 0.0
    %v1220 = vmax.f32 %v1194, 0.0
    %v1221 = vmax.f32 %v1199, 0.0
    %v1222 = vmax.f32 %v1204, 0.0
    %v1223 = vld [vmem:[#allocation11] sm:$0xff]
    %v1224 = vld [vmem:[#allocation11 + $0x8] sm:$0xff]
    %v1225 = vld [vmem:[#allocation11 + $0x10] sm:$0xff]
    %v1226 = vld [vmem:[#allocation11 + $0x18] sm:$0xff]
    %v1227 = vld [vmem:[#allocation11 + $0x20] sm:$0xff]
    %v1228 = vld [vmem:[#allocation13] sm:$0xff]
    %v1229 = vld [vmem:[#allocation13 + $0x8] sm:$0xff]
    %v1230 = vld [vmem:[#allocation13 + $0x10] sm:$0xff]
    %v1231 = vld [vmem:[#allocation13 + $0x18] sm:$0xff]
    %v1232 = vld [vmem:[#allocation13 + $0x20] sm:$0xff]
    %1233 = vmatprep.subr.mxu0 0.0
    %1234 = vmatpush1.msra.mxu0 %v1207
    %1235 = vmatprep.subr.mxu0 0.0
    %1236 = vmatpush1.msra.mxu0 %v1208
    %1237 = vmatprep.subr.mxu0 0.0
    %1238 = vmatpush1.msra.mxu0 %v1209
    %1239 = vmatprep.subr.mxu0 0.0
    %1240 = vmatpush1.msra.mxu0 %v1210
    %1241 = vmatprep.subr.mxu0 0.0
    %1242 = vmatpush1.msra.mxu0 %v1211
    %1243 = vmatprep.subr.mxu0 0.0
    %1244 = vmatpush1.msra.mxu0 %v1212
    %1245 = vmatprep.subr.mxu0 0.0
    %1246 = vmatpush1.msra.mxu0 %v1213
    %1247 = vmatprep.subr.mxu0 0.0
    %1248 = vmatpush1.msra.mxu0 %v1214
    %1249 = vmatprep.subr.mxu0 0.0
    %1250 = vmatpush1.msra.mxu0 %v1215
    %1251 = vmatprep.subr.mxu0 0.0
    %1252 = vmatpush1.msra.mxu0 %v1216
    %1253 = vmatprep.subr.mxu0 0.0
    %1254 = vmatpush1.msra.mxu0 %v1217
    %1255 = vmatprep.subr.mxu0 0.0
    %1256 = vmatpush1.msra.mxu0 %v1218
    %1257 = vmatprep.subr.mxu0 0.0
    %1258 = vmatpush1.msra.mxu0 %v1219
    %1259 = vmatprep.subr.mxu0 0.0
    %1260 = vmatpush1.msra.mxu0 %v1220
    %1261 = vmatprep.subr.mxu0 0.0
    %1262 = vmatpush1.msra.mxu0 %v1221
    %1263 = vmatprep.subr.mxu0 0.0
    %1264 = vmatpush1.msra.mxu0 %v1222
    %1265 = vmatprep.subr.mxu0 0.0
    %1266 = vmatpush1.msra.mxu0 0.0
    %1267 = vmatprep.subr.mxu0 0.0
    %1268 = vmatpush1.msra.mxu0 0.0
    %1269 = vmatprep.subr.mxu0 0.0
    %1270 = vmatpush1.msra.mxu0 0.0
    %1271 = vmatprep.subr.mxu0 0.0
    %1272 = vmatpush1.msra.mxu0 0.0
    %1273 = vmatprep.subr.mxu0 0.0
    %1274 = vmatpush1.msra.mxu0 0.0
    %1275 = vmatprep.subr.mxu0 0.0
    %1276 = vmatpush1.msra.mxu0 0.0
    %1277 = vmatprep.subr.mxu0 0.0
    %1278 = vmatpush1.msra.mxu0 0.0
    %1279 = vmatprep.subr.mxu0 0.0
    %1280 = vmatpush1.msra.mxu0 0.0
    %1281 = vmatprep.subr.mxu0 0.0
    %1282 = vmatpush1.msra.mxu0 0.0
    %1283 = vmatprep.subr.mxu0 0.0
    %1284 = vmatpush1.msra.mxu0 0.0
    %1285 = vmatprep.subr.mxu0 0.0
    %1286 = vmatpush1.msra.mxu0 0.0
    %1287 = vmatprep.subr.mxu0 0.0
    %1288 = vmatpush1.msra.mxu0 0.0
    %1289 = vmatprep.subr.mxu0 0.0
    %1290 = vmatpush1.msra.mxu0 0.0
    %1291 = vmatprep.subr.mxu0 0.0
    %1292 = vmatpush1.msra.mxu0 0.0
    %1293 = vmatprep.subr.mxu0 0.0
    %1294 = vmatpush1.msra.mxu0 0.0
    %1295 = vmatprep.subr.mxu0 0.0
    %1296 = vmatpush1.msra.mxu0 0.0
    %1297 = vmatprep.mubr.f32.mxu0 0.0
    %1298 = vmatmul.mubr.f32.gmra.mrb[0].mxu0 %v1223
    %v1299 = vpop.f32.mrb[0].mxu0
    %v1300 = vadd.f32 %v1228, %v1299
    %v1301 = vpop.f32.mrb[0].mxu0
    %1302 = vmatprep.mubr.f32.mxu0 0.0
    %1303 = vmatmul.mubr.f32.gmra.mrb[0].mxu0 %v1224
    %v1304 = vpop.f32.mrb[0].mxu0
    %v1305 = vadd.f32 %v1229, %v1304
    %v1306 = vpop.f32.mrb[0].mxu0
    %1307 = vmatprep.mubr.f32.mxu0 0.0
    %1308 = vmatmul.mubr.f32.gmra.mrb[0].mxu0 %v1225
    %v1309 = vpop.f32.mrb[0].mxu0
    %v1310 = vadd.f32 %v1230, %v1309
    %v1311 = vpop.f32.mrb[0].mxu0
    %1312 = vmatprep.mubr.f32.mxu0 0.0
    %1313 = vmatmul.mubr.f32.gmra.mrb[0].mxu0 %v1226
    %v1314 = vpop.f32.mrb[0].mxu0
    %v1315 = vadd.f32 %v1231, %v1314
    %v1316 = vpop.f32.mrb[0].mxu0
    %1317 = vmatprep.mubr.f32.mxu0 0.0
    %1318 = vmatmul.mubr.f32.gmra.mrb[0].mxu0 %v1227
    %v1319 = vpop.f32.mrb[0].mxu0
    %v1320 = vadd.f32 %v1232, %v1319
    %v1321 = vpop.f32.mrb[0].mxu0
    %1322 = vdwg.mxu0
    %v1323 = vmax.f32 %v1300, 0.0
    %v1324 = vmax.f32 %v1305, 0.0
    %v1325 = vmax.f32 %v1310, 0.0
    %v1326 = vmax.f32 %v1315, 0.0
    %v1327 = vmax.f32 %v1320, 0.0
    %v1328 = vmax.f32 %v1323, %v1324
    %v1329 = vmax.f32 %v1328, %v1325
    %v1330 = vmax.f32 %v1329, %v1326
    %v1331 = vmax.f32 %v1330, %v1327
    %v1332 = vsub.f32 %v1323, %v1331
    %v1333 = vmul.f32 %v1332, 1.442695
    %v1334 = vpow.pop %v1333
    %v1335 = vsub.f32 %v1324, %v1331
    %v1336 = vmul.f32 %v1335, 1.442695
    %v1337 = vpow.pop %v1336
    %v1338 = vadd.f32 %v1334, %v1337
    %v1339 = vsub.f32 %v1325, %v1331
    %v1340 = vmul.f32 %v1339, 1.442695
    %v1341 = vpow.pop %v1340
    %v1342 = vadd.f32 %v1338, %v1341
    %v1343 = vsub.f32 %v1326, %v1331
    %v1344 = vmul.f32 %v1343, 1.442695
    %v1345 = vpow.pop %v1344
    %v1346 = vadd.f32 %v1342, %v1345
    %v1347 = vsub.f32 %v1327, %v1331
    %v1348 = vmul.f32 %v1347, 1.442695
    %v1349 = vpow.pop %v1348
    %v1350 = vadd.f32 %v1346, %v1349
    %v1351 = vlog2.pop %v1350
    %v1352 = vmul.f32 %v1351, 0.6931472
    %v1353 = vadd.f32 %v1331, %v1352
    %v1354 = vsub.f32 %v1323, %v1353
    %1355 = vst [vmem:[#allocation14] sm:$0xff] %v1354
    %v1356 = vsub.f32 %v1324, %v1353
    %s1357 = scalar_lea.vmem [#allocation14], 8
    %1358 = vst [vmem:[%s1357] sm:$0xff] %v1356
    %v1359 = vsub.f32 %v1325, %v1353
    %s1360 = scalar_lea.vmem [#allocation14], 16
    %1361 = vst [vmem:[%s1360] sm:$0xff] %v1359
    %v1362 = vsub.f32 %v1326, %v1353
    %s1363 = scalar_lea.vmem [#allocation14], 24
    %1364 = vst [vmem:[%s1363] sm:$0xff] %v1362
    %v1365 = vsub.f32 %v1327, %v1353
    %s1366 = scalar_lea.vmem [#allocation14], 32
    %1367 = vst [vmem:[%s1366] sm:$0xff] %v1365
    // Predicated region
    $region50: #{tpu_custom_call.1} parent=1 // pred_check
      _
    $region51: #{tpu_custom_call.1} parent=1 // pred_check_branch
      %1369 = sbr.rel (0) target = $region53
    $region52: #{tpu_custom_call.1} parent=1 // pred_region
      %s1371 = ssub.s32 640, 640
      %1372 = vsyncadd [#allocation5], %s1371
      %s1373 = sshll.u32 [#allocation14], 4
      %s1374 = int_to_ptr.vmem [resolvable:$true] %s1373
      %1379 = dma.vmem_to_hbm [thread:$0]  %s1374, 640, %s6, [#allocation5], 128, 128, 8
    $region53: #{tpu_custom_call.1} parent=1 // pred_fallthru
      _
    // Predicated region
    $region54: #{tpu_custom_call.1} parent=1 // pred_check
      _
    $region55: #{tpu_custom_call.1} parent=1 // pred_check_branch
      %1381 = sbr.rel (0) target = $region57
    $region56: #{tpu_custom_call.1} parent=1 // pred_region
      %1382 = dma.done [#allocation5], 640
    $region57: #{tpu_custom_call.1} parent=1 // pred_fallthru
      _
    %1383 = vsyncpa [#allocation4], 1
    %1384 = vsyncpa [#allocation9], 1
    %1385 = vsyncpa [#allocation12], 1
    %1386 = vsyncpa [#allocation5], 1
    %1387 = vsyncpa [#allocation6], 1

</llo_original>
